<compile_context>
chip_gen: v7x
topology: tpu7x:2x2x1
jax: 0.10.0
libtpu: 0.0.40
codegen_flags: <defaults>
</compile_context>

<pallas_src>
import jax
import jax.numpy as jnp
from jax import lax
from jax.experimental import pallas as pl
from jax.experimental.pallas import tpu as pltpu

K_CHEB = 5
LAMBDA_MAX = 3.0      # module default (ManNetR(lambda_max=3.0))
F1_PAD = 8            # bi1 single input feature padded to 8 lanes (zeros => exact math)
H1 = 128              # bi1 output width (2 x 64)
H2 = 512              # bi2 output width (2 x 256)
C_PAD = 128           # lane-dense classifier output width (sliced to n_classes outside)
N_CLASSES = 4


# ---------------------------------------------------------------------------
# Fused Pallas kernel: bi1 -> ReLU -> bi2 -> ReLU -> mean-pool -> Linear
# ---------------------------------------------------------------------------
def _mannet_fused_kernel(t_ref, x_ref,
                         w1f_ref, b1f_ref, w1r_ref, b1r_ref,
                         w2f_ref, b2f_ref, w2r_ref, b2r_ref,
                         p_ref, wc_ref, bc_ref,
                         out_ref,
                         h1_scr, z2_scr):
    """Refs:
      t_ref  : (N, N)   bf16  scaled Laplacian L_hat
      x_ref  : (N, 8)   f32   input feature in column 0, rest zero
      w1*    : (8, 64)  f32   bi1 per-order weight rows (row k = W_k[0, :])
      b1*    : (1, 64)  f32
      w2*    : (640,256)f32   bi2 stacked weights (row k*128+f = W_k[f, :])
      b2*    : (1, 256) f32
      p_ref  : (G, N)   f32   mean-pool matrix
      wc_ref : (512,128)f32   classifier weight, lane-padded
      bc_ref : (1, 128) f32   classifier bias, lane-padded
      out_ref: (G, 128) f32
      h1_scr : (N, 128) f32   bi1 output (post-ReLU)
      z2_scr : (N, 640) f32   bi2 Chebyshev Z stack (reused for both directions)
    """
    t = t_ref[...]                                     # (N, N) bf16, resident for both blocks

    def prop_fwd(z):                                   # L_hat @ Z    (flow='target_to_source')
        return jnp.dot(t, z.astype(jnp.bfloat16),
                       preferred_element_type=jnp.float32)

    def prop_rev(z):                                   # L_hat^T @ Z  (flow='source_to_target')
        # contract T's row axis on the MXU; no explicit transpose materialized
        return lax.dot_general(t, z.astype(jnp.bfloat16),
                               dimension_numbers=(((0,), (0,)), ((), ())),
                               preferred_element_type=jnp.float32)

    # ---- bi1: ChebConv(1 -> 64) per direction, fused ReLU ------------------
    # n_features == 1, so each per-order feature matmul is a rank-1 update
    # acc += Z_k[:, 0:1] * W_k[0, :]  done on the VPU (no 128-wide zero padding).
    def bi1_direction(prop, w_ref, b_ref):
        z0 = x_ref[...]                                # (N, 8) f32
        acc = z0[:, 0:1] * w_ref[0:1, :]               # (N, 64)
        z1 = prop(z0)
        acc = acc + z1[:, 0:1] * w_ref[1:2, :]
        zp2, zp1 = z0, z1
        for k in range(2, K_CHEB):
            z = 2.0 * prop(zp1) - zp2                  # recursion stays f32 on the VPU
            acc = acc + z[:, 0:1] * w_ref[k:k + 1, :]
            zp2, zp1 = zp1, z
        return jnp.maximum(acc + b_ref[...], 0.0)      # ReLU(concat) == concat(ReLU)

    h1_scr[:, :64] = bi1_direction(prop_fwd, w1f_ref, b1f_ref)   # slice stores, no concat
    h1_scr[:, 64:] = bi1_direction(prop_rev, w1r_ref, b1r_ref)

    # ---- bi2: ChebConv(128 -> 256) per direction + pool + classifier -------
    def bi2_pool_cls(prop, w_ref, b_ref, wc_slice):
        h1 = h1_scr[...]                               # (N, 128) f32
        z2_scr[:, :H1] = h1                            # Z0
        z2_scr[:, H1:2 * H1] = prop(h1)                # Z1
        for k in range(2, K_CHEB):
            zp1 = z2_scr[:, (k - 1) * H1:k * H1]
            zp2 = z2_scr[:, (k - 2) * H1:(k - 1) * H1]
            z2_scr[:, k * H1:(k + 1) * H1] = 2.0 * prop(zp1) - zp2
        # single stacked feature matmul: (N, K*128) @ (K*128, 256)
        h2 = jnp.maximum(
            jnp.dot(z2_scr[...], w_ref[...], preferred_element_type=jnp.float32)
            + b_ref[...], 0.0)                                                   # (N, 256)
        pooled = jnp.dot(p_ref[...], h2, preferred_element_type=jnp.float32)     # (G, 256)
        return jnp.dot(pooled, wc_slice, preferred_element_type=jnp.float32)     # (G, 128)

    out_f = bi2_pool_cls(prop_fwd, w2f_ref, b2f_ref, wc_ref[:256, :])
    out_r = bi2_pool_cls(prop_rev, w2r_ref, b2r_ref, wc_ref[256:, :])
    out_ref[...] = out_f + out_r + bc_ref[...]


def _vmem_limit_bytes(n):
    # bf16 T + generous per-node scratch/temporaries + weights/slack, capped below the
    # smallest physical VMEM (64 MiB on v7x).
    return int(min(64 * 1024 * 1024, 2 * n * n + 16384 * n + (8 << 20)))


def _fused_forward_call(t_bf16, x8, w1f, b1f, w1r, b1r, w2f, b2f, w2r, b2r, p, wc, bc):
    n = t_bf16.shape[0]
    g = p.shape[0]
    vmem_spec = pl.BlockSpec(memory_space=pltpu.MemorySpace.VMEM)
    return pl.pallas_call(
        _mannet_fused_kernel,
        out_shape=jax.ShapeDtypeStruct((g, C_PAD), jnp.float32),
        in_specs=[vmem_spec] * 13,
        out_specs=vmem_spec,
        scratch_shapes=[pltpu.VMEM((n, H1), jnp.float32),
                        pltpu.VMEM((n, K_CHEB * H1), jnp.float32)],
        compiler_params=pltpu.CompilerParams(vmem_limit_bytes=_vmem_limit_bytes(n)),
    )(t_bf16, x8, w1f, b1f, w1r, b1r, w2f, b2f, w2r, b2r, p, wc, bc)


# ---------------------------------------------------------------------------
# Plain-JAX glue: graph -> dense scaled Laplacian, batch -> pooling matrix
# TODO(synk): the sparse edge_index scatter / one-hot pool construction stays in plain JAX
# (data-dependent scatter with no clean dense-tile Pallas equivalent).
# ---------------------------------------------------------------------------
def scaled_laplacian_dense(edge_index, num_nodes, lambda_max=LAMBDA_MAX):
    """PyG ChebConv.__norm__ ('sym', fixed lambda_max) as a dense matrix:
       L_hat = (2 / lambda_max) * (I - D^{-1/2} A D^{-1/2}) - I
    """
    src, dst = edge_index[0], edge_index[1]
    w = jnp.ones(src.shape[0], jnp.float32)
    adj = jnp.zeros((num_nodes, num_nodes), jnp.float32).at[src, dst].add(w)
    deg = adj.sum(axis=1)
    dis = jnp.where(deg > 0, 1.0 / jnp.sqrt(jnp.maximum(deg, 1e-12)), 0.0)
    eye = jnp.eye(num_nodes, dtype=jnp.float32)
    lap = eye - dis[:, None] * adj * dis[None, :]
    return (2.0 / lambda_max) * lap - eye


def mean_pool_matrix(batch, num_graphs):
    onehot = (batch[None, :] == jnp.arange(num_graphs, dtype=batch.dtype)[:, None]).astype(jnp.float32)
    counts = jnp.maximum(onehot.sum(axis=1, keepdims=True), 1.0)
    return onehot / counts


# ---------------------------------------------------------------------------
# Parameters (deterministic synthetic init; shapes follow the module __init__)
# ---------------------------------------------------------------------------
def init_params(key, n_features=1, n_classes=N_CLASSES, k=K_CHEB):
    def glorot(k_, shape):
        fan_in, fan_out = shape[-2], shape[-1]
        s = jnp.sqrt(6.0 / (fan_in + fan_out))
        return jax.random.uniform(k_, shape, jnp.float32, -s, s)

    ks = jax.random.split(key, 10)
    return {
        # bi1: BidirectionalBlock(n_features, 128) -> 2 x ChebConv(n_features, 64, K=5)
        "bi1_wf": glorot(ks[0], (k, n_features, 64)),
        "bi1_bf": jax.random.uniform(ks[1], (1, 64), jnp.float32, -0.1, 0.1),
        "bi1_wr": glorot(ks[2], (k, n_features, 64)),
        "bi1_br": jax.random.uniform(ks[3], (1, 64), jnp.float32, -0.1, 0.1),
        # bi2: BidirectionalBlock(128, 512) -> 2 x ChebConv(128, 256, K=5)
        "bi2_wf": glorot(ks[4], (k, 128, 256)),
        "bi2_bf": jax.random.uniform(ks[5], (1, 256), jnp.float32, -0.1, 0.1),
        "bi2_wr": glorot(ks[6], (k, 128, 256)),
        "bi2_br": jax.random.uniform(ks[7], (1, 256), jnp.float32, -0.1, 0.1),
        # classifier: Linear(512 + n_global_features, n_classes), n_global_features=0
        "cls_w": glorot(ks[8], (512, n_classes)),
        "cls_b": jax.random.uniform(ks[9], (1, n_classes), jnp.float32, -0.1, 0.1),
    }


# ---------------------------------------------------------------------------
# Full ManNetR forward (single fused Pallas hot path)
# ---------------------------------------------------------------------------
def mannet_r_forward(params, x, edge_index, batch, num_graphs):
    n, f_in = x.shape
    assert f_in == 1, "kernel specialises the module default n_features=1"
    n_classes = params["cls_w"].shape[1]

    # bf16 MXU operand for T (recursion / accumulation stay f32 inside the kernel).
    t = scaled_laplacian_dense(edge_index, n).astype(jnp.bfloat16)

    # bi1 input: single feature padded to 8 lanes (exact — extra columns are zero).
    x8 = jnp.zeros((n, F1_PAD), jnp.float32).at[:, :f_in].set(x)

    # bi1 weights as (8, 64): row k = W_k[0, :]  (rows 5..7 zero, unused).
    w1f = jnp.zeros((F1_PAD, 64), jnp.float32).at[:K_CHEB, :].set(params["bi1_wf"][:, 0, :])
    w1r = jnp.zeros((F1_PAD, 64), jnp.float32).at[:K_CHEB, :].set(params["bi1_wr"][:, 0, :])
    # bi2 weights stacked over the Chebyshev order: (K*128, 256), row k*128+f = W_k[f, :].
    w2f = params["bi2_wf"].reshape(K_CHEB * H1, 256)
    w2r = params["bi2_wr"].reshape(K_CHEB * H1, 256)
    # classifier lane-padded to 128 output columns (sliced back below).
    wc = jnp.zeros((H2, C_PAD), jnp.float32).at[:, :n_classes].set(params["cls_w"])
    bc = jnp.zeros((1, C_PAD), jnp.float32).at[:, :n_classes].set(params["cls_b"])

    p = mean_pool_matrix(batch, num_graphs)                       # (G, N)

    out_pad = _fused_forward_call(t, x8,
                                  w1f, params["bi1_bf"], w1r, params["bi1_br"],
                                  w2f, params["bi2_bf"], w2r, params["bi2_br"],
                                  p, wc, bc)                      # (G, 128)
    return out_pad[:, :n_classes]


# ---------------------------------------------------------------------------
# Pure-JAX reference (same math, f32 everywhere) for the correctness check
# ---------------------------------------------------------------------------
def _cheb_ref(t, x, w, b):
    tx0 = x
    out = tx0 @ w[0]
    tx1 = t @ x
    out = out + tx1 @ w[1]
    for k in range(2, w.shape[0]):
        tx2 = 2.0 * (t @ tx1) - tx0
        out = out + tx2 @ w[k]
        tx0, tx1 = tx1, tx2
    return out + b


def reference_forward(params, x, edge_index, batch, num_graphs):
    n = x.shape[0]
    t = scaled_laplacian_dense(edge_index, n)
    h1 = jnp.concatenate(
        [_cheb_ref(t, x, params["bi1_wf"], params["bi1_bf"]),
         _cheb_ref(t.T, x, params["bi1_wr"], params["bi1_br"])], axis=1)
    h1 = jnp.maximum(h1, 0.0)
    h2 = jnp.concatenate(
        [_cheb_ref(t, h1, params["bi2_wf"], params["bi2_bf"]),
         _cheb_ref(t.T, h1, params["bi2_wr"], params["bi2_br"])], axis=1)
    h2 = jnp.maximum(h2, 0.0)
    p = mean_pool_matrix(batch, num_graphs)
    return p @ h2 @ params["cls_w"] + params["cls_b"]


# ---------------------------------------------------------------------------
if __name__ == "__main__":
    key = jax.random.PRNGKey(0)
    k_x, k_p = jax.random.split(key)

    nodes_per_graph, num_graphs = 32, 2
    n_nodes = nodes_per_graph * num_graphs

    # Node features (n_features = 1, as in the module defaults).
    x = jax.random.normal(k_x, (n_nodes, 1), jnp.float32)

    # Two directed path graphs (parent -> child edges), block-diagonal batch.
    edges = []
    for g in range(num_graphs):
        o = g * nodes_per_graph
        for i in range(nodes_per_graph - 1):
            edges.append((o + i, o + i + 1))
    edge_index = jnp.asarray(edges, dtype=jnp.int32).T                               # (2, E)
    batch = jnp.repeat(jnp.arange(num_graphs, dtype=jnp.int32), nodes_per_graph)     # (N,)

    params = init_params(k_p)

    fwd = jax.jit(mannet_r_forward, static_argnums=(4,))
    out = jax.block_until_ready(fwd(params, x, edge_index, batch, num_graphs))

    with jax.default_matmul_precision("highest"):
        ref = reference_forward(params, x, edge_index, batch, num_graphs)

    assert out.shape == (num_graphs, N_CLASSES), out.shape
    assert bool(jnp.all(jnp.isfinite(out)))
    # bf16 MXU operands (T and the Chebyshev Z operands) vs. an f32 "highest" reference:
    # compare at bf16-level tolerance.
    assert bool(jnp.allclose(out, ref, rtol=2e-2, atol=2e-2)), (out, ref)

    print("KERNEL_OK")
</pallas_src>

<mosaic_0001>
module attributes {stable_mosaic.version = 11 : i64} {
  func.func @_mannet_fused_kernel(%arg0: memref<64x64xbf16, #tpu.memory_space<vmem>>, %arg1: memref<64x8xf32, #tpu.memory_space<vmem>>, %arg2: memref<8x64xf32, #tpu.memory_space<vmem>>, %arg3: memref<1x64xf32, #tpu.memory_space<vmem>>, %arg4: memref<8x64xf32, #tpu.memory_space<vmem>>, %arg5: memref<1x64xf32, #tpu.memory_space<vmem>>, %arg6: memref<640x256xf32, #tpu.memory_space<vmem>>, %arg7: memref<1x256xf32, #tpu.memory_space<vmem>>, %arg8: memref<640x256xf32, #tpu.memory_space<vmem>>, %arg9: memref<1x256xf32, #tpu.memory_space<vmem>>, %arg10: memref<2x64xf32, #tpu.memory_space<vmem>>, %arg11: memref<512x128xf32, #tpu.memory_space<vmem>>, %arg12: memref<1x128xf32, #tpu.memory_space<vmem>>, %arg13: memref<2x128xf32, #tpu.memory_space<vmem>>, %arg14: memref<64x128xf32, #tpu.memory_space<vmem>>, %arg15: memref<64x640xf32, #tpu.memory_space<vmem>>) attributes {dimension_semantics = [], scalar_prefetch = 0 : i64, scratch_operands = 2 : i64, tpu.core_type = #tpu.core_type<tc>} {
    %c0 = arith.constant 0 : index
    %c0_0 = arith.constant 0 : index
    %0 = vector.load %arg0[%c0, %c0_0] : memref<64x64xbf16, #tpu.memory_space<vmem>>, vector<64x64xbf16>
    %c0_1 = arith.constant 0 : index
    %c0_2 = arith.constant 0 : index
    %1 = vector.load %arg1[%c0_1, %c0_2] : memref<64x8xf32, #tpu.memory_space<vmem>>, vector<64x8xf32>
    %2 = vector.extract_strided_slice %1 {offsets = [0, 0], sizes = [64, 1], strides = [1, 1]} : vector<64x8xf32> to vector<64x1xf32>
    %c0_3 = arith.constant 0 : index
    %c0_4 = arith.constant 0 : index
    %3 = vector.load %arg2[%c0_3, %c0_4] : memref<8x64xf32, #tpu.memory_space<vmem>>, vector<1x64xf32>
    %4 = vector.broadcast %2 : vector<64x1xf32> to vector<64x64xf32>
    %5 = vector.broadcast %3 : vector<1x64xf32> to vector<64x64xf32>
    %6 = arith.mulf %4, %5 : vector<64x64xf32>
    %7 = arith.truncf %1 : vector<64x8xf32> to vector<64x8xbf16>
    %cst = arith.constant dense<0.000000e+00> : vector<64x8xf32>
    %8 = tpu.matmul %0, %7, %cst {dimension_numbers = #tpu.dot_dimension_numbers<[1], [0], [0], [1], [0, 0, 1, 1], [], []>} : vector<64x64xbf16>, vector<64x8xbf16>, vector<64x8xf32> -> vector<64x8xf32>
    %9 = vector.extract_strided_slice %8 {offsets = [0, 0], sizes = [64, 1], strides = [1, 1]} : vector<64x8xf32> to vector<64x1xf32>
    %c1 = arith.constant 1 : index
    %c0_5 = arith.constant 0 : index
    %10 = vector.load %arg2[%c1, %c0_5] : memref<8x64xf32, #tpu.memory_space<vmem>>, vector<1x64xf32>
    %11 = vector.broadcast %9 : vector<64x1xf32> to vector<64x64xf32>
    %12 = vector.broadcast %10 : vector<1x64xf32> to vector<64x64xf32>
    %13 = arith.mulf %11, %12 : vector<64x64xf32>
    %14 = arith.addf %6, %13 : vector<64x64xf32>
    %15 = arith.truncf %8 : vector<64x8xf32> to vector<64x8xbf16>
    %cst_6 = arith.constant dense<0.000000e+00> : vector<64x8xf32>
    %16 = tpu.matmul %0, %15, %cst_6 {dimension_numbers = #tpu.dot_dimension_numbers<[1], [0], [0], [1], [0, 0, 1, 1], [], []>} : vector<64x64xbf16>, vector<64x8xbf16>, vector<64x8xf32> -> vector<64x8xf32>
    %cst_7 = arith.constant 2.000000e+00 : f32
    %17 = vector.broadcast %cst_7 : f32 to vector<64x8xf32>
    %18 = arith.mulf %17, %16 : vector<64x8xf32>
    %19 = arith.subf %18, %1 : vector<64x8xf32>
    %20 = vector.extract_strided_slice %19 {offsets = [0, 0], sizes = [64, 1], strides = [1, 1]} : vector<64x8xf32> to vector<64x1xf32>
    %c2 = arith.constant 2 : index
    %c0_8 = arith.constant 0 : index
    %21 = vector.load %arg2[%c2, %c0_8] : memref<8x64xf32, #tpu.memory_space<vmem>>, vector<1x64xf32>
    %22 = vector.broadcast %20 : vector<64x1xf32> to vector<64x64xf32>
    %23 = vector.broadcast %21 : vector<1x64xf32> to vector<64x64xf32>
    %24 = arith.mulf %22, %23 : vector<64x64xf32>
    %25 = arith.addf %14, %24 : vector<64x64xf32>
    %26 = arith.truncf %19 : vector<64x8xf32> to vector<64x8xbf16>
    %cst_9 = arith.constant dense<0.000000e+00> : vector<64x8xf32>
    %27 = tpu.matmul %0, %26, %cst_9 {dimension_numbers = #tpu.dot_dimension_numbers<[1], [0], [0], [1], [0, 0, 1, 1], [], []>} : vector<64x64xbf16>, vector<64x8xbf16>, vector<64x8xf32> -> vector<64x8xf32>
    %cst_10 = arith.constant 2.000000e+00 : f32
    %28 = vector.broadcast %cst_10 : f32 to vector<64x8xf32>
    %29 = arith.mulf %28, %27 : vector<64x8xf32>
    %30 = arith.subf %29, %8 : vector<64x8xf32>
    %31 = vector.extract_strided_slice %30 {offsets = [0, 0], sizes = [64, 1], strides = [1, 1]} : vector<64x8xf32> to vector<64x1xf32>
    %c3 = arith.constant 3 : index
    %c0_11 = arith.constant 0 : index
    %32 = vector.load %arg2[%c3, %c0_11] : memref<8x64xf32, #tpu.memory_space<vmem>>, vector<1x64xf32>
    %33 = vector.broadcast %31 : vector<64x1xf32> to vector<64x64xf32>
    %34 = vector.broadcast %32 : vector<1x64xf32> to vector<64x64xf32>
    %35 = arith.mulf %33, %34 : vector<64x64xf32>
    %36 = arith.addf %25, %35 : vector<64x64xf32>
    %37 = arith.truncf %30 : vector<64x8xf32> to vector<64x8xbf16>
    %cst_12 = arith.constant dense<0.000000e+00> : vector<64x8xf32>
    %38 = tpu.matmul %0, %37, %cst_12 {dimension_numbers = #tpu.dot_dimension_numbers<[1], [0], [0], [1], [0, 0, 1, 1], [], []>} : vector<64x64xbf16>, vector<64x8xbf16>, vector<64x8xf32> -> vector<64x8xf32>
    %cst_13 = arith.constant 2.000000e+00 : f32
    %39 = vector.broadcast %cst_13 : f32 to vector<64x8xf32>
    %40 = arith.mulf %39, %38 : vector<64x8xf32>
    %41 = arith.subf %40, %19 : vector<64x8xf32>
    %42 = vector.extract_strided_slice %41 {offsets = [0, 0], sizes = [64, 1], strides = [1, 1]} : vector<64x8xf32> to vector<64x1xf32>
    %c4 = arith.constant 4 : index
    %c0_14 = arith.constant 0 : index
    %43 = vector.load %arg2[%c4, %c0_14] : memref<8x64xf32, #tpu.memory_space<vmem>>, vector<1x64xf32>
    %44 = vector.broadcast %42 : vector<64x1xf32> to vector<64x64xf32>
    %45 = vector.broadcast %43 : vector<1x64xf32> to vector<64x64xf32>
    %46 = arith.mulf %44, %45 : vector<64x64xf32>
    %47 = arith.addf %36, %46 : vector<64x64xf32>
    %c0_15 = arith.constant 0 : index
    %c0_16 = arith.constant 0 : index
    %48 = vector.load %arg3[%c0_15, %c0_16] : memref<1x64xf32, #tpu.memory_space<vmem>>, vector<1x64xf32>
    %49 = vector.broadcast %48 : vector<1x64xf32> to vector<64x64xf32>
    %50 = arith.addf %47, %49 : vector<64x64xf32>
    %cst_17 = arith.constant 0.000000e+00 : f32
    %51 = vector.broadcast %cst_17 : f32 to vector<64x64xf32>
    %52 = arith.maximumf %50, %51 : vector<64x64xf32>
    %c0_18 = arith.constant 0 : index
    %c0_19 = arith.constant 0 : index
    %53 = vector.load %arg14[%c0_18, %c0_19] : memref<64x128xf32, #tpu.memory_space<vmem>>, vector<64x64xf32>
    tpu.vector_store %arg14[%c0_18, %c0_19], %52 {strides = array<i32>} : memref<64x128xf32, #tpu.memory_space<vmem>>, vector<64x64xf32>,
    %c0_20 = arith.constant 0 : index
    %c0_21 = arith.constant 0 : index
    %54 = vector.load %arg1[%c0_20, %c0_21] : memref<64x8xf32, #tpu.memory_space<vmem>>, vector<64x8xf32>
    %55 = vector.extract_strided_slice %54 {offsets = [0, 0], sizes = [64, 1], strides = [1, 1]} : vector<64x8xf32> to vector<64x1xf32>
    %c0_22 = arith.constant 0 : index
    %c0_23 = arith.constant 0 : index
    %56 = vector.load %arg4[%c0_22, %c0_23] : memref<8x64xf32, #tpu.memory_space<vmem>>, vector<1x64xf32>
    %57 = vector.broadcast %55 : vector<64x1xf32> to vector<64x64xf32>
    %58 = vector.broadcast %56 : vector<1x64xf32> to vector<64x64xf32>
    %59 = arith.mulf %57, %58 : vector<64x64xf32>
    %60 = arith.truncf %54 : vector<64x8xf32> to vector<64x8xbf16>
    %cst_24 = arith.constant dense<0.000000e+00> : vector<64x8xf32>
    %61 = tpu.matmul %0, %60, %cst_24 {dimension_numbers = #tpu.dot_dimension_numbers<[0], [0], [1], [1], [0, 1, 1, 1], [], []>} : vector<64x64xbf16>, vector<64x8xbf16>, vector<64x8xf32> -> vector<64x8xf32>
    %62 = vector.extract_strided_slice %61 {offsets = [0, 0], sizes = [64, 1], strides = [1, 1]} : vector<64x8xf32> to vector<64x1xf32>
    %c1_25 = arith.constant 1 : index
    %c0_26 = arith.constant 0 : index
    %63 = vector.load %arg4[%c1_25, %c0_26] : memref<8x64xf32, #tpu.memory_space<vmem>>, vector<1x64xf32>
    %64 = vector.broadcast %62 : vector<64x1xf32> to vector<64x64xf32>
    %65 = vector.broadcast %63 : vector<1x64xf32> to vector<64x64xf32>
    %66 = arith.mulf %64, %65 : vector<64x64xf32>
    %67 = arith.addf %59, %66 : vector<64x64xf32>
    %68 = arith.truncf %61 : vector<64x8xf32> to vector<64x8xbf16>
    %cst_27 = arith.constant dense<0.000000e+00> : vector<64x8xf32>
    %69 = tpu.matmul %0, %68, %cst_27 {dimension_numbers = #tpu.dot_dimension_numbers<[0], [0], [1], [1], [0, 1, 1, 1], [], []>} : vector<64x64xbf16>, vector<64x8xbf16>, vector<64x8xf32> -> vector<64x8xf32>
    %cst_28 = arith.constant 2.000000e+00 : f32
    %70 = vector.broadcast %cst_28 : f32 to vector<64x8xf32>
    %71 = arith.mulf %70, %69 : vector<64x8xf32>
    %72 = arith.subf %71, %54 : vector<64x8xf32>
    %73 = vector.extract_strided_slice %72 {offsets = [0, 0], sizes = [64, 1], strides = [1, 1]} : vector<64x8xf32> to vector<64x1xf32>
    %c2_29 = arith.constant 2 : index
    %c0_30 = arith.constant 0 : index
    %74 = vector.load %arg4[%c2_29, %c0_30] : memref<8x64xf32, #tpu.memory_space<vmem>>, vector<1x64xf32>
    %75 = vector.broadcast %73 : vector<64x1xf32> to vector<64x64xf32>
    %76 = vector.broadcast %74 : vector<1x64xf32> to vector<64x64xf32>
    %77 = arith.mulf %75, %76 : vector<64x64xf32>
    %78 = arith.addf %67, %77 : vector<64x64xf32>
    %79 = arith.truncf %72 : vector<64x8xf32> to vector<64x8xbf16>
    %cst_31 = arith.constant dense<0.000000e+00> : vector<64x8xf32>
    %80 = tpu.matmul %0, %79, %cst_31 {dimension_numbers = #tpu.dot_dimension_numbers<[0], [0], [1], [1], [0, 1, 1, 1], [], []>} : vector<64x64xbf16>, vector<64x8xbf16>, vector<64x8xf32> -> vector<64x8xf32>
    %cst_32 = arith.constant 2.000000e+00 : f32
    %81 = vector.broadcast %cst_32 : f32 to vector<64x8xf32>
    %82 = arith.mulf %81, %80 : vector<64x8xf32>
    %83 = arith.subf %82, %61 : vector<64x8xf32>
    %84 = vector.extract_strided_slice %83 {offsets = [0, 0], sizes = [64, 1], strides = [1, 1]} : vector<64x8xf32> to vector<64x1xf32>
    %c3_33 = arith.constant 3 : index
    %c0_34 = arith.constant 0 : index
    %85 = vector.load %arg4[%c3_33, %c0_34] : memref<8x64xf32, #tpu.memory_space<vmem>>, vector<1x64xf32>
    %86 = vector.broadcast %84 : vector<64x1xf32> to vector<64x64xf32>
    %87 = vector.broadcast %85 : vector<1x64xf32> to vector<64x64xf32>
    %88 = arith.mulf %86, %87 : vector<64x64xf32>
    %89 = arith.addf %78, %88 : vector<64x64xf32>
    %90 = arith.truncf %83 : vector<64x8xf32> to vector<64x8xbf16>
    %cst_35 = arith.constant dense<0.000000e+00> : vector<64x8xf32>
    %91 = tpu.matmul %0, %90, %cst_35 {dimension_numbers = #tpu.dot_dimension_numbers<[0], [0], [1], [1], [0, 1, 1, 1], [], []>} : vector<64x64xbf16>, vector<64x8xbf16>, vector<64x8xf32> -> vector<64x8xf32>
    %cst_36 = arith.constant 2.000000e+00 : f32
    %92 = vector.broadcast %cst_36 : f32 to vector<64x8xf32>
    %93 = arith.mulf %92, %91 : vector<64x8xf32>
    %94 = arith.subf %93, %72 : vector<64x8xf32>
    %95 = vector.extract_strided_slice %94 {offsets = [0, 0], sizes = [64, 1], strides = [1, 1]} : vector<64x8xf32> to vector<64x1xf32>
    %c4_37 = arith.constant 4 : index
    %c0_38 = arith.constant 0 : index
    %96 = vector.load %arg4[%c4_37, %c0_38] : memref<8x64xf32, #tpu.memory_space<vmem>>, vector<1x64xf32>
    %97 = vector.broadcast %95 : vector<64x1xf32> to vector<64x64xf32>
    %98 = vector.broadcast %96 : vector<1x64xf32> to vector<64x64xf32>
    %99 = arith.mulf %97, %98 : vector<64x64xf32>
    %100 = arith.addf %89, %99 : vector<64x64xf32>
    %c0_39 = arith.constant 0 : index
    %c0_40 = arith.constant 0 : index
    %101 = vector.load %arg5[%c0_39, %c0_40] : memref<1x64xf32, #tpu.memory_space<vmem>>, vector<1x64xf32>
    %102 = vector.broadcast %101 : vector<1x64xf32> to vector<64x64xf32>
    %103 = arith.addf %100, %102 : vector<64x64xf32>
    %cst_41 = arith.constant 0.000000e+00 : f32
    %104 = vector.broadcast %cst_41 : f32 to vector<64x64xf32>
    %105 = arith.maximumf %103, %104 : vector<64x64xf32>
    %c0_42 = arith.constant 0 : index
    %c64 = arith.constant 64 : index
    %106 = vector.load %arg14[%c0_42, %c64] : memref<64x128xf32, #tpu.memory_space<vmem>>, vector<64x64xf32>
    tpu.vector_store %arg14[%c0_42, %c64], %105 {strides = array<i32>} : memref<64x128xf32, #tpu.memory_space<vmem>>, vector<64x64xf32>,
    %c0_43 = arith.constant 0 : index
    %c0_44 = arith.constant 0 : index
    %107 = vector.load %arg11[%c0_43, %c0_44] : memref<512x128xf32, #tpu.memory_space<vmem>>, vector<256x128xf32>
    %c0_45 = arith.constant 0 : index
    %c0_46 = arith.constant 0 : index
    %108 = vector.load %arg14[%c0_45, %c0_46] : memref<64x128xf32, #tpu.memory_space<vmem>>, vector<64x128xf32>
    %c0_47 = arith.constant 0 : index
    %c0_48 = arith.constant 0 : index
    %109 = vector.load %arg15[%c0_47, %c0_48] : memref<64x640xf32, #tpu.memory_space<vmem>>, vector<64x128xf32>
    tpu.vector_store %arg15[%c0_47, %c0_48], %108 {strides = array<i32>} : memref<64x640xf32, #tpu.memory_space<vmem>>, vector<64x128xf32>,
    %110 = arith.truncf %108 : vector<64x128xf32> to vector<64x128xbf16>
    %cst_49 = arith.constant dense<0.000000e+00> : vector<64x128xf32>
    %111 = tpu.matmul %0, %110, %cst_49 {dimension_numbers = #tpu.dot_dimension_numbers<[1], [0], [0], [1], [0, 0, 1, 1], [], []>} : vector<64x64xbf16>, vector<64x128xbf16>, vector<64x128xf32> -> vector<64x128xf32>
    %c0_50 = arith.constant 0 : index
    %c128 = arith.constant 128 : index
    %112 = vector.load %arg15[%c0_50, %c128] : memref<64x640xf32, #tpu.memory_space<vmem>>, vector<64x128xf32>
    tpu.vector_store %arg15[%c0_50, %c128], %111 {strides = array<i32>} : memref<64x640xf32, #tpu.memory_space<vmem>>, vector<64x128xf32>,
    %c0_51 = arith.constant 0 : index
    %c128_52 = arith.constant 128 : index
    %113 = vector.load %arg15[%c0_51, %c128_52] : memref<64x640xf32, #tpu.memory_space<vmem>>, vector<64x128xf32>
    %c0_53 = arith.constant 0 : index
    %c0_54 = arith.constant 0 : index
    %114 = vector.load %arg15[%c0_53, %c0_54] : memref<64x640xf32, #tpu.memory_space<vmem>>, vector<64x128xf32>
    %115 = arith.truncf %113 : vector<64x128xf32> to vector<64x128xbf16>
    %cst_55 = arith.constant dense<0.000000e+00> : vector<64x128xf32>
    %116 = tpu.matmul %0, %115, %cst_55 {dimension_numbers = #tpu.dot_dimension_numbers<[1], [0], [0], [1], [0, 0, 1, 1], [], []>} : vector<64x64xbf16>, vector<64x128xbf16>, vector<64x128xf32> -> vector<64x128xf32>
    %cst_56 = arith.constant 2.000000e+00 : f32
    %117 = vector.broadcast %cst_56 : f32 to vector<64x128xf32>
    %118 = arith.mulf %117, %116 : vector<64x128xf32>
    %119 = arith.subf %118, %114 : vector<64x128xf32>
    %c0_57 = arith.constant 0 : index
    %c256 = arith.constant 256 : index
    %120 = vector.load %arg15[%c0_57, %c256] : memref<64x640xf32, #tpu.memory_space<vmem>>, vector<64x128xf32>
    tpu.vector_store %arg15[%c0_57, %c256], %119 {strides = array<i32>} : memref<64x640xf32, #tpu.memory_space<vmem>>, vector<64x128xf32>,
    %c0_58 = arith.constant 0 : index
    %c256_59 = arith.constant 256 : index
    %121 = vector.load %arg15[%c0_58, %c256_59] : memref<64x640xf32, #tpu.memory_space<vmem>>, vector<64x128xf32>
    %c0_60 = arith.constant 0 : index
    %c128_61 = arith.constant 128 : index
    %122 = vector.load %arg15[%c0_60, %c128_61] : memref<64x640xf32, #tpu.memory_space<vmem>>, vector<64x128xf32>
    %123 = arith.truncf %121 : vector<64x128xf32> to vector<64x128xbf16>
    %cst_62 = arith.constant dense<0.000000e+00> : vector<64x128xf32>
    %124 = tpu.matmul %0, %123, %cst_62 {dimension_numbers = #tpu.dot_dimension_numbers<[1], [0], [0], [1], [0, 0, 1, 1], [], []>} : vector<64x64xbf16>, vector<64x128xbf16>, vector<64x128xf32> -> vector<64x128xf32>
    %cst_63 = arith.constant 2.000000e+00 : f32
    %125 = vector.broadcast %cst_63 : f32 to vector<64x128xf32>
    %126 = arith.mulf %125, %124 : vector<64x128xf32>
    %127 = arith.subf %126, %122 : vector<64x128xf32>
    %c0_64 = arith.constant 0 : index
    %c384 = arith.constant 384 : index
    %128 = vector.load %arg15[%c0_64, %c384] : memref<64x640xf32, #tpu.memory_space<vmem>>, vector<64x128xf32>
    tpu.vector_store %arg15[%c0_64, %c384], %127 {strides = array<i32>} : memref<64x640xf32, #tpu.memory_space<vmem>>, vector<64x128xf32>,
    %c0_65 = arith.constant 0 : index
    %c384_66 = arith.constant 384 : index
    %129 = vector.load %arg15[%c0_65, %c384_66] : memref<64x640xf32, #tpu.memory_space<vmem>>, vector<64x128xf32>
    %c0_67 = arith.constant 0 : index
    %c256_68 = arith.constant 256 : index
    %130 = vector.load %arg15[%c0_67, %c256_68] : memref<64x640xf32, #tpu.memory_space<vmem>>, vector<64x128xf32>
    %131 = arith.truncf %129 : vector<64x128xf32> to vector<64x128xbf16>
    %cst_69 = arith.constant dense<0.000000e+00> : vector<64x128xf32>
    %132 = tpu.matmul %0, %131, %cst_69 {dimension_numbers = #tpu.dot_dimension_numbers<[1], [0], [0], [1], [0, 0, 1, 1], [], []>} : vector<64x64xbf16>, vector<64x128xbf16>, vector<64x128xf32> -> vector<64x128xf32>
    %cst_70 = arith.constant 2.000000e+00 : f32
    %133 = vector.broadcast %cst_70 : f32 to vector<64x128xf32>
    %134 = arith.mulf %133, %132 : vector<64x128xf32>
    %135 = arith.subf %134, %130 : vector<64x128xf32>
    %c0_71 = arith.constant 0 : index
    %c512 = arith.constant 512 : index
    %136 = vector.load %arg15[%c0_71, %c512] : memref<64x640xf32, #tpu.memory_space<vmem>>, vector<64x128xf32>
    tpu.vector_store %arg15[%c0_71, %c512], %135 {strides = array<i32>} : memref<64x640xf32, #tpu.memory_space<vmem>>, vector<64x128xf32>,
    %c0_72 = arith.constant 0 : index
    %c0_73 = arith.constant 0 : index
    %137 = vector.load %arg15[%c0_72, %c0_73] : memref<64x640xf32, #tpu.memory_space<vmem>>, vector<64x640xf32>
    %c0_74 = arith.constant 0 : index
    %c0_75 = arith.constant 0 : index
    %138 = vector.load %arg6[%c0_74, %c0_75] : memref<640x256xf32, #tpu.memory_space<vmem>>, vector<640x256xf32>
    %cst_76 = arith.constant dense<0.000000e+00> : vector<64x256xf32>
    %139 = tpu.matmul %137, %138, %cst_76 {dimension_numbers = #tpu.dot_dimension_numbers<[1], [0], [0], [1], [0, 0, 1, 1], [], []>} : vector<64x640xf32>, vector<640x256xf32>, vector<64x256xf32> -> vector<64x256xf32>
    %c0_77 = arith.constant 0 : index
    %c0_78 = arith.constant 0 : index
    %140 = vector.load %arg7[%c0_77, %c0_78] : memref<1x256xf32, #tpu.memory_space<vmem>>, vector<1x256xf32>
    %141 = vector.broadcast %140 : vector<1x256xf32> to vector<64x256xf32>
    %142 = arith.addf %139, %141 : vector<64x256xf32>
    %cst_79 = arith.constant 0.000000e+00 : f32
    %143 = vector.broadcast %cst_79 : f32 to vector<64x256xf32>
    %144 = arith.maximumf %142, %143 : vector<64x256xf32>
    %c0_80 = arith.constant 0 : index
    %c0_81 = arith.constant 0 : index
    %145 = vector.load %arg10[%c0_80, %c0_81] : memref<2x64xf32, #tpu.memory_space<vmem>>, vector<2x64xf32>
    %cst_82 = arith.constant dense<0.000000e+00> : vector<2x256xf32>
    %146 = tpu.matmul %145, %144, %cst_82 {dimension_numbers = #tpu.dot_dimension_numbers<[1], [0], [0], [1], [0, 0, 1, 1], [], []>} : vector<2x64xf32>, vector<64x256xf32>, vector<2x256xf32> -> vector<2x256xf32>
    %cst_83 = arith.constant dense<0.000000e+00> : vector<2x128xf32>
    %147 = tpu.matmul %146, %107, %cst_83 {dimension_numbers = #tpu.dot_dimension_numbers<[1], [0], [0], [1], [0, 0, 1, 1], [], []>} : vector<2x256xf32>, vector<256x128xf32>, vector<2x128xf32> -> vector<2x128xf32>
    %c256_84 = arith.constant 256 : index
    %c0_85 = arith.constant 0 : index
    %148 = vector.load %arg11[%c256_84, %c0_85] : memref<512x128xf32, #tpu.memory_space<vmem>>, vector<256x128xf32>
    %c0_86 = arith.constant 0 : index
    %c0_87 = arith.constant 0 : index
    %149 = vector.load %arg14[%c0_86, %c0_87] : memref<64x128xf32, #tpu.memory_space<vmem>>, vector<64x128xf32>
    %c0_88 = arith.constant 0 : index
    %c0_89 = arith.constant 0 : index
    %150 = vector.load %arg15[%c0_88, %c0_89] : memref<64x640xf32, #tpu.memory_space<vmem>>, vector<64x128xf32>
    tpu.vector_store %arg15[%c0_88, %c0_89], %149 {strides = array<i32>} : memref<64x640xf32, #tpu.memory_space<vmem>>, vector<64x128xf32>,
    %151 = arith.truncf %149 : vector<64x128xf32> to vector<64x128xbf16>
    %cst_90 = arith.constant dense<0.000000e+00> : vector<64x128xf32>
    %152 = tpu.matmul %0, %151, %cst_90 {dimension_numbers = #tpu.dot_dimension_numbers<[0], [0], [1], [1], [0, 1, 1, 1], [], []>} : vector<64x64xbf16>, vector<64x128xbf16>, vector<64x128xf32> -> vector<64x128xf32>
    %c0_91 = arith.constant 0 : index
    %c128_92 = arith.constant 128 : index
    %153 = vector.load %arg15[%c0_91, %c128_92] : memref<64x640xf32, #tpu.memory_space<vmem>>, vector<64x128xf32>
    tpu.vector_store %arg15[%c0_91, %c128_92], %152 {strides = array<i32>} : memref<64x640xf32, #tpu.memory_space<vmem>>, vector<64x128xf32>,
    %c0_93 = arith.constant 0 : index
    %c128_94 = arith.constant 128 : index
    %154 = vector.load %arg15[%c0_93, %c128_94] : memref<64x640xf32, #tpu.memory_space<vmem>>, vector<64x128xf32>
    %c0_95 = arith.constant 0 : index
    %c0_96 = arith.constant 0 : index
    %155 = vector.load %arg15[%c0_95, %c0_96] : memref<64x640xf32, #tpu.memory_space<vmem>>, vector<64x128xf32>
    %156 = arith.truncf %154 : vector<64x128xf32> to vector<64x128xbf16>
    %cst_97 = arith.constant dense<0.000000e+00> : vector<64x128xf32>
    %157 = tpu.matmul %0, %156, %cst_97 {dimension_numbers = #tpu.dot_dimension_numbers<[0], [0], [1], [1], [0, 1, 1, 1], [], []>} : vector<64x64xbf16>, vector<64x128xbf16>, vector<64x128xf32> -> vector<64x128xf32>
    %cst_98 = arith.constant 2.000000e+00 : f32
    %158 = vector.broadcast %cst_98 : f32 to vector<64x128xf32>
    %159 = arith.mulf %158, %157 : vector<64x128xf32>
    %160 = arith.subf %159, %155 : vector<64x128xf32>
    %c0_99 = arith.constant 0 : index
    %c256_100 = arith.constant 256 : index
    %161 = vector.load %arg15[%c0_99, %c256_100] : memref<64x640xf32, #tpu.memory_space<vmem>>, vector<64x128xf32>
    tpu.vector_store %arg15[%c0_99, %c256_100], %160 {strides = array<i32>} : memref<64x640xf32, #tpu.memory_space<vmem>>, vector<64x128xf32>,
    %c0_101 = arith.constant 0 : index
    %c256_102 = arith.constant 256 : index
    %162 = vector.load %arg15[%c0_101, %c256_102] : memref<64x640xf32, #tpu.memory_space<vmem>>, vector<64x128xf32>
    %c0_103 = arith.constant 0 : index
    %c128_104 = arith.constant 128 : index
    %163 = vector.load %arg15[%c0_103, %c128_104] : memref<64x640xf32, #tpu.memory_space<vmem>>, vector<64x128xf32>
    %164 = arith.truncf %162 : vector<64x128xf32> to vector<64x128xbf16>
    %cst_105 = arith.constant dense<0.000000e+00> : vector<64x128xf32>
    %165 = tpu.matmul %0, %164, %cst_105 {dimension_numbers = #tpu.dot_dimension_numbers<[0], [0], [1], [1], [0, 1, 1, 1], [], []>} : vector<64x64xbf16>, vector<64x128xbf16>, vector<64x128xf32> -> vector<64x128xf32>
    %cst_106 = arith.constant 2.000000e+00 : f32
    %166 = vector.broadcast %cst_106 : f32 to vector<64x128xf32>
    %167 = arith.mulf %166, %165 : vector<64x128xf32>
    %168 = arith.subf %167, %163 : vector<64x128xf32>
    %c0_107 = arith.constant 0 : index
    %c384_108 = arith.constant 384 : index
    %169 = vector.load %arg15[%c0_107, %c384_108] : memref<64x640xf32, #tpu.memory_space<vmem>>, vector<64x128xf32>
    tpu.vector_store %arg15[%c0_107, %c384_108], %168 {strides = array<i32>} : memref<64x640xf32, #tpu.memory_space<vmem>>, vector<64x128xf32>,
    %c0_109 = arith.constant 0 : index
    %c384_110 = arith.constant 384 : index
    %170 = vector.load %arg15[%c0_109, %c384_110] : memref<64x640xf32, #tpu.memory_space<vmem>>, vector<64x128xf32>
    %c0_111 = arith.constant 0 : index
    %c256_112 = arith.constant 256 : index
    %171 = vector.load %arg15[%c0_111, %c256_112] : memref<64x640xf32, #tpu.memory_space<vmem>>, vector<64x128xf32>
    %172 = arith.truncf %170 : vector<64x128xf32> to vector<64x128xbf16>
    %cst_113 = arith.constant dense<0.000000e+00> : vector<64x128xf32>
    %173 = tpu.matmul %0, %172, %cst_113 {dimension_numbers = #tpu.dot_dimension_numbers<[0], [0], [1], [1], [0, 1, 1, 1], [], []>} : vector<64x64xbf16>, vector<64x128xbf16>, vector<64x128xf32> -> vector<64x128xf32>
    %cst_114 = arith.constant 2.000000e+00 : f32
    %174 = vector.broadcast %cst_114 : f32 to vector<64x128xf32>
    %175 = arith.mulf %174, %173 : vector<64x128xf32>
    %176 = arith.subf %175, %171 : vector<64x128xf32>
    %c0_115 = arith.constant 0 : index
    %c512_116 = arith.constant 512 : index
    %177 = vector.load %arg15[%c0_115, %c512_116] : memref<64x640xf32, #tpu.memory_space<vmem>>, vector<64x128xf32>
    tpu.vector_store %arg15[%c0_115, %c512_116], %176 {strides = array<i32>} : memref<64x640xf32, #tpu.memory_space<vmem>>, vector<64x128xf32>,
    %c0_117 = arith.constant 0 : index
    %c0_118 = arith.constant 0 : index
    %178 = vector.load %arg15[%c0_117, %c0_118] : memref<64x640xf32, #tpu.memory_space<vmem>>, vector<64x640xf32>
    %c0_119 = arith.constant 0 : index
    %c0_120 = arith.constant 0 : index
    %179 = vector.load %arg8[%c0_119, %c0_120] : memref<640x256xf32, #tpu.memory_space<vmem>>, vector<640x256xf32>
    %cst_121 = arith.constant dense<0.000000e+00> : vector<64x256xf32>
    %180 = tpu.matmul %178, %179, %cst_121 {dimension_numbers = #tpu.dot_dimension_numbers<[1], [0], [0], [1], [0, 0, 1, 1], [], []>} : vector<64x640xf32>, vector<640x256xf32>, vector<64x256xf32> -> vector<64x256xf32>
    %c0_122 = arith.constant 0 : index
    %c0_123 = arith.constant 0 : index
    %181 = vector.load %arg9[%c0_122, %c0_123] : memref<1x256xf32, #tpu.memory_space<vmem>>, vector<1x256xf32>
    %182 = vector.broadcast %181 : vector<1x256xf32> to vector<64x256xf32>
    %183 = arith.addf %180, %182 : vector<64x256xf32>
    %cst_124 = arith.constant 0.000000e+00 : f32
    %184 = vector.broadcast %cst_124 : f32 to vector<64x256xf32>
    %185 = arith.maximumf %183, %184 : vector<64x256xf32>
    %c0_125 = arith.constant 0 : index
    %c0_126 = arith.constant 0 : index
    %186 = vector.load %arg10[%c0_125, %c0_126] : memref<2x64xf32, #tpu.memory_space<vmem>>, vector<2x64xf32>
    %cst_127 = arith.constant dense<0.000000e+00> : vector<2x256xf32>
    %187 = tpu.matmul %186, %185, %cst_127 {dimension_numbers = #tpu.dot_dimension_numbers<[1], [0], [0], [1], [0, 0, 1, 1], [], []>} : vector<2x64xf32>, vector<64x256xf32>, vector<2x256xf32> -> vector<2x256xf32>
    %cst_128 = arith.constant dense<0.000000e+00> : vector<2x128xf32>
    %188 = tpu.matmul %187, %148, %cst_128 {dimension_numbers = #tpu.dot_dimension_numbers<[1], [0], [0], [1], [0, 0, 1, 1], [], []>} : vector<2x256xf32>, vector<256x128xf32>, vector<2x128xf32> -> vector<2x128xf32>
    %189 = arith.addf %147, %188 : vector<2x128xf32>
    %c0_129 = arith.constant 0 : index
    %c0_130 = arith.constant 0 : index
    %190 = vector.load %arg12[%c0_129, %c0_130] : memref<1x128xf32, #tpu.memory_space<vmem>>, vector<1x128xf32>
    %191 = vector.broadcast %190 : vector<1x128xf32> to vector<2x128xf32>
    %192 = arith.addf %189, %191 : vector<2x128xf32>
    %c0_131 = arith.constant 0 : index
    %c0_132 = arith.constant 0 : index
    %193 = vector.load %arg13[%c0_131, %c0_132] : memref<2x128xf32, #tpu.memory_space<vmem>>, vector<2x128xf32>
    tpu.vector_store %arg13[%c0_131, %c0_132], %192 {strides = array<i32>} : memref<2x128xf32, #tpu.memory_space<vmem>>, vector<2x128xf32>,
    return
  }
}

</mosaic_0001>

<llo_original>
// kernel: mannet_r_forward.1
$region0: #{mannet_r_forward.1}
  #allocation0 [shape = 'u32[]', space=smem, size = 0x4, offset = 0x4, fixed_abs, tag = 'smem constant byte address 0x4 - core index']
  #allocation1 [shape = 'u32[144,128]{1,0:T(1,128)}', space=vmem, size = 0x12000, scoped, tag = 'internal scratch']
  #allocation2 [shape = 'f32[64,128]{1,0:T(8,128)}', space=vmem, size = 0x8000, scoped, tag = 'scratch operand']
  #allocation3 [shape = 'f32[64,640]{1,0:T(8,128)}', space=vmem, size = 0x28000, scoped, tag = 'scratch operand']
  %s0 = inlined_call_operand.vmem [shape: bf16[64,64], index: 0, kind: input, shape index: {}]
  %s1 = inlined_call_operand.vmem [shape: f32[64,8], index: 1, kind: input, shape index: {}]
  %s2 = inlined_call_operand.vmem [shape: f32[8,64], index: 2, kind: input, shape index: {}]
  %s3 = inlined_call_operand.vmem [shape: f32[1,64], index: 3, kind: input, shape index: {}]
  %s4 = inlined_call_operand.vmem [shape: f32[8,64], index: 4, kind: input, shape index: {}]
  %s5 = inlined_call_operand.vmem [shape: f32[1,64], index: 5, kind: input, shape index: {}]
  %s6 = inlined_call_operand.vmem [shape: f32[640,256], index: 6, kind: input, shape index: {}]
  %s7 = inlined_call_operand.vmem [shape: f32[1,256], index: 7, kind: input, shape index: {}]
  %s8 = inlined_call_operand.vmem [shape: f32[640,256], index: 8, kind: input, shape index: {}]
  %s9 = inlined_call_operand.vmem [shape: f32[1,256], index: 9, kind: input, shape index: {}]
  %s10 = inlined_call_operand.vmem [shape: f32[2,64], index: 10, kind: input, shape index: {}]
  %s11 = inlined_call_operand.vmem [shape: f32[512,128], index: 11, kind: input, shape index: {}]
  %s12 = inlined_call_operand.vmem [shape: f32[1,128], index: 12, kind: input, shape index: {}]
  %s13 = inlined_call_operand.hbm [shape: f32[2,128], index: 13, kind: output, shape index: {}]
  %s14 = sld [smem:[#allocation0]]
  $region62: #{mannet_r_forward.1} parent=0
    _
  %s16 = ssub.s32 1, %s14
  %s17 = scalar_select 0, %s16, %s14
  $region1: #{mannet_r_forward.1} parent=0
    #allocation4 [shape = 'u8[1024]{0}', space=vmem, size = 0x400, scoped, tag = 'output window, operand 0, single buffered']
    #allocation5 [shape = 's32[1]{0}', space=sflag, size = 0x4, scoped, tag = 'scoped memory for mannet_r_forward.1']
    %18 = vsyncpa [#allocation5], 0
    // Predicated region
    $region2: #{mannet_r_forward.1} parent=1 // pred_check
      _
    $region3: #{mannet_r_forward.1} parent=1 // pred_check_branch
      %20 = sbr.rel (0) target = $region5
    $region4: #{mannet_r_forward.1} parent=1 // pred_region
      _
    $region5: #{mannet_r_forward.1} parent=1 // pred_fallthru
      _
    // Predicated region
    $region6: #{mannet_r_forward.1} parent=1 // pred_check
      _
    $region7: #{mannet_r_forward.1} parent=1 // pred_check_branch
      %22 = sbr.rel (0) target = $region9
    $region8: #{mannet_r_forward.1} parent=1 // pred_region
      _
    $region9: #{mannet_r_forward.1} parent=1 // pred_fallthru
      _
    // Predicated region
    $region10: #{mannet_r_forward.1} parent=1 // pred_check
      _
    $region11: #{mannet_r_forward.1} parent=1 // pred_check_branch
      %24 = sbr.rel (0) target = $region13
    $region12: #{mannet_r_forward.1} parent=1 // pred_region
      _
    $region13: #{mannet_r_forward.1} parent=1 // pred_fallthru
      _
    // Predicated region
    $region14: #{mannet_r_forward.1} parent=1 // pred_check
      _
    $region15: #{mannet_r_forward.1} parent=1 // pred_check_branch
      %26 = sbr.rel (0) target = $region17
    $region16: #{mannet_r_forward.1} parent=1 // pred_region
      _
    $region17: #{mannet_r_forward.1} parent=1 // pred_fallthru
      _
    // Predicated region
    $region18: #{mannet_r_forward.1} parent=1 // pred_check
      _
    $region19: #{mannet_r_forward.1} parent=1 // pred_check_branch
      %28 = sbr.rel (0) target = $region21
    $region20: #{mannet_r_forward.1} parent=1 // pred_region
      _
    $region21: #{mannet_r_forward.1} parent=1 // pred_fallthru
      _
    // Predicated region
    $region22: #{mannet_r_forward.1} parent=1 // pred_check
      _
    $region23: #{mannet_r_forward.1} parent=1 // pred_check_branch
      %30 = sbr.rel (0) target = $region25
    $region24: #{mannet_r_forward.1} parent=1 // pred_region
      _
    $region25: #{mannet_r_forward.1} parent=1 // pred_fallthru
      _
    // Predicated region
    $region26: #{mannet_r_forward.1} parent=1 // pred_check
      _
    $region27: #{mannet_r_forward.1} parent=1 // pred_check_branch
      %32 = sbr.rel (0) target = $region29
    $region28: #{mannet_r_forward.1} parent=1 // pred_region
      _
    $region29: #{mannet_r_forward.1} parent=1 // pred_fallthru
      _
    // Predicated region
    $region30: #{mannet_r_forward.1} parent=1 // pred_check
      _
    $region31: #{mannet_r_forward.1} parent=1 // pred_check_branch
      %34 = sbr.rel (0) target = $region33
    $region32: #{mannet_r_forward.1} parent=1 // pred_region
      _
    $region33: #{mannet_r_forward.1} parent=1 // pred_fallthru
      _
    // Predicated region
    $region34: #{mannet_r_forward.1} parent=1 // pred_check
      _
    $region35: #{mannet_r_forward.1} parent=1 // pred_check_branch
      %36 = sbr.rel (0) target = $region37
    $region36: #{mannet_r_forward.1} parent=1 // pred_region
      _
    $region37: #{mannet_r_forward.1} parent=1 // pred_fallthru
      _
    // Predicated region
    $region38: #{mannet_r_forward.1} parent=1 // pred_check
      _
    $region39: #{mannet_r_forward.1} parent=1 // pred_check_branch
      %38 = sbr.rel (0) target = $region41
    $region40: #{mannet_r_forward.1} parent=1 // pred_region
      _
    $region41: #{mannet_r_forward.1} parent=1 // pred_fallthru
      _
    // Predicated region
    $region42: #{mannet_r_forward.1} parent=1 // pred_check
      _
    $region43: #{mannet_r_forward.1} parent=1 // pred_check_branch
      %40 = sbr.rel (0) target = $region45
    $region44: #{mannet_r_forward.1} parent=1 // pred_region
      _
    $region45: #{mannet_r_forward.1} parent=1 // pred_fallthru
      _
    // Predicated region
    $region46: #{mannet_r_forward.1} parent=1 // pred_check
      _
    $region47: #{mannet_r_forward.1} parent=1 // pred_check_branch
      %42 = sbr.rel (0) target = $region49
    $region48: #{mannet_r_forward.1} parent=1 // pred_region
      _
    $region49: #{mannet_r_forward.1} parent=1 // pred_fallthru
      _
    // Predicated region
    $region50: #{mannet_r_forward.1} parent=1 // pred_check
      _
    $region51: #{mannet_r_forward.1} parent=1 // pred_check_branch
      %44 = sbr.rel (0) target = $region53
    $region52: #{mannet_r_forward.1} parent=1 // pred_region
      _
    $region53: #{mannet_r_forward.1} parent=1 // pred_fallthru
      _
    %v46 = vld [vmem:[%s0] sm:$0xf]
    %v47 = vld [vmem:[%s0 + $0x4] sm:$0xf]
    %v48 = vld [vmem:[%s0 + $0x8] sm:$0xf]
    %v49 = vld [vmem:[%s0 + $0xc] sm:$0xf]
    %v50 = vld [vmem:[%s0 + $0x10] sm:$0xf]
    %v51 = vld [vmem:[%s0 + $0x14] sm:$0xf]
    %v52 = vld [vmem:[%s0 + $0x18] sm:$0xf]
    %v53 = vld [vmem:[%s0 + $0x1c] sm:$0xf]
    %v54 = vld [vmem:[%s1] sm:$0xff]
    %v55 = vld [vmem:[%s1 + $0x8] sm:$0xff]
    %v56 = vld [vmem:[%s1 + $0x10] sm:$0xff]
    %v57 = vld [vmem:[%s1 + $0x18] sm:$0xff]
    %v58 = vld [vmem:[%s1 + $0x20] sm:$0xff]
    %v59 = vld [vmem:[%s1 + $0x28] sm:$0xff]
    %v60 = vld [vmem:[%s1 + $0x30] sm:$0xff]
    %v61 = vld [vmem:[%s1 + $0x38] sm:$0xff]
    %v62 = vld [vmem:[%s2] sm:$0x1]
    %64 = vset.pattern.permute.xlu0 0
    %65 = vperm.xlu0 %64, %v54
    %v66 = vpop.permute.xlu0 %65
    %69 = vset.pattern.permute.xlu0 0
    %70 = vperm.xlu0 %69, %v55
    %v71 = vpop.permute.xlu0 %70
    %74 = vset.pattern.permute.xlu0 0
    %75 = vperm.xlu0 %74, %v56
    %v76 = vpop.permute.xlu0 %75
    %79 = vset.pattern.permute.xlu0 0
    %80 = vperm.xlu0 %79, %v57
    %v81 = vpop.permute.xlu0 %80
    %84 = vset.pattern.permute.xlu0 0
    %85 = vperm.xlu0 %84, %v58
    %v86 = vpop.permute.xlu0 %85
    %89 = vset.pattern.permute.xlu0 0
    %90 = vperm.xlu0 %89, %v59
    %v91 = vpop.permute.xlu0 %90
    %94 = vset.pattern.permute.xlu0 0
    %95 = vperm.xlu0 %94, %v60
    %v96 = vpop.permute.xlu0 %95
    %99 = vset.pattern.permute.xlu0 0
    %100 = vperm.xlu0 %99, %v61
    %v101 = vpop.permute.xlu0 %100
    %v103 = vlaneseq
    %v104 = vshrl.u32 %v103, 7
    %v105 = vsub.s32 0, %v104
    %v106 = vrot.slane %v62, %v105
    %v107 = vmul.f32 %v66, %v106
    %v108 = vmul.f32 %v71, %v106
    %v109 = vmul.f32 %v76, %v106
    %v110 = vmul.f32 %v81, %v106
    %v111 = vmul.f32 %v86, %v106
    %v112 = vmul.f32 %v91, %v106
    %v113 = vmul.f32 %v96, %v106
    %v114 = vmul.f32 %v101, %v106
    %v115 = vpack.c.bf16 %v55, %v54
    %v116 = vpack.c.bf16 %v57, %v56
    %v117 = vpack.c.bf16 %v59, %v58
    %v118 = vpack.c.bf16 %v61, %v60
    %v127 = vunpack.c.l.b16 %v46
    %v128 = vunpack.c.l.b16 %v47
    %v129 = vunpack.c.l.b16 %v48
    %v130 = vunpack.c.l.b16 %v49
    %v131 = vunpack.c.l.b16 %v50
    %v132 = vunpack.c.l.b16 %v51
    %v133 = vunpack.c.l.b16 %v52
    %v134 = vunpack.c.l.b16 %v53
    %v135 = vpack.c.b16 %v128, %v127
    %v136 = vpack.c.b16 %v130, %v129
    %v137 = vpack.c.b16 %v132, %v131
    %v138 = vpack.c.b16 %v134, %v133
    %vm139 = vcmask 523264
    %v141 = vsel %vm139, %v135, 0
    %v144 = vsel %vm139, %v136, 0
    %v147 = vsel %vm139, %v137, 0
    %v150 = vsel %vm139, %v138, 0
    %152 = vmatprep.subr.bf16.mxu0 0
    %153 = vmatpush1.bf16.msra.mxu0 %v115
    %154 = vmatprep.subr.bf16.mxu0 0
    %155 = vmatpush1.bf16.msra.mxu0 %v116
    %156 = vmatprep.subr.bf16.mxu0 0
    %157 = vmatpush1.bf16.msra.mxu0 %v117
    %158 = vmatprep.subr.bf16.mxu0 0
    %159 = vmatpush1.bf16.msra.mxu0 %v118
    %160 = vmatprep.subr.bf16.mxu0 0
    %161 = vmatpush1.bf16.msra.mxu0 0
    %162 = vmatprep.subr.bf16.mxu0 0
    %163 = vmatpush1.bf16.msra.mxu0 0
    %164 = vmatprep.subr.bf16.mxu0 0
    %165 = vmatpush1.bf16.msra.mxu0 0
    %166 = vmatprep.subr.bf16.mxu0 0
    %167 = vmatpush1.bf16.msra.mxu0 0
    %168 = vmatprep.subr.bf16.mxu0 0
    %169 = vmatpush1.bf16.msra.mxu0 0
    %170 = vmatprep.subr.bf16.mxu0 0
    %171 = vmatpush1.bf16.msra.mxu0 0
    %172 = vmatprep.subr.bf16.mxu0 0
    %173 = vmatpush1.bf16.msra.mxu0 0
    %174 = vmatprep.subr.bf16.mxu0 0
    %175 = vmatpush1.bf16.msra.mxu0 0
    %176 = vmatprep.subr.bf16.mxu0 0
    %177 = vmatpush1.bf16.msra.mxu0 0
    %178 = vmatprep.subr.bf16.mxu0 0
    %179 = vmatpush1.bf16.msra.mxu0 0
    %180 = vmatprep.subr.bf16.mxu0 0
    %181 = vmatpush1.bf16.msra.mxu0 0
    %182 = vmatprep.subr.bf16.mxu0 0
    %183 = vmatpush1.bf16.msra.mxu0 0
    %184 = vmatprep.mubr.bf16.mxu0 0
    %185 = vmatmul.mubr.bf16.gmra.mrb[0].mxu0 %v141
    %v186 = vpop.f32.mrb[0].mxu0
    %v187 = vadd.f32 0.0, %v186
    %v188 = vpop.f32.mrb[0].mxu0
    %v189 = vpop.f32.mrb[0].mxu0
    %v190 = vadd.f32 0.0, %v189
    %v191 = vpop.f32.mrb[0].mxu0
    %192 = vmatprep.mubr.bf16.mxu0 0
    %193 = vmatmul.mubr.bf16.gmra.mrb[0].mxu0 %v144
    %v194 = vpop.f32.mrb[0].mxu0
    %v195 = vadd.f32 0.0, %v194
    %v196 = vpop.f32.mrb[0].mxu0
    %v197 = vpop.f32.mrb[0].mxu0
    %v198 = vadd.f32 0.0, %v197
    %v199 = vpop.f32.mrb[0].mxu0
    %200 = vmatprep.mubr.bf16.mxu0 0
    %201 = vmatmul.mubr.bf16.gmra.mrb[0].mxu0 %v147
    %v202 = vpop.f32.mrb[0].mxu0
    %v203 = vadd.f32 0.0, %v202
    %v204 = vpop.f32.mrb[0].mxu0
    %v205 = vpop.f32.mrb[0].mxu0
    %v206 = vadd.f32 0.0, %v205
    %v207 = vpop.f32.mrb[0].mxu0
    %208 = vmatprep.mubr.bf16.mxu0 0
    %209 = vmatmul.mubr.bf16.gmra.mrb[0].mxu0 %v150
    %v210 = vpop.f32.mrb[0].mxu0
    %v211 = vadd.f32 0.0, %v210
    %v212 = vpop.f32.mrb[0].mxu0
    %v213 = vpop.f32.mrb[0].mxu0
    %v214 = vadd.f32 0.0, %v213
    %v215 = vpop.f32.mrb[0].mxu0
    %216 = vdwg.mxu0
    %v217 = vld [vmem:[%s2 + $0x1] sm:$0x1]
    %219 = vset.pattern.permute.xlu0 0
    %220 = vperm.xlu0 %219, %v187
    %v221 = vpop.permute.xlu0 %220
    %224 = vset.pattern.permute.xlu0 0
    %225 = vperm.xlu0 %224, %v190
    %v226 = vpop.permute.xlu0 %225
    %229 = vset.pattern.permute.xlu0 0
    %230 = vperm.xlu0 %229, %v195
    %v231 = vpop.permute.xlu0 %230
    %234 = vset.pattern.permute.xlu0 0
    %235 = vperm.xlu0 %234, %v198
    %v236 = vpop.permute.xlu0 %235
    %239 = vset.pattern.permute.xlu0 0
    %240 = vperm.xlu0 %239, %v203
    %v241 = vpop.permute.xlu0 %240
    %244 = vset.pattern.permute.xlu0 0
    %245 = vperm.xlu0 %244, %v206
    %v246 = vpop.permute.xlu0 %245
    %249 = vset.pattern.permute.xlu0 0
    %250 = vperm.xlu0 %249, %v211
    %v251 = vpop.permute.xlu0 %250
    %254 = vset.pattern.permute.xlu0 0
    %255 = vperm.xlu0 %254, %v214
    %v256 = vpop.permute.xlu0 %255
    %v258 = vlaneseq
    %v259 = vshrl.u32 %v258, 7
    %v260 = vsub.s32 0, %v259
    %v261 = vrot.slane %v217, %v260
    %v262 = vmul.f32 %v221, %v261
    %v263 = vmul.f32 %v226, %v261
    %v264 = vmul.f32 %v231, %v261
    %v265 = vmul.f32 %v236, %v261
    %v266 = vmul.f32 %v241, %v261
    %v267 = vmul.f32 %v246, %v261
    %v268 = vmul.f32 %v251, %v261
    %v269 = vmul.f32 %v256, %v261
    %v270 = vadd.f32 %v107, %v262
    %v271 = vadd.f32 %v108, %v263
    %v272 = vadd.f32 %v109, %v264
    %v273 = vadd.f32 %v110, %v265
    %v274 = vadd.f32 %v111, %v266
    %v275 = vadd.f32 %v112, %v267
    %v276 = vadd.f32 %v113, %v268
    %v277 = vadd.f32 %v114, %v269
    %v278 = vpack.c.bf16 %v190, %v187
    %v279 = vpack.c.bf16 %v198, %v195
    %v280 = vpack.c.bf16 %v206, %v203
    %v281 = vpack.c.bf16 %v214, %v211
    %282 = vmatprep.subr.bf16.mxu0 0
    %283 = vmatpush1.bf16.msra.mxu0 %v278
    %284 = vmatprep.subr.bf16.mxu0 0
    %285 = vmatpush1.bf16.msra.mxu0 %v279
    %286 = vmatprep.subr.bf16.mxu0 0
    %287 = vmatpush1.bf16.msra.mxu0 %v280
    %288 = vmatprep.subr.bf16.mxu0 0
    %289 = vmatpush1.bf16.msra.mxu0 %v281
    %290 = vmatprep.subr.bf16.mxu0 0
    %291 = vmatpush1.bf16.msra.mxu0 0
    %292 = vmatprep.subr.bf16.mxu0 0
    %293 = vmatpush1.bf16.msra.mxu0 0
    %294 = vmatprep.subr.bf16.mxu0 0
    %295 = vmatpush1.bf16.msra.mxu0 0
    %296 = vmatprep.subr.bf16.mxu0 0
    %297 = vmatpush1.bf16.msra.mxu0 0
    %298 = vmatprep.subr.bf16.mxu0 0
    %299 = vmatpush1.bf16.msra.mxu0 0
    %300 = vmatprep.subr.bf16.mxu0 0
    %301 = vmatpush1.bf16.msra.mxu0 0
    %302 = vmatprep.subr.bf16.mxu0 0
    %303 = vmatpush1.bf16.msra.mxu0 0
    %304 = vmatprep.subr.bf16.mxu0 0
    %305 = vmatpush1.bf16.msra.mxu0 0
    %306 = vmatprep.subr.bf16.mxu0 0
    %307 = vmatpush1.bf16.msra.mxu0 0
    %308 = vmatprep.subr.bf16.mxu0 0
    %309 = vmatpush1.bf16.msra.mxu0 0
    %310 = vmatprep.subr.bf16.mxu0 0
    %311 = vmatpush1.bf16.msra.mxu0 0
    %312 = vmatprep.subr.bf16.mxu0 0
    %313 = vmatpush1.bf16.msra.mxu0 0
    %314 = vmatprep.mubr.bf16.mxu0 0
    %315 = vmatmul.mubr.bf16.gmra.mrb[0].mxu0 %v141
    %v316 = vpop.f32.mrb[0].mxu0
    %v317 = vadd.f32 0.0, %v316
    %v318 = vpop.f32.mrb[0].mxu0
    %v319 = vpop.f32.mrb[0].mxu0
    %v320 = vadd.f32 0.0, %v319
    %v321 = vpop.f32.mrb[0].mxu0
    %322 = vmatprep.mubr.bf16.mxu0 0
    %323 = vmatmul.mubr.bf16.gmra.mrb[0].mxu0 %v144
    %v324 = vpop.f32.mrb[0].mxu0
    %v325 = vadd.f32 0.0, %v324
    %v326 = vpop.f32.mrb[0].mxu0
    %v327 = vpop.f32.mrb[0].mxu0
    %v328 = vadd.f32 0.0, %v327
    %v329 = vpop.f32.mrb[0].mxu0
    %330 = vmatprep.mubr.bf16.mxu0 0
    %331 = vmatmul.mubr.bf16.gmra.mrb[0].mxu0 %v147
    %v332 = vpop.f32.mrb[0].mxu0
    %v333 = vadd.f32 0.0, %v332
    %v334 = vpop.f32.mrb[0].mxu0
    %v335 = vpop.f32.mrb[0].mxu0
    %v336 = vadd.f32 0.0, %v335
    %v337 = vpop.f32.mrb[0].mxu0
    %338 = vmatprep.mubr.bf16.mxu0 0
    %339 = vmatmul.mubr.bf16.gmra.mrb[0].mxu0 %v150
    %v340 = vpop.f32.mrb[0].mxu0
    %v341 = vadd.f32 0.0, %v340
    %v342 = vpop.f32.mrb[0].mxu0
    %v343 = vpop.f32.mrb[0].mxu0
    %v344 = vadd.f32 0.0, %v343
    %v345 = vpop.f32.mrb[0].mxu0
    %346 = vdwg.mxu0
    %v347 = vmul.f32 %v317, 2.0
    %v348 = vmul.f32 %v320, 2.0
    %v349 = vmul.f32 %v325, 2.0
    %v350 = vmul.f32 %v328, 2.0
    %v351 = vmul.f32 %v333, 2.0
    %v352 = vmul.f32 %v336, 2.0
    %v353 = vmul.f32 %v341, 2.0
    %v354 = vmul.f32 %v344, 2.0
    %v355 = vsub.f32 %v347, %v54
    %v356 = vsub.f32 %v348, %v55
    %v357 = vsub.f32 %v349, %v56
    %v358 = vsub.f32 %v350, %v57
    %v359 = vsub.f32 %v351, %v58
    %v360 = vsub.f32 %v352, %v59
    %v361 = vsub.f32 %v353, %v60
    %v362 = vsub.f32 %v354, %v61
    %v363 = vld [vmem:[%s2 + $0x2] sm:$0x1]
    %365 = vset.pattern.permute.xlu0 0
    %366 = vperm.xlu0 %365, %v355
    %v367 = vpop.permute.xlu0 %366
    %370 = vset.pattern.permute.xlu0 0
    %371 = vperm.xlu0 %370, %v356
    %v372 = vpop.permute.xlu0 %371
    %375 = vset.pattern.permute.xlu0 0
    %376 = vperm.xlu0 %375, %v357
    %v377 = vpop.permute.xlu0 %376
    %380 = vset.pattern.permute.xlu0 0
    %381 = vperm.xlu0 %380, %v358
    %v382 = vpop.permute.xlu0 %381
    %385 = vset.pattern.permute.xlu0 0
    %386 = vperm.xlu0 %385, %v359
    %v387 = vpop.permute.xlu0 %386
    %390 = vset.pattern.permute.xlu0 0
    %391 = vperm.xlu0 %390, %v360
    %v392 = vpop.permute.xlu0 %391
    %395 = vset.pattern.permute.xlu0 0
    %396 = vperm.xlu0 %395, %v361
    %v397 = vpop.permute.xlu0 %396
    %400 = vset.pattern.permute.xlu0 0
    %401 = vperm.xlu0 %400, %v362
    %v402 = vpop.permute.xlu0 %401
    %v404 = vlaneseq
    %v405 = vshrl.u32 %v404, 7
    %v406 = vsub.s32 0, %v405
    %v407 = vrot.slane %v363, %v406
    %v408 = vmul.f32 %v367, %v407
    %v409 = vmul.f32 %v372, %v407
    %v410 = vmul.f32 %v377, %v407
    %v411 = vmul.f32 %v382, %v407
    %v412 = vmul.f32 %v387, %v407
    %v413 = vmul.f32 %v392, %v407
    %v414 = vmul.f32 %v397, %v407
    %v415 = vmul.f32 %v402, %v407
    %v416 = vadd.f32 %v270, %v408
    %v417 = vadd.f32 %v271, %v409
    %v418 = vadd.f32 %v272, %v410
    %v419 = vadd.f32 %v273, %v411
    %v420 = vadd.f32 %v274, %v412
    %v421 = vadd.f32 %v275, %v413
    %v422 = vadd.f32 %v276, %v414
    %v423 = vadd.f32 %v277, %v415
    %v424 = vpack.c.bf16 %v356, %v355
    %v425 = vpack.c.bf16 %v358, %v357
    %v426 = vpack.c.bf16 %v360, %v359
    %v427 = vpack.c.bf16 %v362, %v361
    %428 = vmatprep.subr.bf16.mxu0 0
    %429 = vmatpush1.bf16.msra.mxu0 %v424
    %430 = vmatprep.subr.bf16.mxu0 0
    %431 = vmatpush1.bf16.msra.mxu0 %v425
    %432 = vmatprep.subr.bf16.mxu0 0
    %433 = vmatpush1.bf16.msra.mxu0 %v426
    %434 = vmatprep.subr.bf16.mxu0 0
    %435 = vmatpush1.bf16.msra.mxu0 %v427
    %436 = vmatprep.subr.bf16.mxu0 0
    %437 = vmatpush1.bf16.msra.mxu0 0
    %438 = vmatprep.subr.bf16.mxu0 0
    %439 = vmatpush1.bf16.msra.mxu0 0
    %440 = vmatprep.subr.bf16.mxu0 0
    %441 = vmatpush1.bf16.msra.mxu0 0
    %442 = vmatprep.subr.bf16.mxu0 0
    %443 = vmatpush1.bf16.msra.mxu0 0
    %444 = vmatprep.subr.bf16.mxu0 0
    %445 = vmatpush1.bf16.msra.mxu0 0
    %446 = vmatprep.subr.bf16.mxu0 0
    %447 = vmatpush1.bf16.msra.mxu0 0
    %448 = vmatprep.subr.bf16.mxu0 0
    %449 = vmatpush1.bf16.msra.mxu0 0
    %450 = vmatprep.subr.bf16.mxu0 0
    %451 = vmatpush1.bf16.msra.mxu0 0
    %452 = vmatprep.subr.bf16.mxu0 0
    %453 = vmatpush1.bf16.msra.mxu0 0
    %454 = vmatprep.subr.bf16.mxu0 0
    %455 = vmatpush1.bf16.msra.mxu0 0
    %456 = vmatprep.subr.bf16.mxu0 0
    %457 = vmatpush1.bf16.msra.mxu0 0
    %458 = vmatprep.subr.bf16.mxu0 0
    %459 = vmatpush1.bf16.msra.mxu0 0
    %460 = vmatprep.mubr.bf16.mxu0 0
    %461 = vmatmul.mubr.bf16.gmra.mrb[0].mxu0 %v141
    %v462 = vpop.f32.mrb[0].mxu0
    %v463 = vadd.f32 0.0, %v462
    %v464 = vpop.f32.mrb[0].mxu0
    %v465 = vpop.f32.mrb[0].mxu0
    %v466 = vadd.f32 0.0, %v465
    %v467 = vpop.f32.mrb[0].mxu0
    %468 = vmatprep.mubr.bf16.mxu0 0
    %469 = vmatmul.mubr.bf16.gmra.mrb[0].mxu0 %v144
    %v470 = vpop.f32.mrb[0].mxu0
    %v471 = vadd.f32 0.0, %v470
    %v472 = vpop.f32.mrb[0].mxu0
    %v473 = vpop.f32.mrb[0].mxu0
    %v474 = vadd.f32 0.0, %v473
    %v475 = vpop.f32.mrb[0].mxu0
    %476 = vmatprep.mubr.bf16.mxu0 0
    %477 = vmatmul.mubr.bf16.gmra.mrb[0].mxu0 %v147
    %v478 = vpop.f32.mrb[0].mxu0
    %v479 = vadd.f32 0.0, %v478
    %v480 = vpop.f32.mrb[0].mxu0
    %v481 = vpop.f32.mrb[0].mxu0
    %v482 = vadd.f32 0.0, %v481
    %v483 = vpop.f32.mrb[0].mxu0
    %484 = vmatprep.mubr.bf16.mxu0 0
    %485 = vmatmul.mubr.bf16.gmra.mrb[0].mxu0 %v150
    %v486 = vpop.f32.mrb[0].mxu0
    %v487 = vadd.f32 0.0, %v486
    %v488 = vpop.f32.mrb[0].mxu0
    %v489 = vpop.f32.mrb[0].mxu0
    %v490 = vadd.f32 0.0, %v489
    %v491 = vpop.f32.mrb[0].mxu0
    %492 = vdwg.mxu0
    %v493 = vmul.f32 %v463, 2.0
    %v494 = vmul.f32 %v466, 2.0
    %v495 = vmul.f32 %v471, 2.0
    %v496 = vmul.f32 %v474, 2.0
    %v497 = vmul.f32 %v479, 2.0
    %v498 = vmul.f32 %v482, 2.0
    %v499 = vmul.f32 %v487, 2.0
    %v500 = vmul.f32 %v490, 2.0
    %v501 = vsub.f32 %v493, %v187
    %v502 = vsub.f32 %v494, %v190
    %v503 = vsub.f32 %v495, %v195
    %v504 = vsub.f32 %v496, %v198
    %v505 = vsub.f32 %v497, %v203
    %v506 = vsub.f32 %v498, %v206
    %v507 = vsub.f32 %v499, %v211
    %v508 = vsub.f32 %v500, %v214
    %v509 = vld [vmem:[%s2 + $0x3] sm:$0x1]
    %511 = vset.pattern.permute.xlu0 0
    %512 = vperm.xlu0 %511, %v501
    %v513 = vpop.permute.xlu0 %512
    %516 = vset.pattern.permute.xlu0 0
    %517 = vperm.xlu0 %516, %v502
    %v518 = vpop.permute.xlu0 %517
    %521 = vset.pattern.permute.xlu0 0
    %522 = vperm.xlu0 %521, %v503
    %v523 = vpop.permute.xlu0 %522
    %526 = vset.pattern.permute.xlu0 0
    %527 = vperm.xlu0 %526, %v504
    %v528 = vpop.permute.xlu0 %527
    %531 = vset.pattern.permute.xlu0 0
    %532 = vperm.xlu0 %531, %v505
    %v533 = vpop.permute.xlu0 %532
    %536 = vset.pattern.permute.xlu0 0
    %537 = vperm.xlu0 %536, %v506
    %v538 = vpop.permute.xlu0 %537
    %541 = vset.pattern.permute.xlu0 0
    %542 = vperm.xlu0 %541, %v507
    %v543 = vpop.permute.xlu0 %542
    %546 = vset.pattern.permute.xlu0 0
    %547 = vperm.xlu0 %546, %v508
    %v548 = vpop.permute.xlu0 %547
    %v550 = vlaneseq
    %v551 = vshrl.u32 %v550, 7
    %v552 = vsub.s32 0, %v551
    %v553 = vrot.slane %v509, %v552
    %v554 = vmul.f32 %v513, %v553
    %v555 = vmul.f32 %v518, %v553
    %v556 = vmul.f32 %v523, %v553
    %v557 = vmul.f32 %v528, %v553
    %v558 = vmul.f32 %v533, %v553
    %v559 = vmul.f32 %v538, %v553
    %v560 = vmul.f32 %v543, %v553
    %v561 = vmul.f32 %v548, %v553
    %v562 = vadd.f32 %v416, %v554
    %v563 = vadd.f32 %v417, %v555
    %v564 = vadd.f32 %v418, %v556
    %v565 = vadd.f32 %v419, %v557
    %v566 = vadd.f32 %v420, %v558
    %v567 = vadd.f32 %v421, %v559
    %v568 = vadd.f32 %v422, %v560
    %v569 = vadd.f32 %v423, %v561
    %v570 = vpack.c.bf16 %v502, %v501
    %v571 = vpack.c.bf16 %v504, %v503
    %v572 = vpack.c.bf16 %v506, %v505
    %v573 = vpack.c.bf16 %v508, %v507
    %574 = vmatprep.subr.bf16.mxu0 0
    %575 = vmatpush1.bf16.msra.mxu0 %v570
    %576 = vmatprep.subr.bf16.mxu0 0
    %577 = vmatpush1.bf16.msra.mxu0 %v571
    %578 = vmatprep.subr.bf16.mxu0 0
    %579 = vmatpush1.bf16.msra.mxu0 %v572
    %580 = vmatprep.subr.bf16.mxu0 0
    %581 = vmatpush1.bf16.msra.mxu0 %v573
    %582 = vmatprep.subr.bf16.mxu0 0
    %583 = vmatpush1.bf16.msra.mxu0 0
    %584 = vmatprep.subr.bf16.mxu0 0
    %585 = vmatpush1.bf16.msra.mxu0 0
    %586 = vmatprep.subr.bf16.mxu0 0
    %587 = vmatpush1.bf16.msra.mxu0 0
    %588 = vmatprep.subr.bf16.mxu0 0
    %589 = vmatpush1.bf16.msra.mxu0 0
    %590 = vmatprep.subr.bf16.mxu0 0
    %591 = vmatpush1.bf16.msra.mxu0 0
    %592 = vmatprep.subr.bf16.mxu0 0
    %593 = vmatpush1.bf16.msra.mxu0 0
    %594 = vmatprep.subr.bf16.mxu0 0
    %595 = vmatpush1.bf16.msra.mxu0 0
    %596 = vmatprep.subr.bf16.mxu0 0
    %597 = vmatpush1.bf16.msra.mxu0 0
    %598 = vmatprep.subr.bf16.mxu0 0
    %599 = vmatpush1.bf16.msra.mxu0 0
    %600 = vmatprep.subr.bf16.mxu0 0
    %601 = vmatpush1.bf16.msra.mxu0 0
    %602 = vmatprep.subr.bf16.mxu0 0
    %603 = vmatpush1.bf16.msra.mxu0 0
    %604 = vmatprep.subr.bf16.mxu0 0
    %605 = vmatpush1.bf16.msra.mxu0 0
    %606 = vmatprep.mubr.bf16.mxu0 0
    %607 = vmatmul.mubr.bf16.gmra.mrb[0].mxu0 %v141
    %v608 = vpop.f32.mrb[0].mxu0
    %v609 = vadd.f32 0.0, %v608
    %v610 = vpop.f32.mrb[0].mxu0
    %v611 = vpop.f32.mrb[0].mxu0
    %v612 = vadd.f32 0.0, %v611
    %v613 = vpop.f32.mrb[0].mxu0
    %614 = vmatprep.mubr.bf16.mxu0 0
    %615 = vmatmul.mubr.bf16.gmra.mrb[0].mxu0 %v144
    %v616 = vpop.f32.mrb[0].mxu0
    %v617 = vadd.f32 0.0, %v616
    %v618 = vpop.f32.mrb[0].mxu0
    %v619 = vpop.f32.mrb[0].mxu0
    %v620 = vadd.f32 0.0, %v619
    %v621 = vpop.f32.mrb[0].mxu0
    %622 = vmatprep.mubr.bf16.mxu0 0
    %623 = vmatmul.mubr.bf16.gmra.mrb[0].mxu0 %v147
    %v624 = vpop.f32.mrb[0].mxu0
    %v625 = vadd.f32 0.0, %v624
    %v626 = vpop.f32.mrb[0].mxu0
    %v627 = vpop.f32.mrb[0].mxu0
    %v628 = vadd.f32 0.0, %v627
    %v629 = vpop.f32.mrb[0].mxu0
    %630 = vmatprep.mubr.bf16.mxu0 0
    %631 = vmatmul.mubr.bf16.gmra.mrb[0].mxu0 %v150
    %v632 = vpop.f32.mrb[0].mxu0
    %v633 = vadd.f32 0.0, %v632
    %v634 = vpop.f32.mrb[0].mxu0
    %v635 = vpop.f32.mrb[0].mxu0
    %v636 = vadd.f32 0.0, %v635
    %v637 = vpop.f32.mrb[0].mxu0
    %638 = vdwg.mxu0
    %v639 = vmul.f32 %v609, 2.0
    %v640 = vmul.f32 %v612, 2.0
    %v641 = vmul.f32 %v617, 2.0
    %v642 = vmul.f32 %v620, 2.0
    %v643 = vmul.f32 %v625, 2.0
    %v644 = vmul.f32 %v628, 2.0
    %v645 = vmul.f32 %v633, 2.0
    %v646 = vmul.f32 %v636, 2.0
    %v647 = vsub.f32 %v639, %v355
    %v648 = vsub.f32 %v640, %v356
    %v649 = vsub.f32 %v641, %v357
    %v650 = vsub.f32 %v642, %v358
    %v651 = vsub.f32 %v643, %v359
    %v652 = vsub.f32 %v644, %v360
    %v653 = vsub.f32 %v645, %v361
    %v654 = vsub.f32 %v646, %v362
    %v655 = vld [vmem:[%s2 + $0x4] sm:$0x1]
    %657 = vset.pattern.permute.xlu0 0
    %658 = vperm.xlu0 %657, %v647
    %v659 = vpop.permute.xlu0 %658
    %662 = vset.pattern.permute.xlu0 0
    %663 = vperm.xlu0 %662, %v648
    %v664 = vpop.permute.xlu0 %663
    %667 = vset.pattern.permute.xlu0 0
    %668 = vperm.xlu0 %667, %v649
    %v669 = vpop.permute.xlu0 %668
    %672 = vset.pattern.permute.xlu0 0
    %673 = vperm.xlu0 %672, %v650
    %v674 = vpop.permute.xlu0 %673
    %677 = vset.pattern.permute.xlu0 0
    %678 = vperm.xlu0 %677, %v651
    %v679 = vpop.permute.xlu0 %678
    %682 = vset.pattern.permute.xlu0 0
    %683 = vperm.xlu0 %682, %v652
    %v684 = vpop.permute.xlu0 %683
    %687 = vset.pattern.permute.xlu0 0
    %688 = vperm.xlu0 %687, %v653
    %v689 = vpop.permute.xlu0 %688
    %692 = vset.pattern.permute.xlu0 0
    %693 = vperm.xlu0 %692, %v654
    %v694 = vpop.permute.xlu0 %693
    %v696 = vlaneseq
    %v697 = vshrl.u32 %v696, 7
    %v698 = vsub.s32 0, %v697
    %v699 = vrot.slane %v655, %v698
    %v700 = vmul.f32 %v659, %v699
    %v701 = vmul.f32 %v664, %v699
    %v702 = vmul.f32 %v669, %v699
    %v703 = vmul.f32 %v674, %v699
    %v704 = vmul.f32 %v679, %v699
    %v705 = vmul.f32 %v684, %v699
    %v706 = vmul.f32 %v689, %v699
    %v707 = vmul.f32 %v694, %v699
    %v708 = vadd.f32 %v562, %v700
    %v709 = vadd.f32 %v563, %v701
    %v710 = vadd.f32 %v564, %v702
    %v711 = vadd.f32 %v565, %v703
    %v712 = vadd.f32 %v566, %v704
    %v713 = vadd.f32 %v567, %v705
    %v714 = vadd.f32 %v568, %v706
    %v715 = vadd.f32 %v569, %v707
    %v716 = vld [vmem:[%s3] sm:$0x1]
    %v718 = vlaneseq
    %v719 = vshrl.u32 %v718, 7
    %v720 = vsub.s32 0, %v719
    %v721 = vrot.slane %v716, %v720
    %v723 = vadd.f32 %v708, %v721
    %v724 = vadd.f32 %v709, %v721
    %v725 = vadd.f32 %v710, %v721
    %v726 = vadd.f32 %v711, %v721
    %v727 = vadd.f32 %v712, %v721
    %v728 = vadd.f32 %v713, %v721
    %v729 = vadd.f32 %v714, %v721
    %v730 = vadd.f32 %v715, %v721
    %v731 = vmax.f32 %v723, 0.0
    %v732 = vmax.f32 %v724, 0.0
    %v733 = vmax.f32 %v725, 0.0
    %v734 = vmax.f32 %v726, 0.0
    %v735 = vmax.f32 %v727, 0.0
    %v736 = vmax.f32 %v728, 0.0
    %v737 = vmax.f32 %v729, 0.0
    %v738 = vmax.f32 %v730, 0.0
    %739 = vst.msk [vmem:[#allocation2] sm:$0xff] %vm139, %v731
    %740 = vst.msk [vmem:[#allocation2 + $0x8] sm:$0xff] %vm139, %v732
    %741 = vst.msk [vmem:[#allocation2 + $0x10] sm:$0xff] %vm139, %v733
    %742 = vst.msk [vmem:[#allocation2 + $0x18] sm:$0xff] %vm139, %v734
    %743 = vst.msk [vmem:[#allocation2 + $0x20] sm:$0xff] %vm139, %v735
    %744 = vst.msk [vmem:[#allocation2 + $0x28] sm:$0xff] %vm139, %v736
    %745 = vst.msk [vmem:[#allocation2 + $0x30] sm:$0xff] %vm139, %v737
    %746 = vst.msk [vmem:[#allocation2 + $0x38] sm:$0xff] %vm139, %v738
    %v747 = vld [vmem:[%s1] sm:$0xff]
    %v748 = vld [vmem:[%s1 + $0x8] sm:$0xff]
    %v749 = vld [vmem:[%s1 + $0x10] sm:$0xff]
    %v750 = vld [vmem:[%s1 + $0x18] sm:$0xff]
    %v751 = vld [vmem:[%s1 + $0x20] sm:$0xff]
    %v752 = vld [vmem:[%s1 + $0x28] sm:$0xff]
    %v753 = vld [vmem:[%s1 + $0x30] sm:$0xff]
    %v754 = vld [vmem:[%s1 + $0x38] sm:$0xff]
    %v755 = vld [vmem:[%s4] sm:$0x1]
    %757 = vset.pattern.permute.xlu0 0
    %758 = vperm.xlu0 %757, %v747
    %v759 = vpop.permute.xlu0 %758
    %762 = vset.pattern.permute.xlu0 0
    %763 = vperm.xlu0 %762, %v748
    %v764 = vpop.permute.xlu0 %763
    %767 = vset.pattern.permute.xlu0 0
    %768 = vperm.xlu0 %767, %v749
    %v769 = vpop.permute.xlu0 %768
    %772 = vset.pattern.permute.xlu0 0
    %773 = vperm.xlu0 %772, %v750
    %v774 = vpop.permute.xlu0 %773
    %777 = vset.pattern.permute.xlu0 0
    %778 = vperm.xlu0 %777, %v751
    %v779 = vpop.permute.xlu0 %778
    %782 = vset.pattern.permute.xlu0 0
    %783 = vperm.xlu0 %782, %v752
    %v784 = vpop.permute.xlu0 %783
    %787 = vset.pattern.permute.xlu0 0
    %788 = vperm.xlu0 %787, %v753
    %v789 = vpop.permute.xlu0 %788
    %792 = vset.pattern.permute.xlu0 0
    %793 = vperm.xlu0 %792, %v754
    %v794 = vpop.permute.xlu0 %793
    %v796 = vlaneseq
    %v797 = vshrl.u32 %v796, 7
    %v798 = vsub.s32 0, %v797
    %v799 = vrot.slane %v755, %v798
    %v800 = vmul.f32 %v759, %v799
    %v801 = vmul.f32 %v764, %v799
    %v802 = vmul.f32 %v769, %v799
    %v803 = vmul.f32 %v774, %v799
    %v804 = vmul.f32 %v779, %v799
    %v805 = vmul.f32 %v784, %v799
    %v806 = vmul.f32 %v789, %v799
    %v807 = vmul.f32 %v794, %v799
    %v808 = vpack.c.bf16 %v748, %v747
    %v809 = vpack.c.bf16 %v750, %v749
    %v810 = vpack.c.bf16 %v752, %v751
    %v811 = vpack.c.bf16 %v754, %v753
    %816 = vxpose.xlu0.c.b16.start [1/8] %v135, 128
    %817 = vxpose.xlu0.c.b16.cont [2/8] %v136, 128
    %818 = vxpose.xlu0.c.b16.cont [3/8] %v137, 128
    %819 = vxpose.xlu0.c.b16.cont [4/8] %v138, 128
    %820 = vxpose.xlu0.c.b16.cont [5/8] 0, 128
    %821 = vxpose.xlu0.c.b16.cont [6/8] 0, 128
    %822 = vxpose.xlu0.c.b16.cont [7/8] 0, 128
    %823 = vxpose.xlu0.c.b16.end [8/8] 0, 128
    %v824 = vpop.trf.xlu0
    %v825 = vpop.trf.xlu0
    %v826 = vpop.trf.xlu0
    %v827 = vpop.trf.xlu0
    %v828 = vpop.trf.xlu0
    %v829 = vpop.trf.xlu0
    %v830 = vpop.trf.xlu0
    %v831 = vpop.trf.xlu0
    %v833 = vsel %vm139, %v824, 0
    %v836 = vsel %vm139, %v825, 0
    %v839 = vsel %vm139, %v826, 0
    %v842 = vsel %vm139, %v827, 0
    %844 = vmatprep.subr.bf16.mxu0 0
    %845 = vmatpush1.bf16.msra.mxu0 %v808
    %846 = vmatprep.subr.bf16.mxu0 0
    %847 = vmatpush1.bf16.msra.mxu0 %v809
    %848 = vmatprep.subr.bf16.mxu0 0
    %849 = vmatpush1.bf16.msra.mxu0 %v810
    %850 = vmatprep.subr.bf16.mxu0 0
    %851 = vmatpush1.bf16.msra.mxu0 %v811
    %852 = vmatprep.subr.bf16.mxu0 0
    %853 = vmatpush1.bf16.msra.mxu0 0
    %854 = vmatprep.subr.bf16.mxu0 0
    %855 = vmatpush1.bf16.msra.mxu0 0
    %856 = vmatprep.subr.bf16.mxu0 0
    %857 = vmatpush1.bf16.msra.mxu0 0
    %858 = vmatprep.subr.bf16.mxu0 0
    %859 = vmatpush1.bf16.msra.mxu0 0
    %860 = vmatprep.subr.bf16.mxu0 0
    %861 = vmatpush1.bf16.msra.mxu0 0
    %862 = vmatprep.subr.bf16.mxu0 0
    %863 = vmatpush1.bf16.msra.mxu0 0
    %864 = vmatprep.subr.bf16.mxu0 0
    %865 = vmatpush1.bf16.msra.mxu0 0
    %866 = vmatprep.subr.bf16.mxu0 0
    %867 = vmatpush1.bf16.msra.mxu0 0
    %868 = vmatprep.subr.bf16.mxu0 0
    %869 = vmatpush1.bf16.msra.mxu0 0
    %870 = vmatprep.subr.bf16.mxu0 0
    %871 = vmatpush1.bf16.msra.mxu0 0
    %872 = vmatprep.subr.bf16.mxu0 0
    %873 = vmatpush1.bf16.msra.mxu0 0
    %874 = vmatprep.subr.bf16.mxu0 0
    %875 = vmatpush1.bf16.msra.mxu0 0
    %876 = vmatprep.mubr.bf16.mxu0 0
    %877 = vmatmul.mubr.bf16.gmra.mrb[0].mxu0 %v833
    %v878 = vpop.f32.mrb[0].mxu0
    %v879 = vadd.f32 0.0, %v878
    %v880 = vpop.f32.mrb[0].mxu0
    %v881 = vpop.f32.mrb[0].mxu0
    %v882 = vadd.f32 0.0, %v881
    %v883 = vpop.f32.mrb[0].mxu0
    %884 = vmatprep.mubr.bf16.mxu0 0
    %885 = vmatmul.mubr.bf16.gmra.mrb[0].mxu0 %v836
    %v886 = vpop.f32.mrb[0].mxu0
    %v887 = vadd.f32 0.0, %v886
    %v888 = vpop.f32.mrb[0].mxu0
    %v889 = vpop.f32.mrb[0].mxu0
    %v890 = vadd.f32 0.0, %v889
    %v891 = vpop.f32.mrb[0].mxu0
    %892 = vmatprep.mubr.bf16.mxu0 0
    %893 = vmatmul.mubr.bf16.gmra.mrb[0].mxu0 %v839
    %v894 = vpop.f32.mrb[0].mxu0
    %v895 = vadd.f32 0.0, %v894
    %v896 = vpop.f32.mrb[0].mxu0
    %v897 = vpop.f32.mrb[0].mxu0
    %v898 = vadd.f32 0.0, %v897
    %v899 = vpop.f32.mrb[0].mxu0
    %900 = vmatprep.mubr.bf16.mxu0 0
    %901 = vmatmul.mubr.bf16.gmra.mrb[0].mxu0 %v842
    %v902 = vpop.f32.mrb[0].mxu0
    %v903 = vadd.f32 0.0, %v902
    %v904 = vpop.f32.mrb[0].mxu0
    %v905 = vpop.f32.mrb[0].mxu0
    %v906 = vadd.f32 0.0, %v905
    %v907 = vpop.f32.mrb[0].mxu0
    %908 = vdwg.mxu0
    %v909 = vld [vmem:[%s4 + $0x1] sm:$0x1]
    %911 = vset.pattern.permute.xlu0 0
    %912 = vperm.xlu0 %911, %v879
    %v913 = vpop.permute.xlu0 %912
    %916 = vset.pattern.permute.xlu0 0
    %917 = vperm.xlu0 %916, %v882
    %v918 = vpop.permute.xlu0 %917
    %921 = vset.pattern.permute.xlu0 0
    %922 = vperm.xlu0 %921, %v887
    %v923 = vpop.permute.xlu0 %922
    %926 = vset.pattern.permute.xlu0 0
    %927 = vperm.xlu0 %926, %v890
    %v928 = vpop.permute.xlu0 %927
    %931 = vset.pattern.permute.xlu0 0
    %932 = vperm.xlu0 %931, %v895
    %v933 = vpop.permute.xlu0 %932
    %936 = vset.pattern.permute.xlu0 0
    %937 = vperm.xlu0 %936, %v898
    %v938 = vpop.permute.xlu0 %937
    %941 = vset.pattern.permute.xlu0 0
    %942 = vperm.xlu0 %941, %v903
    %v943 = vpop.permute.xlu0 %942
    %946 = vset.pattern.permute.xlu0 0
    %947 = vperm.xlu0 %946, %v906
    %v948 = vpop.permute.xlu0 %947
    %v950 = vlaneseq
    %v951 = vshrl.u32 %v950, 7
    %v952 = vsub.s32 0, %v951
    %v953 = vrot.slane %v909, %v952
    %v954 = vmul.f32 %v913, %v953
    %v955 = vmul.f32 %v918, %v953
    %v956 = vmul.f32 %v923, %v953
    %v957 = vmul.f32 %v928, %v953
    %v958 = vmul.f32 %v933, %v953
    %v959 = vmul.f32 %v938, %v953
    %v960 = vmul.f32 %v943, %v953
    %v961 = vmul.f32 %v948, %v953
    %v962 = vadd.f32 %v800, %v954
    %v963 = vadd.f32 %v801, %v955
    %v964 = vadd.f32 %v802, %v956
    %v965 = vadd.f32 %v803, %v957
    %v966 = vadd.f32 %v804, %v958
    %v967 = vadd.f32 %v805, %v959
    %v968 = vadd.f32 %v806, %v960
    %v969 = vadd.f32 %v807, %v961
    %v970 = vpack.c.bf16 %v882, %v879
    %v971 = vpack.c.bf16 %v890, %v887
    %v972 = vpack.c.bf16 %v898, %v895
    %v973 = vpack.c.bf16 %v906, %v903
    %974 = vmatprep.subr.bf16.mxu0 0
    %975 = vmatpush1.bf16.msra.mxu0 %v970
    %976 = vmatprep.subr.bf16.mxu0 0
    %977 = vmatpush1.bf16.msra.mxu0 %v971
    %978 = vmatprep.subr.bf16.mxu0 0
    %979 = vmatpush1.bf16.msra.mxu0 %v972
    %980 = vmatprep.subr.bf16.mxu0 0
    %981 = vmatpush1.bf16.msra.mxu0 %v973
    %982 = vmatprep.subr.bf16.mxu0 0
    %983 = vmatpush1.bf16.msra.mxu0 0
    %984 = vmatprep.subr.bf16.mxu0 0
    %985 = vmatpush1.bf16.msra.mxu0 0
    %986 = vmatprep.subr.bf16.mxu0 0
    %987 = vmatpush1.bf16.msra.mxu0 0
    %988 = vmatprep.subr.bf16.mxu0 0
    %989 = vmatpush1.bf16.msra.mxu0 0
    %990 = vmatprep.subr.bf16.mxu0 0
    %991 = vmatpush1.bf16.msra.mxu0 0
    %992 = vmatprep.subr.bf16.mxu0 0
    %993 = vmatpush1.bf16.msra.mxu0 0
    %994 = vmatprep.subr.bf16.mxu0 0
    %995 = vmatpush1.bf16.msra.mxu0 0
    %996 = vmatprep.subr.bf16.mxu0 0
    %997 = vmatpush1.bf16.msra.mxu0 0
    %998 = vmatprep.subr.bf16.mxu0 0
    %999 = vmatpush1.bf16.msra.mxu0 0
    %1000 = vmatprep.subr.bf16.mxu0 0
    %1001 = vmatpush1.bf16.msra.mxu0 0
    %1002 = vmatprep.subr.bf16.mxu0 0
    %1003 = vmatpush1.bf16.msra.mxu0 0
    %1004 = vmatprep.subr.bf16.mxu0 0
    %1005 = vmatpush1.bf16.msra.mxu0 0
    %1006 = vmatprep.mubr.bf16.mxu0 0
    %1007 = vmatmul.mubr.bf16.gmra.mrb[0].mxu0 %v833
    %v1008 = vpop.f32.mrb[0].mxu0
    %v1009 = vadd.f32 0.0, %v1008
    %v1010 = vpop.f32.mrb[0].mxu0
    %v1011 = vpop.f32.mrb[0].mxu0
    %v1012 = vadd.f32 0.0, %v1011
    %v1013 = vpop.f32.mrb[0].mxu0
    %1014 = vmatprep.mubr.bf16.mxu0 0
    %1015 = vmatmul.mubr.bf16.gmra.mrb[0].mxu0 %v836
    %v1016 = vpop.f32.mrb[0].mxu0
    %v1017 = vadd.f32 0.0, %v1016
    %v1018 = vpop.f32.mrb[0].mxu0
    %v1019 = vpop.f32.mrb[0].mxu0
    %v1020 = vadd.f32 0.0, %v1019
    %v1021 = vpop.f32.mrb[0].mxu0
    %1022 = vmatprep.mubr.bf16.mxu0 0
    %1023 = vmatmul.mubr.bf16.gmra.mrb[0].mxu0 %v839
    %v1024 = vpop.f32.mrb[0].mxu0
    %v1025 = vadd.f32 0.0, %v1024
    %v1026 = vpop.f32.mrb[0].mxu0
    %v1027 = vpop.f32.mrb[0].mxu0
    %v1028 = vadd.f32 0.0, %v1027
    %v1029 = vpop.f32.mrb[0].mxu0
    %1030 = vmatprep.mubr.bf16.mxu0 0
    %1031 = vmatmul.mubr.bf16.gmra.mrb[0].mxu0 %v842
    %v1032 = vpop.f32.mrb[0].mxu0
    %v1033 = vadd.f32 0.0, %v1032
    %v1034 = vpop.f32.mrb[0].mxu0
    %v1035 = vpop.f32.mrb[0].mxu0
    %v1036 = vadd.f32 0.0, %v1035
    %v1037 = vpop.f32.mrb[0].mxu0
    %1038 = vdwg.mxu0
    %v1039 = vmul.f32 %v1009, 2.0
    %v1040 = vmul.f32 %v1012, 2.0
    %v1041 = vmul.f32 %v1017, 2.0
    %v1042 = vmul.f32 %v1020, 2.0
    %v1043 = vmul.f32 %v1025, 2.0
    %v1044 = vmul.f32 %v1028, 2.0
    %v1045 = vmul.f32 %v1033, 2.0
    %v1046 = vmul.f32 %v1036, 2.0
    %v1047 = vsub.f32 %v1039, %v747
    %v1048 = vsub.f32 %v1040, %v748
    %v1049 = vsub.f32 %v1041, %v749
    %v1050 = vsub.f32 %v1042, %v750
    %v1051 = vsub.f32 %v1043, %v751
    %v1052 = vsub.f32 %v1044, %v752
    %v1053 = vsub.f32 %v1045, %v753
    %v1054 = vsub.f32 %v1046, %v754
    %v1055 = vld [vmem:[%s4 + $0x2] sm:$0x1]
    %1057 = vset.pattern.permute.xlu0 0
    %1058 = vperm.xlu0 %1057, %v1047
    %v1059 = vpop.permute.xlu0 %1058
    %1062 = vset.pattern.permute.xlu0 0
    %1063 = vperm.xlu0 %1062, %v1048
    %v1064 = vpop.permute.xlu0 %1063
    %1067 = vset.pattern.permute.xlu0 0
    %1068 = vperm.xlu0 %1067, %v1049
    %v1069 = vpop.permute.xlu0 %1068
    %1072 = vset.pattern.permute.xlu0 0
    %1073 = vperm.xlu0 %1072, %v1050
    %v1074 = vpop.permute.xlu0 %1073
    %1077 = vset.pattern.permute.xlu0 0
    %1078 = vperm.xlu0 %1077, %v1051
    %v1079 = vpop.permute.xlu0 %1078
    %1082 = vset.pattern.permute.xlu0 0
    %1083 = vperm.xlu0 %1082, %v1052
    %v1084 = vpop.permute.xlu0 %1083
    %1087 = vset.pattern.permute.xlu0 0
    %1088 = vperm.xlu0 %1087, %v1053
    %v1089 = vpop.permute.xlu0 %1088
    %1092 = vset.pattern.permute.xlu0 0
    %1093 = vperm.xlu0 %1092, %v1054
    %v1094 = vpop.permute.xlu0 %1093
    %v1096 = vlaneseq
    %v1097 = vshrl.u32 %v1096, 7
    %v1098 = vsub.s32 0, %v1097
    %v1099 = vrot.slane %v1055, %v1098
    %v1100 = vmul.f32 %v1059, %v1099
    %v1101 = vmul.f32 %v1064, %v1099
    %v1102 = vmul.f32 %v1069, %v1099
    %v1103 = vmul.f32 %v1074, %v1099
    %v1104 = vmul.f32 %v1079, %v1099
    %v1105 = vmul.f32 %v1084, %v1099
    %v1106 = vmul.f32 %v1089, %v1099
    %v1107 = vmul.f32 %v1094, %v1099
    %v1108 = vadd.f32 %v962, %v1100
    %v1109 = vadd.f32 %v963, %v1101
    %v1110 = vadd.f32 %v964, %v1102
    %v1111 = vadd.f32 %v965, %v1103
    %v1112 = vadd.f32 %v966, %v1104
    %v1113 = vadd.f32 %v967, %v1105
    %v1114 = vadd.f32 %v968, %v1106
    %v1115 = vadd.f32 %v969, %v1107
    %v1116 = vpack.c.bf16 %v1048, %v1047
    %v1117 = vpack.c.bf16 %v1050, %v1049
    %v1118 = vpack.c.bf16 %v1052, %v1051
    %v1119 = vpack.c.bf16 %v1054, %v1053
    %1120 = vmatprep.subr.bf16.mxu0 0
    %1121 = vmatpush1.bf16.msra.mxu0 %v1116
    %1122 = vmatprep.subr.bf16.mxu0 0
    %1123 = vmatpush1.bf16.msra.mxu0 %v1117
    %1124 = vmatprep.subr.bf16.mxu0 0
    %1125 = vmatpush1.bf16.msra.mxu0 %v1118
    %1126 = vmatprep.subr.bf16.mxu0 0
    %1127 = vmatpush1.bf16.msra.mxu0 %v1119
    %1128 = vmatprep.subr.bf16.mxu0 0
    %1129 = vmatpush1.bf16.msra.mxu0 0
    %1130 = vmatprep.subr.bf16.mxu0 0
    %1131 = vmatpush1.bf16.msra.mxu0 0
    %1132 = vmatprep.subr.bf16.mxu0 0
    %1133 = vmatpush1.bf16.msra.mxu0 0
    %1134 = vmatprep.subr.bf16.mxu0 0
    %1135 = vmatpush1.bf16.msra.mxu0 0
    %1136 = vmatprep.subr.bf16.mxu0 0
    %1137 = vmatpush1.bf16.msra.mxu0 0
    %1138 = vmatprep.subr.bf16.mxu0 0
    %1139 = vmatpush1.bf16.msra.mxu0 0
    %1140 = vmatprep.subr.bf16.mxu0 0
    %1141 = vmatpush1.bf16.msra.mxu0 0
    %1142 = vmatprep.subr.bf16.mxu0 0
    %1143 = vmatpush1.bf16.msra.mxu0 0
    %1144 = vmatprep.subr.bf16.mxu0 0
    %1145 = vmatpush1.bf16.msra.mxu0 0
    %1146 = vmatprep.subr.bf16.mxu0 0
    %1147 = vmatpush1.bf16.msra.mxu0 0
    %1148 = vmatprep.subr.bf16.mxu0 0
    %1149 = vmatpush1.bf16.msra.mxu0 0
    %1150 = vmatprep.subr.bf16.mxu0 0
    %1151 = vmatpush1.bf16.msra.mxu0 0
    %1152 = vmatprep.mubr.bf16.mxu0 0
    %1153 = vmatmul.mubr.bf16.gmra.mrb[0].mxu0 %v833
    %v1154 = vpop.f32.mrb[0].mxu0
    %v1155 = vadd.f32 0.0, %v1154
    %v1156 = vpop.f32.mrb[0].mxu0
    %v1157 = vpop.f32.mrb[0].mxu0
    %v1158 = vadd.f32 0.0, %v1157
    %v1159 = vpop.f32.mrb[0].mxu0
    %1160 = vmatprep.mubr.bf16.mxu0 0
    %1161 = vmatmul.mubr.bf16.gmra.mrb[0].mxu0 %v836
    %v1162 = vpop.f32.mrb[0].mxu0
    %v1163 = vadd.f32 0.0, %v1162
    %v1164 = vpop.f32.mrb[0].mxu0
    %v1165 = vpop.f32.mrb[0].mxu0
    %v1166 = vadd.f32 0.0, %v1165
    %v1167 = vpop.f32.mrb[0].mxu0
    %1168 = vmatprep.mubr.bf16.mxu0 0
    %1169 = vmatmul.mubr.bf16.gmra.mrb[0].mxu0 %v839
    %v1170 = vpop.f32.mrb[0].mxu0
    %v1171 = vadd.f32 0.0, %v1170
    %v1172 = vpop.f32.mrb[0].mxu0
    %v1173 = vpop.f32.mrb[0].mxu0
    %v1174 = vadd.f32 0.0, %v1173
    %v1175 = vpop.f32.mrb[0].mxu0
    %1176 = vmatprep.mubr.bf16.mxu0 0
    %1177 = vmatmul.mubr.bf16.gmra.mrb[0].mxu0 %v842
    %v1178 = vpop.f32.mrb[0].mxu0
    %v1179 = vadd.f32 0.0, %v1178
    %v1180 = vpop.f32.mrb[0].mxu0
    %v1181 = vpop.f32.mrb[0].mxu0
    %v1182 = vadd.f32 0.0, %v1181
    %v1183 = vpop.f32.mrb[0].mxu0
    %1184 = vdwg.mxu0
    %v1185 = vmul.f32 %v1155, 2.0
    %v1186 = vmul.f32 %v1158, 2.0
    %v1187 = vmul.f32 %v1163, 2.0
    %v1188 = vmul.f32 %v1166, 2.0
    %v1189 = vmul.f32 %v1171, 2.0
    %v1190 = vmul.f32 %v1174, 2.0
    %v1191 = vmul.f32 %v1179, 2.0
    %v1192 = vmul.f32 %v1182, 2.0
    %v1193 = vsub.f32 %v1185, %v879
    %v1194 = vsub.f32 %v1186, %v882
    %v1195 = vsub.f32 %v1187, %v887
    %v1196 = vsub.f32 %v1188, %v890
    %v1197 = vsub.f32 %v1189, %v895
    %v1198 = vsub.f32 %v1190, %v898
    %v1199 = vsub.f32 %v1191, %v903
    %v1200 = vsub.f32 %v1192, %v906
    %v1201 = vld [vmem:[%s4 + $0x3] sm:$0x1]
    %1203 = vset.pattern.permute.xlu0 0
    %1204 = vperm.xlu0 %1203, %v1193
    %v1205 = vpop.permute.xlu0 %1204
    %1208 = vset.pattern.permute.xlu0 0
    %1209 = vperm.xlu0 %1208, %v1194
    %v1210 = vpop.permute.xlu0 %1209
    %1213 = vset.pattern.permute.xlu0 0
    %1214 = vperm.xlu0 %1213, %v1195
    %v1215 = vpop.permute.xlu0 %1214
    %1218 = vset.pattern.permute.xlu0 0
    %1219 = vperm.xlu0 %1218, %v1196
    %v1220 = vpop.permute.xlu0 %1219
    %1223 = vset.pattern.permute.xlu0 0
    %1224 = vperm.xlu0 %1223, %v1197
    %v1225 = vpop.permute.xlu0 %1224
    %1228 = vset.pattern.permute.xlu0 0
    %1229 = vperm.xlu0 %1228, %v1198
    %v1230 = vpop.permute.xlu0 %1229
    %1233 = vset.pattern.permute.xlu0 0
    %1234 = vperm.xlu0 %1233, %v1199
    %v1235 = vpop.permute.xlu0 %1234
    %1238 = vset.pattern.permute.xlu0 0
    %1239 = vperm.xlu0 %1238, %v1200
    %v1240 = vpop.permute.xlu0 %1239
    %v1242 = vlaneseq
    %v1243 = vshrl.u32 %v1242, 7
    %v1244 = vsub.s32 0, %v1243
    %v1245 = vrot.slane %v1201, %v1244
    %v1246 = vmul.f32 %v1205, %v1245
    %v1247 = vmul.f32 %v1210, %v1245
    %v1248 = vmul.f32 %v1215, %v1245
    %v1249 = vmul.f32 %v1220, %v1245
    %v1250 = vmul.f32 %v1225, %v1245
    %v1251 = vmul.f32 %v1230, %v1245
    %v1252 = vmul.f32 %v1235, %v1245
    %v1253 = vmul.f32 %v1240, %v1245
    %v1254 = vadd.f32 %v1108, %v1246
    %v1255 = vadd.f32 %v1109, %v1247
    %v1256 = vadd.f32 %v1110, %v1248
    %v1257 = vadd.f32 %v1111, %v1249
    %v1258 = vadd.f32 %v1112, %v1250
    %v1259 = vadd.f32 %v1113, %v1251
    %v1260 = vadd.f32 %v1114, %v1252
    %v1261 = vadd.f32 %v1115, %v1253
    %v1262 = vpack.c.bf16 %v1194, %v1193
    %v1263 = vpack.c.bf16 %v1196, %v1195
    %v1264 = vpack.c.bf16 %v1198, %v1197
    %v1265 = vpack.c.bf16 %v1200, %v1199
    %1266 = vmatprep.subr.bf16.mxu0 0
    %1267 = vmatpush1.bf16.msra.mxu0 %v1262
    %1268 = vmatprep.subr.bf16.mxu0 0
    %1269 = vmatpush1.bf16.msra.mxu0 %v1263
    %1270 = vmatprep.subr.bf16.mxu0 0
    %1271 = vmatpush1.bf16.msra.mxu0 %v1264
    %1272 = vmatprep.subr.bf16.mxu0 0
    %1273 = vmatpush1.bf16.msra.mxu0 %v1265
    %1274 = vmatprep.subr.bf16.mxu0 0
    %1275 = vmatpush1.bf16.msra.mxu0 0
    %1276 = vmatprep.subr.bf16.mxu0 0
    %1277 = vmatpush1.bf16.msra.mxu0 0
    %1278 = vmatprep.subr.bf16.mxu0 0
    %1279 = vmatpush1.bf16.msra.mxu0 0
    %1280 = vmatprep.subr.bf16.mxu0 0
    %1281 = vmatpush1.bf16.msra.mxu0 0
    %1282 = vmatprep.subr.bf16.mxu0 0
    %1283 = vmatpush1.bf16.msra.mxu0 0
    %1284 = vmatprep.subr.bf16.mxu0 0
    %1285 = vmatpush1.bf16.msra.mxu0 0
    %1286 = vmatprep.subr.bf16.mxu0 0
    %1287 = vmatpush1.bf16.msra.mxu0 0
    %1288 = vmatprep.subr.bf16.mxu0 0
    %1289 = vmatpush1.bf16.msra.mxu0 0
    %1290 = vmatprep.subr.bf16.mxu0 0
    %1291 = vmatpush1.bf16.msra.mxu0 0
    %1292 = vmatprep.subr.bf16.mxu0 0
    %1293 = vmatpush1.bf16.msra.mxu0 0
    %1294 = vmatprep.subr.bf16.mxu0 0
    %1295 = vmatpush1.bf16.msra.mxu0 0
    %1296 = vmatprep.subr.bf16.mxu0 0
    %1297 = vmatpush1.bf16.msra.mxu0 0
    %1298 = vmatprep.mubr.bf16.mxu0 0
    %1299 = vmatmul.mubr.bf16.gmra.mrb[0].mxu0 %v833
    %v1300 = vpop.f32.mrb[0].mxu0
    %v1301 = vadd.f32 0.0, %v1300
    %v1302 = vpop.f32.mrb[0].mxu0
    %v1303 = vpop.f32.mrb[0].mxu0
    %v1304 = vadd.f32 0.0, %v1303
    %v1305 = vpop.f32.mrb[0].mxu0
    %1306 = vmatprep.mubr.bf16.mxu0 0
    %1307 = vmatmul.mubr.bf16.gmra.mrb[0].mxu0 %v836
    %v1308 = vpop.f32.mrb[0].mxu0
    %v1309 = vadd.f32 0.0, %v1308
    %v1310 = vpop.f32.mrb[0].mxu0
    %v1311 = vpop.f32.mrb[0].mxu0
    %v1312 = vadd.f32 0.0, %v1311
    %v1313 = vpop.f32.mrb[0].mxu0
    %1314 = vmatprep.mubr.bf16.mxu0 0
    %1315 = vmatmul.mubr.bf16.gmra.mrb[0].mxu0 %v839
    %v1316 = vpop.f32.mrb[0].mxu0
    %v1317 = vadd.f32 0.0, %v1316
    %v1318 = vpop.f32.mrb[0].mxu0
    %v1319 = vpop.f32.mrb[0].mxu0
    %v1320 = vadd.f32 0.0, %v1319
    %v1321 = vpop.f32.mrb[0].mxu0
    %1322 = vmatprep.mubr.bf16.mxu0 0
    %1323 = vmatmul.mubr.bf16.gmra.mrb[0].mxu0 %v842
    %v1324 = vpop.f32.mrb[0].mxu0
    %v1325 = vadd.f32 0.0, %v1324
    %v1326 = vpop.f32.mrb[0].mxu0
    %v1327 = vpop.f32.mrb[0].mxu0
    %v1328 = vadd.f32 0.0, %v1327
    %v1329 = vpop.f32.mrb[0].mxu0
    %1330 = vdwg.mxu0
    %v1331 = vmul.f32 %v1301, 2.0
    %v1332 = vmul.f32 %v1304, 2.0
    %v1333 = vmul.f32 %v1309, 2.0
    %v1334 = vmul.f32 %v1312, 2.0
    %v1335 = vmul.f32 %v1317, 2.0
    %v1336 = vmul.f32 %v1320, 2.0
    %v1337 = vmul.f32 %v1325, 2.0
    %v1338 = vmul.f32 %v1328, 2.0
    %v1339 = vsub.f32 %v1331, %v1047
    %v1340 = vsub.f32 %v1332, %v1048
    %v1341 = vsub.f32 %v1333, %v1049
    %v1342 = vsub.f32 %v1334, %v1050
    %v1343 = vsub.f32 %v1335, %v1051
    %v1344 = vsub.f32 %v1336, %v1052
    %v1345 = vsub.f32 %v1337, %v1053
    %v1346 = vsub.f32 %v1338, %v1054
    %v1347 = vld [vmem:[%s4 + $0x4] sm:$0x1]
    %1349 = vset.pattern.permute.xlu0 0
    %1350 = vperm.xlu0 %1349, %v1339
    %v1351 = vpop.permute.xlu0 %1350
    %1354 = vset.pattern.permute.xlu0 0
    %1355 = vperm.xlu0 %1354, %v1340
    %v1356 = vpop.permute.xlu0 %1355
    %1359 = vset.pattern.permute.xlu0 0
    %1360 = vperm.xlu0 %1359, %v1341
    %v1361 = vpop.permute.xlu0 %1360
    %1364 = vset.pattern.permute.xlu0 0
    %1365 = vperm.xlu0 %1364, %v1342
    %v1366 = vpop.permute.xlu0 %1365
    %1369 = vset.pattern.permute.xlu0 0
    %1370 = vperm.xlu0 %1369, %v1343
    %v1371 = vpop.permute.xlu0 %1370
    %1374 = vset.pattern.permute.xlu0 0
    %1375 = vperm.xlu0 %1374, %v1344
    %v1376 = vpop.permute.xlu0 %1375
    %1379 = vset.pattern.permute.xlu0 0
    %1380 = vperm.xlu0 %1379, %v1345
    %v1381 = vpop.permute.xlu0 %1380
    %1384 = vset.pattern.permute.xlu0 0
    %1385 = vperm.xlu0 %1384, %v1346
    %v1386 = vpop.permute.xlu0 %1385
    %v1388 = vlaneseq
    %v1389 = vshrl.u32 %v1388, 7
    %v1390 = vsub.s32 0, %v1389
    %v1391 = vrot.slane %v1347, %v1390
    %v1392 = vmul.f32 %v1351, %v1391
    %v1393 = vmul.f32 %v1356, %v1391
    %v1394 = vmul.f32 %v1361, %v1391
    %v1395 = vmul.f32 %v1366, %v1391
    %v1396 = vmul.f32 %v1371, %v1391
    %v1397 = vmul.f32 %v1376, %v1391
    %v1398 = vmul.f32 %v1381, %v1391
    %v1399 = vmul.f32 %v1386, %v1391
    %v1400 = vadd.f32 %v1254, %v1392
    %v1401 = vadd.f32 %v1255, %v1393
    %v1402 = vadd.f32 %v1256, %v1394
    %v1403 = vadd.f32 %v1257, %v1395
    %v1404 = vadd.f32 %v1258, %v1396
    %v1405 = vadd.f32 %v1259, %v1397
    %v1406 = vadd.f32 %v1260, %v1398
    %v1407 = vadd.f32 %v1261, %v1399
    %v1408 = vld [vmem:[%s5] sm:$0x1]
    %v1410 = vlaneseq
    %v1411 = vshrl.u32 %v1410, 7
    %v1412 = vsub.s32 0, %v1411
    %v1413 = vrot.slane %v1408, %v1412
    %v1415 = vadd.f32 %v1400, %v1413
    %v1416 = vadd.f32 %v1401, %v1413
    %v1417 = vadd.f32 %v1402, %v1413
    %v1418 = vadd.f32 %v1403, %v1413
    %v1419 = vadd.f32 %v1404, %v1413
    %v1420 = vadd.f32 %v1405, %v1413
    %v1421 = vadd.f32 %v1406, %v1413
    %v1422 = vadd.f32 %v1407, %v1413
    %v1423 = vmax.f32 %v1415, 0.0
    %v1424 = vmax.f32 %v1416, 0.0
    %v1425 = vmax.f32 %v1417, 0.0
    %v1426 = vmax.f32 %v1418, 0.0
    %v1427 = vmax.f32 %v1419, 0.0
    %v1428 = vmax.f32 %v1420, 0.0
    %v1429 = vmax.f32 %v1421, 0.0
    %v1430 = vmax.f32 %v1422, 0.0
    %1439 = vrot.lane.b32.xlu0 %v1423, 64
    %v1440 = vpop.permute.xlu0 %1439
    %1441 = vrot.lane.b32.xlu0 %v1424, 64
    %v1442 = vpop.permute.xlu0 %1441
    %1443 = vrot.lane.b32.xlu0 %v1425, 64
    %v1444 = vpop.permute.xlu0 %1443
    %1445 = vrot.lane.b32.xlu0 %v1426, 64
    %v1446 = vpop.permute.xlu0 %1445
    %1447 = vrot.lane.b32.xlu0 %v1427, 64
    %v1448 = vpop.permute.xlu0 %1447
    %1449 = vrot.lane.b32.xlu0 %v1428, 64
    %v1450 = vpop.permute.xlu0 %1449
    %1451 = vrot.lane.b32.xlu0 %v1429, 64
    %v1452 = vpop.permute.xlu0 %1451
    %1453 = vrot.lane.b32.xlu0 %v1430, 64
    %v1454 = vpop.permute.xlu0 %1453
    %vm1463 = vcmask 1048064
    %1464 = vst.msk [vmem:[#allocation2] sm:$0xff] %vm1463, %v1440
    %1465 = vst.msk [vmem:[#allocation2 + $0x8] sm:$0xff] %vm1463, %v1442
    %1466 = vst.msk [vmem:[#allocation2 + $0x10] sm:$0xff] %vm1463, %v1444
    %1467 = vst.msk [vmem:[#allocation2 + $0x18] sm:$0xff] %vm1463, %v1446
    %1468 = vst.msk [vmem:[#allocation2 + $0x20] sm:$0xff] %vm1463, %v1448
    %1469 = vst.msk [vmem:[#allocation2 + $0x28] sm:$0xff] %vm1463, %v1450
    %1470 = vst.msk [vmem:[#allocation2 + $0x30] sm:$0xff] %vm1463, %v1452
    %1471 = vst.msk [vmem:[#allocation2 + $0x38] sm:$0xff] %vm1463, %v1454
    %v1472 = vld [vmem:[%s11] sm:$0xff]
    %v1473 = vld [vmem:[%s11 + $0x8] sm:$0xff]
    %v1474 = vld [vmem:[%s11 + $0x10] sm:$0xff]
    %v1475 = vld [vmem:[%s11 + $0x18] sm:$0xff]
    %v1476 = vld [vmem:[%s11 + $0x20] sm:$0xff]
    %v1477 = vld [vmem:[%s11 + $0x28] sm:$0xff]
    %v1478 = vld [vmem:[%s11 + $0x30] sm:$0xff]
    %v1479 = vld [vmem:[%s11 + $0x38] sm:$0xff]
    %v1480 = vld [vmem:[%s11 + $0x40] sm:$0xff]
    %v1481 = vld [vmem:[%s11 + $0x48] sm:$0xff]
    %v1482 = vld [vmem:[%s11 + $0x50] sm:$0xff]
    %v1483 = vld [vmem:[%s11 + $0x58] sm:$0xff]
    %v1484 = vld [vmem:[%s11 + $0x60] sm:$0xff]
    %v1485 = vld [vmem:[%s11 + $0x68] sm:$0xff]
    %v1486 = vld [vmem:[%s11 + $0x70] sm:$0xff]
    %v1487 = vld [vmem:[%s11 + $0x78] sm:$0xff]
    %v1488 = vld [vmem:[%s11 + $0x80] sm:$0xff]
    %v1489 = vld [vmem:[%s11 + $0x88] sm:$0xff]
    %v1490 = vld [vmem:[%s11 + $0x90] sm:$0xff]
    %v1491 = vld [vmem:[%s11 + $0x98] sm:$0xff]
    %v1492 = vld [vmem:[%s11 + $0xa0] sm:$0xff]
    %v1493 = vld [vmem:[%s11 + $0xa8] sm:$0xff]
    %v1494 = vld [vmem:[%s11 + $0xb0] sm:$0xff]
    %v1495 = vld [vmem:[%s11 + $0xb8] sm:$0xff]
    %v1496 = vld [vmem:[%s11 + $0xc0] sm:$0xff]
    %v1497 = vld [vmem:[%s11 + $0xc8] sm:$0xff]
    %v1498 = vld [vmem:[%s11 + $0xd0] sm:$0xff]
    %v1499 = vld [vmem:[%s11 + $0xd8] sm:$0xff]
    %v1500 = vld [vmem:[%s11 + $0xe0] sm:$0xff]
    %v1501 = vld [vmem:[%s11 + $0xe8] sm:$0xff]
    %v1502 = vld [vmem:[%s11 + $0xf0] sm:$0xff]
    %v1503 = vld [vmem:[%s11 + $0xf8] sm:$0xff]
    %v1504 = vld [vmem:[#allocation2] sm:$0xff]
    %v1505 = vld [vmem:[#allocation2 + $0x8] sm:$0xff]
    %v1506 = vld [vmem:[#allocation2 + $0x10] sm:$0xff]
    %v1507 = vld [vmem:[#allocation2 + $0x18] sm:$0xff]
    %v1508 = vld [vmem:[#allocation2 + $0x20] sm:$0xff]
    %v1509 = vld [vmem:[#allocation2 + $0x28] sm:$0xff]
    %v1510 = vld [vmem:[#allocation2 + $0x30] sm:$0xff]
    %v1511 = vld [vmem:[#allocation2 + $0x38] sm:$0xff]
    %1512 = vst [vmem:[#allocation3] sm:$0xff] %v1504
    %1513 = vst [vmem:[#allocation3 + $0x28] sm:$0xff] %v1505
    %1514 = vst [vmem:[#allocation3 + $0x50] sm:$0xff] %v1506
    %1515 = vst [vmem:[#allocation3 + $0x78] sm:$0xff] %v1507
    %1516 = vst [vmem:[#allocation3 + $0xa0] sm:$0xff] %v1508
    %1517 = vst [vmem:[#allocation3 + $0xc8] sm:$0xff] %v1509
    %1518 = vst [vmem:[#allocation3 + $0xf0] sm:$0xff] %v1510
    %1519 = vst [vmem:[#allocation3 + $0x118] sm:$0xff] %v1511
    %v1520 = vpack.c.bf16 %v1505, %v1504
    %v1521 = vpack.c.bf16 %v1507, %v1506
    %v1522 = vpack.c.bf16 %v1509, %v1508
    %v1523 = vpack.c.bf16 %v1511, %v1510
    %1524 = vmatprep.subr.bf16.mxu0 0
    %1525 = vmatpush1.bf16.msra.mxu0 %v1520
    %1526 = vmatprep.subr.bf16.mxu0 0
    %1527 = vmatpush1.bf16.msra.mxu0 %v1521
    %1528 = vmatprep.subr.bf16.mxu0 0
    %1529 = vmatpush1.bf16.msra.mxu0 %v1522
    %1530 = vmatprep.subr.bf16.mxu0 0
    %1531 = vmatpush1.bf16.msra.mxu0 %v1523
    %1532 = vmatprep.subr.bf16.mxu0 0
    %1533 = vmatpush1.bf16.msra.mxu0 0
    %1534 = vmatprep.subr.bf16.mxu0 0
    %1535 = vmatpush1.bf16.msra.mxu0 0
    %1536 = vmatprep.subr.bf16.mxu0 0
    %1537 = vmatpush1.bf16.msra.mxu0 0
    %1538 = vmatprep.subr.bf16.mxu0 0
    %1539 = vmatpush1.bf16.msra.mxu0 0
    %1540 = vmatprep.subr.bf16.mxu0 0
    %1541 = vmatpush1.bf16.msra.mxu0 0
    %1542 = vmatprep.subr.bf16.mxu0 0
    %1543 = vmatpush1.bf16.msra.mxu0 0
    %1544 = vmatprep.subr.bf16.mxu0 0
    %1545 = vmatpush1.bf16.msra.mxu0 0
    %1546 = vmatprep.subr.bf16.mxu0 0
    %1547 = vmatpush1.bf16.msra.mxu0 0
    %1548 = vmatprep.subr.bf16.mxu0 0
    %1549 = vmatpush1.bf16.msra.mxu0 0
    %1550 = vmatprep.subr.bf16.mxu0 0
    %1551 = vmatpush1.bf16.msra.mxu0 0
    %1552 = vmatprep.subr.bf16.mxu0 0
    %1553 = vmatpush1.bf16.msra.mxu0 0
    %1554 = vmatprep.subr.bf16.mxu0 0
    %1555 = vmatpush1.bf16.msra.mxu0 0
    %1556 = vmatprep.mubr.bf16.mxu0 0
    %1557 = vmatmul.mubr.bf16.gmra.mrb[0].mxu0 %v141
    %v1558 = vpop.f32.mrb[0].mxu0
    %v1559 = vadd.f32 0.0, %v1558
    %v1560 = vpop.f32.mrb[0].mxu0
    %v1561 = vpop.f32.mrb[0].mxu0
    %v1562 = vadd.f32 0.0, %v1561
    %v1563 = vpop.f32.mrb[0].mxu0
    %1564 = vmatprep.mubr.bf16.mxu0 0
    %1565 = vmatmul.mubr.bf16.gmra.mrb[0].mxu0 %v144
    %v1566 = vpop.f32.mrb[0].mxu0
    %v1567 = vadd.f32 0.0, %v1566
    %v1568 = vpop.f32.mrb[0].mxu0
    %v1569 = vpop.f32.mrb[0].mxu0
    %v1570 = vadd.f32 0.0, %v1569
    %v1571 = vpop.f32.mrb[0].mxu0
    %1572 = vmatprep.mubr.bf16.mxu0 0
    %1573 = vmatmul.mubr.bf16.gmra.mrb[0].mxu0 %v147
    %v1574 = vpop.f32.mrb[0].mxu0
    %v1575 = vadd.f32 0.0, %v1574
    %v1576 = vpop.f32.mrb[0].mxu0
    %v1577 = vpop.f32.mrb[0].mxu0
    %v1578 = vadd.f32 0.0, %v1577
    %v1579 = vpop.f32.mrb[0].mxu0
    %1580 = vmatprep.mubr.bf16.mxu0 0
    %1581 = vmatmul.mubr.bf16.gmra.mrb[0].mxu0 %v150
    %v1582 = vpop.f32.mrb[0].mxu0
    %v1583 = vadd.f32 0.0, %v1582
    %v1584 = vpop.f32.mrb[0].mxu0
    %v1585 = vpop.f32.mrb[0].mxu0
    %v1586 = vadd.f32 0.0, %v1585
    %v1587 = vpop.f32.mrb[0].mxu0
    %1588 = vdwg.mxu0
    %1589 = vst [vmem:[#allocation3 + $0x8] sm:$0xff] %v1559
    %1590 = vst [vmem:[#allocation3 + $0x30] sm:$0xff] %v1562
    %1591 = vst [vmem:[#allocation3 + $0x58] sm:$0xff] %v1567
    %1592 = vst [vmem:[#allocation3 + $0x80] sm:$0xff] %v1570
    %1593 = vst [vmem:[#allocation3 + $0xa8] sm:$0xff] %v1575
    %1594 = vst [vmem:[#allocation3 + $0xd0] sm:$0xff] %v1578
    %1595 = vst [vmem:[#allocation3 + $0xf8] sm:$0xff] %v1583
    %1596 = vst [vmem:[#allocation3 + $0x120] sm:$0xff] %v1586
    %v1597 = vld [vmem:[#allocation3 + $0x8] sm:$0xff]
    %v1598 = vld [vmem:[#allocation3 + $0x30] sm:$0xff]
    %v1599 = vld [vmem:[#allocation3 + $0x58] sm:$0xff]
    %v1600 = vld [vmem:[#allocation3 + $0x80] sm:$0xff]
    %v1601 = vld [vmem:[#allocation3 + $0xa8] sm:$0xff]
    %v1602 = vld [vmem:[#allocation3 + $0xd0] sm:$0xff]
    %v1603 = vld [vmem:[#allocation3 + $0xf8] sm:$0xff]
    %v1604 = vld [vmem:[#allocation3 + $0x120] sm:$0xff]
    %v1605 = vld [vmem:[#allocation3] sm:$0xff]
    %v1606 = vld [vmem:[#allocation3 + $0x28] sm:$0xff]
    %v1607 = vld [vmem:[#allocation3 + $0x50] sm:$0xff]
    %v1608 = vld [vmem:[#allocation3 + $0x78] sm:$0xff]
    %v1609 = vld [vmem:[#allocation3 + $0xa0] sm:$0xff]
    %v1610 = vld [vmem:[#allocation3 + $0xc8] sm:$0xff]
    %v1611 = vld [vmem:[#allocation3 + $0xf0] sm:$0xff]
    %v1612 = vld [vmem:[#allocation3 + $0x118] sm:$0xff]
    %v1613 = vpack.c.bf16 %v1598, %v1597
    %v1614 = vpack.c.bf16 %v1600, %v1599
    %v1615 = vpack.c.bf16 %v1602, %v1601
    %v1616 = vpack.c.bf16 %v1604, %v1603
    %1617 = vmatprep.subr.bf16.mxu0 0
    %1618 = vmatpush1.bf16.msra.mxu0 %v1613
    %1619 = vmatprep.subr.bf16.mxu0 0
    %1620 = vmatpush1.bf16.msra.mxu0 %v1614
    %1621 = vmatprep.subr.bf16.mxu0 0
    %1622 = vmatpush1.bf16.msra.mxu0 %v1615
    %1623 = vmatprep.subr.bf16.mxu0 0
    %1624 = vmatpush1.bf16.msra.mxu0 %v1616
    %1625 = vmatprep.subr.bf16.mxu0 0
    %1626 = vmatpush1.bf16.msra.mxu0 0
    %1627 = vmatprep.subr.bf16.mxu0 0
    %1628 = vmatpush1.bf16.msra.mxu0 0
    %1629 = vmatprep.subr.bf16.mxu0 0
    %1630 = vmatpush1.bf16.msra.mxu0 0
    %1631 = vmatprep.subr.bf16.mxu0 0
    %1632 = vmatpush1.bf16.msra.mxu0 0
    %1633 = vmatprep.subr.bf16.mxu0 0
    %1634 = vmatpush1.bf16.msra.mxu0 0
    %1635 = vmatprep.subr.bf16.mxu0 0
    %1636 = vmatpush1.bf16.msra.mxu0 0
    %1637 = vmatprep.subr.bf16.mxu0 0
    %1638 = vmatpush1.bf16.msra.mxu0 0
    %1639 = vmatprep.subr.bf16.mxu0 0
    %1640 = vmatpush1.bf16.msra.mxu0 0
    %1641 = vmatprep.subr.bf16.mxu0 0
    %1642 = vmatpush1.bf16.msra.mxu0 0
    %1643 = vmatprep.subr.bf16.mxu0 0
    %1644 = vmatpush1.bf16.msra.mxu0 0
    %1645 = vmatprep.subr.bf16.mxu0 0
    %1646 = vmatpush1.bf16.msra.mxu0 0
    %1647 = vmatprep.subr.bf16.mxu0 0
    %1648 = vmatpush1.bf16.msra.mxu0 0
    %1649 = vmatprep.mubr.bf16.mxu0 0
    %1650 = vmatmul.mubr.bf16.gmra.mrb[0].mxu0 %v141
    %v1651 = vpop.f32.mrb[0].mxu0
    %v1652 = vadd.f32 0.0, %v1651
    %v1653 = vpop.f32.mrb[0].mxu0
    %v1654 = vpop.f32.mrb[0].mxu0
    %v1655 = vadd.f32 0.0, %v1654
    %v1656 = vpop.f32.mrb[0].mxu0
    %1657 = vmatprep.mubr.bf16.mxu0 0
    %1658 = vmatmul.mubr.bf16.gmra.mrb[0].mxu0 %v144
    %v1659 = vpop.f32.mrb[0].mxu0
    %v1660 = vadd.f32 0.0, %v1659
    %v1661 = vpop.f32.mrb[0].mxu0
    %v1662 = vpop.f32.mrb[0].mxu0
    %v1663 = vadd.f32 0.0, %v1662
    %v1664 = vpop.f32.mrb[0].mxu0
    %1665 = vmatprep.mubr.bf16.mxu0 0
    %1666 = vmatmul.mubr.bf16.gmra.mrb[0].mxu0 %v147
    %v1667 = vpop.f32.mrb[0].mxu0
    %v1668 = vadd.f32 0.0, %v1667
    %v1669 = vpop.f32.mrb[0].mxu0
    %v1670 = vpop.f32.mrb[0].mxu0
    %v1671 = vadd.f32 0.0, %v1670
    %v1672 = vpop.f32.mrb[0].mxu0
    %1673 = vmatprep.mubr.bf16.mxu0 0
    %1674 = vmatmul.mubr.bf16.gmra.mrb[0].mxu0 %v150
    %v1675 = vpop.f32.mrb[0].mxu0
    %v1676 = vadd.f32 0.0, %v1675
    %v1677 = vpop.f32.mrb[0].mxu0
    %v1678 = vpop.f32.mrb[0].mxu0
    %v1679 = vadd.f32 0.0, %v1678
    %v1680 = vpop.f32.mrb[0].mxu0
    %1681 = vdwg.mxu0
    %v1682 = vmul.f32 %v1652, 2.0
    %v1683 = vmul.f32 %v1655, 2.0
    %v1684 = vmul.f32 %v1660, 2.0
    %v1685 = vmul.f32 %v1663, 2.0
    %v1686 = vmul.f32 %v1668, 2.0
    %v1687 = vmul.f32 %v1671, 2.0
    %v1688 = vmul.f32 %v1676, 2.0
    %v1689 = vmul.f32 %v1679, 2.0
    %v1690 = vsub.f32 %v1682, %v1605
    %v1691 = vsub.f32 %v1683, %v1606
    %v1692 = vsub.f32 %v1684, %v1607
    %v1693 = vsub.f32 %v1685, %v1608
    %v1694 = vsub.f32 %v1686, %v1609
    %v1695 = vsub.f32 %v1687, %v1610
    %v1696 = vsub.f32 %v1688, %v1611
    %v1697 = vsub.f32 %v1689, %v1612
    %1698 = vst [vmem:[#allocation3 + $0x10] sm:$0xff] %v1690
    %1699 = vst [vmem:[#allocation3 + $0x38] sm:$0xff] %v1691
    %1700 = vst [vmem:[#allocation3 + $0x60] sm:$0xff] %v1692
    %1701 = vst [vmem:[#allocation3 + $0x88] sm:$0xff] %v1693
    %1702 = vst [vmem:[#allocation3 + $0xb0] sm:$0xff] %v1694
    %1703 = vst [vmem:[#allocation3 + $0xd8] sm:$0xff] %v1695
    %1704 = vst [vmem:[#allocation3 + $0x100] sm:$0xff] %v1696
    %1705 = vst [vmem:[#allocation3 + $0x128] sm:$0xff] %v1697
    %v1706 = vld [vmem:[#allocation3 + $0x10] sm:$0xff]
    %v1707 = vld [vmem:[#allocation3 + $0x38] sm:$0xff]
    %v1708 = vld [vmem:[#allocation3 + $0x60] sm:$0xff]
    %v1709 = vld [vmem:[#allocation3 + $0x88] sm:$0xff]
    %v1710 = vld [vmem:[#allocation3 + $0xb0] sm:$0xff]
    %v1711 = vld [vmem:[#allocation3 + $0xd8] sm:$0xff]
    %v1712 = vld [vmem:[#allocation3 + $0x100] sm:$0xff]
    %v1713 = vld [vmem:[#allocation3 + $0x128] sm:$0xff]
    %v1714 = vld [vmem:[#allocation3 + $0x8] sm:$0xff]
    %v1715 = vld [vmem:[#allocation3 + $0x30] sm:$0xff]
    %v1716 = vld [vmem:[#allocation3 + $0x58] sm:$0xff]
    %v1717 = vld [vmem:[#allocation3 + $0x80] sm:$0xff]
    %v1718 = vld [vmem:[#allocation3 + $0xa8] sm:$0xff]
    %v1719 = vld [vmem:[#allocation3 + $0xd0] sm:$0xff]
    %v1720 = vld [vmem:[#allocation3 + $0xf8] sm:$0xff]
    %v1721 = vld [vmem:[#allocation3 + $0x120] sm:$0xff]
    %v1722 = vpack.c.bf16 %v1707, %v1706
    %v1723 = vpack.c.bf16 %v1709, %v1708
    %v1724 = vpack.c.bf16 %v1711, %v1710
    %v1725 = vpack.c.bf16 %v1713, %v1712
    %1726 = vmatprep.subr.bf16.mxu0 0
    %1727 = vmatpush1.bf16.msra.mxu0 %v1722
    %1728 = vmatprep.subr.bf16.mxu0 0
    %1729 = vmatpush1.bf16.msra.mxu0 %v1723
    %1730 = vmatprep.subr.bf16.mxu0 0
    %1731 = vmatpush1.bf16.msra.mxu0 %v1724
    %1732 = vmatprep.subr.bf16.mxu0 0
    %1733 = vmatpush1.bf16.msra.mxu0 %v1725
    %1734 = vmatprep.subr.bf16.mxu0 0
    %1735 = vmatpush1.bf16.msra.mxu0 0
    %1736 = vmatprep.subr.bf16.mxu0 0
    %1737 = vmatpush1.bf16.msra.mxu0 0
    %1738 = vmatprep.subr.bf16.mxu0 0
    %1739 = vmatpush1.bf16.msra.mxu0 0
    %1740 = vmatprep.subr.bf16.mxu0 0
    %1741 = vmatpush1.bf16.msra.mxu0 0
    %1742 = vmatprep.subr.bf16.mxu0 0
    %1743 = vmatpush1.bf16.msra.mxu0 0
    %1744 = vmatprep.subr.bf16.mxu0 0
    %1745 = vmatpush1.bf16.msra.mxu0 0
    %1746 = vmatprep.subr.bf16.mxu0 0
    %1747 = vmatpush1.bf16.msra.mxu0 0
    %1748 = vmatprep.subr.bf16.mxu0 0
    %1749 = vmatpush1.bf16.msra.mxu0 0
    %1750 = vmatprep.subr.bf16.mxu0 0
    %1751 = vmatpush1.bf16.msra.mxu0 0
    %1752 = vmatprep.subr.bf16.mxu0 0
    %1753 = vmatpush1.bf16.msra.mxu0 0
    %1754 = vmatprep.subr.bf16.mxu0 0
    %1755 = vmatpush1.bf16.msra.mxu0 0
    %1756 = vmatprep.subr.bf16.mxu0 0
    %1757 = vmatpush1.bf16.msra.mxu0 0
    %1758 = vmatprep.mubr.bf16.mxu0 0
    %1759 = vmatmul.mubr.bf16.gmra.mrb[0].mxu0 %v141
    %v1760 = vpop.f32.mrb[0].mxu0
    %v1761 = vadd.f32 0.0, %v1760
    %v1762 = vpop.f32.mrb[0].mxu0
    %v1763 = vpop.f32.mrb[0].mxu0
    %v1764 = vadd.f32 0.0, %v1763
    %v1765 = vpop.f32.mrb[0].mxu0
    %1766 = vmatprep.mubr.bf16.mxu0 0
    %1767 = vmatmul.mubr.bf16.gmra.mrb[0].mxu0 %v144
    %v1768 = vpop.f32.mrb[0].mxu0
    %v1769 = vadd.f32 0.0, %v1768
    %v1770 = vpop.f32.mrb[0].mxu0
    %v1771 = vpop.f32.mrb[0].mxu0
    %v1772 = vadd.f32 0.0, %v1771
    %v1773 = vpop.f32.mrb[0].mxu0
    %1774 = vmatprep.mubr.bf16.mxu0 0
    %1775 = vmatmul.mubr.bf16.gmra.mrb[0].mxu0 %v147
    %v1776 = vpop.f32.mrb[0].mxu0
    %v1777 = vadd.f32 0.0, %v1776
    %v1778 = vpop.f32.mrb[0].mxu0
    %v1779 = vpop.f32.mrb[0].mxu0
    %v1780 = vadd.f32 0.0, %v1779
    %v1781 = vpop.f32.mrb[0].mxu0
    %1782 = vmatprep.mubr.bf16.mxu0 0
    %1783 = vmatmul.mubr.bf16.gmra.mrb[0].mxu0 %v150
    %v1784 = vpop.f32.mrb[0].mxu0
    %v1785 = vadd.f32 0.0, %v1784
    %v1786 = vpop.f32.mrb[0].mxu0
    %v1787 = vpop.f32.mrb[0].mxu0
    %v1788 = vadd.f32 0.0, %v1787
    %v1789 = vpop.f32.mrb[0].mxu0
    %1790 = vdwg.mxu0
    %v1791 = vmul.f32 %v1761, 2.0
    %v1792 = vmul.f32 %v1764, 2.0
    %v1793 = vmul.f32 %v1769, 2.0
    %v1794 = vmul.f32 %v1772, 2.0
    %v1795 = vmul.f32 %v1777, 2.0
    %v1796 = vmul.f32 %v1780, 2.0
    %v1797 = vmul.f32 %v1785, 2.0
    %v1798 = vmul.f32 %v1788, 2.0
    %v1799 = vsub.f32 %v1791, %v1714
    %v1800 = vsub.f32 %v1792, %v1715
    %v1801 = vsub.f32 %v1793, %v1716
    %v1802 = vsub.f32 %v1794, %v1717
    %v1803 = vsub.f32 %v1795, %v1718
    %v1804 = vsub.f32 %v1796, %v1719
    %v1805 = vsub.f32 %v1797, %v1720
    %v1806 = vsub.f32 %v1798, %v1721
    %1807 = vst [vmem:[#allocation3 + $0x18] sm:$0xff] %v1799
    %1808 = vst [vmem:[#allocation3 + $0x40] sm:$0xff] %v1800
    %1809 = vst [vmem:[#allocation3 + $0x68] sm:$0xff] %v1801
    %1810 = vst [vmem:[#allocation3 + $0x90] sm:$0xff] %v1802
    %1811 = vst [vmem:[#allocation3 + $0xb8] sm:$0xff] %v1803
    %1812 = vst [vmem:[#allocation3 + $0xe0] sm:$0xff] %v1804
    %1813 = vst [vmem:[#allocation3 + $0x108] sm:$0xff] %v1805
    %1814 = vst [vmem:[#allocation3 + $0x130] sm:$0xff] %v1806
    %v1815 = vld [vmem:[#allocation3 + $0x18] sm:$0xff]
    %v1816 = vld [vmem:[#allocation3 + $0x40] sm:$0xff]
    %v1817 = vld [vmem:[#allocation3 + $0x68] sm:$0xff]
    %v1818 = vld [vmem:[#allocation3 + $0x90] sm:$0xff]
    %v1819 = vld [vmem:[#allocation3 + $0xb8] sm:$0xff]
    %v1820 = vld [vmem:[#allocation3 + $0xe0] sm:$0xff]
    %v1821 = vld [vmem:[#allocation3 + $0x108] sm:$0xff]
    %v1822 = vld [vmem:[#allocation3 + $0x130] sm:$0xff]
    %v1823 = vld [vmem:[#allocation3 + $0x10] sm:$0xff]
    %v1824 = vld [vmem:[#allocation3 + $0x38] sm:$0xff]
    %v1825 = vld [vmem:[#allocation3 + $0x60] sm:$0xff]
    %v1826 = vld [vmem:[#allocation3 + $0x88] sm:$0xff]
    %v1827 = vld [vmem:[#allocation3 + $0xb0] sm:$0xff]
    %v1828 = vld [vmem:[#allocation3 + $0xd8] sm:$0xff]
    %v1829 = vld [vmem:[#allocation3 + $0x100] sm:$0xff]
    %v1830 = vld [vmem:[#allocation3 + $0x128] sm:$0xff]
    %v1831 = vpack.c.bf16 %v1816, %v1815
    %v1832 = vpack.c.bf16 %v1818, %v1817
    %v1833 = vpack.c.bf16 %v1820, %v1819
    %v1834 = vpack.c.bf16 %v1822, %v1821
    %1835 = vmatprep.subr.bf16.mxu0 0
    %1836 = vmatpush1.bf16.msra.mxu0 %v1831
    %1837 = vmatprep.subr.bf16.mxu0 0
    %1838 = vmatpush1.bf16.msra.mxu0 %v1832
    %1839 = vmatprep.subr.bf16.mxu0 0
    %1840 = vmatpush1.bf16.msra.mxu0 %v1833
    %1841 = vmatprep.subr.bf16.mxu0 0
    %1842 = vmatpush1.bf16.msra.mxu0 %v1834
    %1843 = vmatprep.subr.bf16.mxu0 0
    %1844 = vmatpush1.bf16.msra.mxu0 0
    %1845 = vmatprep.subr.bf16.mxu0 0
    %1846 = vmatpush1.bf16.msra.mxu0 0
    %1847 = vmatprep.subr.bf16.mxu0 0
    %1848 = vmatpush1.bf16.msra.mxu0 0
    %1849 = vmatprep.subr.bf16.mxu0 0
    %1850 = vmatpush1.bf16.msra.mxu0 0
    %1851 = vmatprep.subr.bf16.mxu0 0
    %1852 = vmatpush1.bf16.msra.mxu0 0
    %1853 = vmatprep.subr.bf16.mxu0 0
    %1854 = vmatpush1.bf16.msra.mxu0 0
    %1855 = vmatprep.subr.bf16.mxu0 0
    %1856 = vmatpush1.bf16.msra.mxu0 0
    %1857 = vmatprep.subr.bf16.mxu0 0
    %1858 = vmatpush1.bf16.msra.mxu0 0
    %1859 = vmatprep.subr.bf16.mxu0 0
    %1860 = vmatpush1.bf16.msra.mxu0 0
    %1861 = vmatprep.subr.bf16.mxu0 0
    %1862 = vmatpush1.bf16.msra.mxu0 0
    %1863 = vmatprep.subr.bf16.mxu0 0
    %1864 = vmatpush1.bf16.msra.mxu0 0
    %1865 = vmatprep.subr.bf16.mxu0 0
    %1866 = vmatpush1.bf16.msra.mxu0 0
    %1867 = vmatprep.mubr.bf16.mxu0 0
    %1868 = vmatmul.mubr.bf16.gmra.mrb[0].mxu0 %v141
    %v1869 = vpop.f32.mrb[0].mxu0
    %v1870 = vadd.f32 0.0, %v1869
    %v1871 = vpop.f32.mrb[0].mxu0
    %v1872 = vpop.f32.mrb[0].mxu0
    %v1873 = vadd.f32 0.0, %v1872
    %v1874 = vpop.f32.mrb[0].mxu0
    %1875 = vmatprep.mubr.bf16.mxu0 0
    %1876 = vmatmul.mubr.bf16.gmra.mrb[0].mxu0 %v144
    %v1877 = vpop.f32.mrb[0].mxu0
    %v1878 = vadd.f32 0.0, %v1877
    %v1879 = vpop.f32.mrb[0].mxu0
    %v1880 = vpop.f32.mrb[0].mxu0
    %v1881 = vadd.f32 0.0, %v1880
    %v1882 = vpop.f32.mrb[0].mxu0
    %1883 = vmatprep.mubr.bf16.mxu0 0
    %1884 = vmatmul.mubr.bf16.gmra.mrb[0].mxu0 %v147
    %v1885 = vpop.f32.mrb[0].mxu0
    %v1886 = vadd.f32 0.0, %v1885
    %v1887 = vpop.f32.mrb[0].mxu0
    %v1888 = vpop.f32.mrb[0].mxu0
    %v1889 = vadd.f32 0.0, %v1888
    %v1890 = vpop.f32.mrb[0].mxu0
    %1891 = vmatprep.mubr.bf16.mxu0 0
    %1892 = vmatmul.mubr.bf16.gmra.mrb[0].mxu0 %v150
    %v1893 = vpop.f32.mrb[0].mxu0
    %v1894 = vadd.f32 0.0, %v1893
    %v1895 = vpop.f32.mrb[0].mxu0
    %v1896 = vpop.f32.mrb[0].mxu0
    %v1897 = vadd.f32 0.0, %v1896
    %v1898 = vpop.f32.mrb[0].mxu0
    %1899 = vdwg.mxu0
    %v1900 = vmul.f32 %v1870, 2.0
    %v1901 = vmul.f32 %v1873, 2.0
    %v1902 = vmul.f32 %v1878, 2.0
    %v1903 = vmul.f32 %v1881, 2.0
    %v1904 = vmul.f32 %v1886, 2.0
    %v1905 = vmul.f32 %v1889, 2.0
    %v1906 = vmul.f32 %v1894, 2.0
    %v1907 = vmul.f32 %v1897, 2.0
    %v1908 = vsub.f32 %v1900, %v1823
    %v1909 = vsub.f32 %v1901, %v1824
    %v1910 = vsub.f32 %v1902, %v1825
    %v1911 = vsub.f32 %v1903, %v1826
    %v1912 = vsub.f32 %v1904, %v1827
    %v1913 = vsub.f32 %v1905, %v1828
    %v1914 = vsub.f32 %v1906, %v1829
    %v1915 = vsub.f32 %v1907, %v1830
    %1916 = vst [vmem:[#allocation3 + $0x20] sm:$0xff] %v1908
    %1917 = vst [vmem:[#allocation3 + $0x48] sm:$0xff] %v1909
    %1918 = vst [vmem:[#allocation3 + $0x70] sm:$0xff] %v1910
    %1919 = vst [vmem:[#allocation3 + $0x98] sm:$0xff] %v1911
    %1920 = vst [vmem:[#allocation3 + $0xc0] sm:$0xff] %v1912
    %1921 = vst [vmem:[#allocation3 + $0xe8] sm:$0xff] %v1913
    %1922 = vst [vmem:[#allocation3 + $0x110] sm:$0xff] %v1914
    %1923 = vst [vmem:[#allocation3 + $0x138] sm:$0xff] %v1915
    %v1924 = vld [vmem:[#allocation3] sm:$0xff]
    %v1925 = vld [vmem:[#allocation3 + $0x8] sm:$0xff]
    %v1926 = vld [vmem:[#allocation3 + $0x10] sm:$0xff]
    %v1927 = vld [vmem:[#allocation3 + $0x18] sm:$0xff]
    %v1928 = vld [vmem:[#allocation3 + $0x20] sm:$0xff]
    %v1929 = vld [vmem:[#allocation3 + $0x28] sm:$0xff]
    %v1930 = vld [vmem:[#allocation3 + $0x30] sm:$0xff]
    %v1931 = vld [vmem:[#allocation3 + $0x38] sm:$0xff]
    %v1932 = vld [vmem:[#allocation3 + $0x40] sm:$0xff]
    %v1933 = vld [vmem:[#allocation3 + $0x48] sm:$0xff]
    %v1934 = vld [vmem:[#allocation3 + $0x50] sm:$0xff]
    %v1935 = vld [vmem:[#allocation3 + $0x58] sm:$0xff]
    %v1936 = vld [vmem:[#allocation3 + $0x60] sm:$0xff]
    %v1937 = vld [vmem:[#allocation3 + $0x68] sm:$0xff]
    %v1938 = vld [vmem:[#allocation3 + $0x70] sm:$0xff]
    %v1939 = vld [vmem:[#allocation3 + $0x78] sm:$0xff]
    %v1940 = vld [vmem:[#allocation3 + $0x80] sm:$0xff]
    %v1941 = vld [vmem:[#allocation3 + $0x88] sm:$0xff]
    %v1942 = vld [vmem:[#allocation3 + $0x90] sm:$0xff]
    %v1943 = vld [vmem:[#allocation3 + $0x98] sm:$0xff]
    %v1944 = vld [vmem:[#allocation3 + $0xa0] sm:$0xff]
    %v1945 = vld [vmem:[#allocation3 + $0xa8] sm:$0xff]
    %v1946 = vld [vmem:[#allocation3 + $0xb0] sm:$0xff]
    %v1947 = vld [vmem:[#allocation3 + $0xb8] sm:$0xff]
    %v1948 = vld [vmem:[#allocation3 + $0xc0] sm:$0xff]
    %v1949 = vld [vmem:[#allocation3 + $0xc8] sm:$0xff]
    %v1950 = vld [vmem:[#allocation3 + $0xd0] sm:$0xff]
    %v1951 = vld [vmem:[#allocation3 + $0xd8] sm:$0xff]
    %v1952 = vld [vmem:[#allocation3 + $0xe0] sm:$0xff]
    %v1953 = vld [vmem:[#allocation3 + $0xe8] sm:$0xff]
    %v1954 = vld [vmem:[#allocation3 + $0xf0] sm:$0xff]
    %v1955 = vld [vmem:[#allocation3 + $0xf8] sm:$0xff]
    %v1956 = vld [vmem:[#allocation3 + $0x100] sm:$0xff]
    %v1957 = vld [vmem:[#allocation3 + $0x108] sm:$0xff]
    %v1958 = vld [vmem:[#allocation3 + $0x110] sm:$0xff]
    %v1959 = vld [vmem:[#allocation3 + $0x118] sm:$0xff]
    %v1960 = vld [vmem:[#allocation3 + $0x120] sm:$0xff]
    %v1961 = vld [vmem:[#allocation3 + $0x128] sm:$0xff]
    %v1962 = vld [vmem:[#allocation3 + $0x130] sm:$0xff]
    %v1963 = vld [vmem:[#allocation3 + $0x138] sm:$0xff]
    %v1964 = vld [vmem:[%s6] sm:$0xff]
    %v1965 = vld [vmem:[%s6 + $0x8] sm:$0xff]
    %v1966 = vld [vmem:[%s6 + $0x10] sm:$0xff]
    %v1967 = vld [vmem:[%s6 + $0x18] sm:$0xff]
    %v1968 = vld [vmem:[%s6 + $0x20] sm:$0xff]
    %v1969 = vld [vmem:[%s6 + $0x28] sm:$0xff]
    %v1970 = vld [vmem:[%s6 + $0x30] sm:$0xff]
    %v1971 = vld [vmem:[%s6 + $0x38] sm:$0xff]
    %v1972 = vld [vmem:[%s6 + $0x40] sm:$0xff]
    %v1973 = vld [vmem:[%s6 + $0x48] sm:$0xff]
    %v1974 = vld [vmem:[%s6 + $0x50] sm:$0xff]
    %v1975 = vld [vmem:[%s6 + $0x58] sm:$0xff]
    %v1976 = vld [vmem:[%s6 + $0x60] sm:$0xff]
    %v1977 = vld [vmem:[%s6 + $0x68] sm:$0xff]
    %v1978 = vld [vmem:[%s6 + $0x70] sm:$0xff]
    %v1979 = vld [vmem:[%s6 + $0x78] sm:$0xff]
    %v1980 = vld [vmem:[%s6 + $0x80] sm:$0xff]
    %v1981 = vld [vmem:[%s6 + $0x88] sm:$0xff]
    %v1982 = vld [vmem:[%s6 + $0x90] sm:$0xff]
    %v1983 = vld [vmem:[%s6 + $0x98] sm:$0xff]
    %v1984 = vld [vmem:[%s6 + $0xa0] sm:$0xff]
    %v1985 = vld [vmem:[%s6 + $0xa8] sm:$0xff]
    %v1986 = vld [vmem:[%s6 + $0xb0] sm:$0xff]
    %v1987 = vld [vmem:[%s6 + $0xb8] sm:$0xff]
    %v1988 = vld [vmem:[%s6 + $0xc0] sm:$0xff]
    %v1989 = vld [vmem:[%s6 + $0xc8] sm:$0xff]
    %v1990 = vld [vmem:[%s6 + $0xd0] sm:$0xff]
    %v1991 = vld [vmem:[%s6 + $0xd8] sm:$0xff]
    %v1992 = vld [vmem:[%s6 + $0xe0] sm:$0xff]
    %v1993 = vld [vmem:[%s6 + $0xe8] sm:$0xff]
    %v1994 = vld [vmem:[%s6 + $0xf0] sm:$0xff]
    %v1995 = vld [vmem:[%s6 + $0xf8] sm:$0xff]
    %v1996 = vld [vmem:[%s6 + $0x100] sm:$0xff]
    %v1997 = vld [vmem:[%s6 + $0x108] sm:$0xff]
    %v1998 = vld [vmem:[%s6 + $0x110] sm:$0xff]
    %v1999 = vld [vmem:[%s6 + $0x118] sm:$0xff]
    %v2000 = vld [vmem:[%s6 + $0x120] sm:$0xff]
    %v2001 = vld [vmem:[%s6 + $0x128] sm:$0xff]
    %v2002 = vld [vmem:[%s6 + $0x130] sm:$0xff]
    %v2003 = vld [vmem:[%s6 + $0x138] sm:$0xff]
    %v2004 = vld [vmem:[%s6 + $0x140] sm:$0xff]
    %v2005 = vld [vmem:[%s6 + $0x148] sm:$0xff]
    %v2006 = vld [vmem:[%s6 + $0x150] sm:$0xff]
    %v2007 = vld [vmem:[%s6 + $0x158] sm:$0xff]
    %v2008 = vld [vmem:[%s6 + $0x160] sm:$0xff]
    %v2009 = vld [vmem:[%s6 + $0x168] sm:$0xff]
    %v2010 = vld [vmem:[%s6 + $0x170] sm:$0xff]
    %v2011 = vld [vmem:[%s6 + $0x178] sm:$0xff]
    %v2012 = vld [vmem:[%s6 + $0x180] sm:$0xff]
    %v2013 = vld [vmem:[%s6 + $0x188] sm:$0xff]
    %v2014 = vld [vmem:[%s6 + $0x190] sm:$0xff]
    %v2015 = vld [vmem:[%s6 + $0x198] sm:$0xff]
    %v2016 = vld [vmem:[%s6 + $0x1a0] sm:$0xff]
    %v2017 = vld [vmem:[%s6 + $0x1a8] sm:$0xff]
    %v2018 = vld [vmem:[%s6 + $0x1b0] sm:$0xff]
    %v2019 = vld [vmem:[%s6 + $0x1b8] sm:$0xff]
    %v2020 = vld [vmem:[%s6 + $0x1c0] sm:$0xff]
    %v2021 = vld [vmem:[%s6 + $0x1c8] sm:$0xff]
    %v2022 = vld [vmem:[%s6 + $0x1d0] sm:$0xff]
    %v2023 = vld [vmem:[%s6 + $0x1d8] sm:$0xff]
    %v2024 = vld [vmem:[%s6 + $0x1e0] sm:$0xff]
    %v2025 = vld [vmem:[%s6 + $0x1e8] sm:$0xff]
    %v2026 = vld [vmem:[%s6 + $0x1f0] sm:$0xff]
    %v2027 = vld [vmem:[%s6 + $0x1f8] sm:$0xff]
    %v2028 = vld [vmem:[%s6 + $0x200] sm:$0xff]
    %v2029 = vld [vmem:[%s6 + $0x208] sm:$0xff]
    %v2030 = vld [vmem:[%s6 + $0x210] sm:$0xff]
    %v2031 = vld [vmem:[%s6 + $0x218] sm:$0xff]
    %v2032 = vld [vmem:[%s6 + $0x220] sm:$0xff]
    %v2033 = vld [vmem:[%s6 + $0x228] sm:$0xff]
    %v2034 = vld [vmem:[%s6 + $0x230] sm:$0xff]
    %v2035 = vld [vmem:[%s6 + $0x238] sm:$0xff]
    %v2036 = vld [vmem:[%s6 + $0x240] sm:$0xff]
    %v2037 = vld [vmem:[%s6 + $0x248] sm:$0xff]
    %v2038 = vld [vmem:[%s6 + $0x250] sm:$0xff]
    %v2039 = vld [vmem:[%s6 + $0x258] sm:$0xff]
    %v2040 = vld [vmem:[%s6 + $0x260] sm:$0xff]
    %v2041 = vld [vmem:[%s6 + $0x268] sm:$0xff]
    %v2042 = vld [vmem:[%s6 + $0x270] sm:$0xff]
    %v2043 = vld [vmem:[%s6 + $0x278] sm:$0xff]
    %v2044 = vld [vmem:[%s6 + $0x280] sm:$0xff]
    %v2045 = vld [vmem:[%s6 + $0x288] sm:$0xff]
    %v2046 = vld [vmem:[%s6 + $0x290] sm:$0xff]
    %v2047 = vld [vmem:[%s6 + $0x298] sm:$0xff]
    %v2048 = vld [vmem:[%s6 + $0x2a0] sm:$0xff]
    %v2049 = vld [vmem:[%s6 + $0x2a8] sm:$0xff]
    %v2050 = vld [vmem:[%s6 + $0x2b0] sm:$0xff]
    %v2051 = vld [vmem:[%s6 + $0x2b8] sm:$0xff]
    %v2052 = vld [vmem:[%s6 + $0x2c0] sm:$0xff]
    %v2053 = vld [vmem:[%s6 + $0x2c8] sm:$0xff]
    %v2054 = vld [vmem:[%s6 + $0x2d0] sm:$0xff]
    %v2055 = vld [vmem:[%s6 + $0x2d8] sm:$0xff]
    %v2056 = vld [vmem:[%s6 + $0x2e0] sm:$0xff]
    %v2057 = vld [vmem:[%s6 + $0x2e8] sm:$0xff]
    %v2058 = vld [vmem:[%s6 + $0x2f0] sm:$0xff]
    %v2059 = vld [vmem:[%s6 + $0x2f8] sm:$0xff]
    %v2060 = vld [vmem:[%s6 + $0x300] sm:$0xff]
    %v2061 = vld [vmem:[%s6 + $0x308] sm:$0xff]
    %v2062 = vld [vmem:[%s6 + $0x310] sm:$0xff]
    %v2063 = vld [vmem:[%s6 + $0x318] sm:$0xff]
    %v2064 = vld [vmem:[%s6 + $0x320] sm:$0xff]
    %v2065 = vld [vmem:[%s6 + $0x328] sm:$0xff]
    %v2066 = vld [vmem:[%s6 + $0x330] sm:$0xff]
    %v2067 = vld [vmem:[%s6 + $0x338] sm:$0xff]
    %v2068 = vld [vmem:[%s6 + $0x340] sm:$0xff]
    %v2069 = vld [vmem:[%s6 + $0x348] sm:$0xff]
    %v2070 = vld [vmem:[%s6 + $0x350] sm:$0xff]
    %v2071 = vld [vmem:[%s6 + $0x358] sm:$0xff]
    %v2072 = vld [vmem:[%s6 + $0x360] sm:$0xff]
    %v2073 = vld [vmem:[%s6 + $0x368] sm:$0xff]
    %v2074 = vld [vmem:[%s6 + $0x370] sm:$0xff]
    %v2075 = vld [vmem:[%s6 + $0x378] sm:$0xff]
    %v2076 = vld [vmem:[%s6 + $0x380] sm:$0xff]
    %v2077 = vld [vmem:[%s6 + $0x388] sm:$0xff]
    %v2078 = vld [vmem:[%s6 + $0x390] sm:$0xff]
    %v2079 = vld [vmem:[%s6 + $0x398] sm:$0xff]
    %v2080 = vld [vmem:[%s6 + $0x3a0] sm:$0xff]
    %v2081 = vld [vmem:[%s6 + $0x3a8] sm:$0xff]
    %v2082 = vld [vmem:[%s6 + $0x3b0] sm:$0xff]
    %v2083 = vld [vmem:[%s6 + $0x3b8] sm:$0xff]
    %v2084 = vld [vmem:[%s6 + $0x3c0] sm:$0xff]
    %v2085 = vld [vmem:[%s6 + $0x3c8] sm:$0xff]
    %v2086 = vld [vmem:[%s6 + $0x3d0] sm:$0xff]
    %v2087 = vld [vmem:[%s6 + $0x3d8] sm:$0xff]
    %v2088 = vld [vmem:[%s6 + $0x3e0] sm:$0xff]
    %v2089 = vld [vmem:[%s6 + $0x3e8] sm:$0xff]
    %v2090 = vld [vmem:[%s6 + $0x3f0] sm:$0xff]
    %v2091 = vld [vmem:[%s6 + $0x3f8] sm:$0xff]
    %v2092 = vld [vmem:[%s6 + $0x400] sm:$0xff]
    %v2093 = vld [vmem:[%s6 + $0x408] sm:$0xff]
    %v2094 = vld [vmem:[%s6 + $0x410] sm:$0xff]
    %v2095 = vld [vmem:[%s6 + $0x418] sm:$0xff]
    %v2096 = vld [vmem:[%s6 + $0x420] sm:$0xff]
    %v2097 = vld [vmem:[%s6 + $0x428] sm:$0xff]
    %v2098 = vld [vmem:[%s6 + $0x430] sm:$0xff]
    %v2099 = vld [vmem:[%s6 + $0x438] sm:$0xff]
    %v2100 = vld [vmem:[%s6 + $0x440] sm:$0xff]
    %v2101 = vld [vmem:[%s6 + $0x448] sm:$0xff]
    %v2102 = vld [vmem:[%s6 + $0x450] sm:$0xff]
    %v2103 = vld [vmem:[%s6 + $0x458] sm:$0xff]
    %v2104 = vld [vmem:[%s6 + $0x460] sm:$0xff]
    %v2105 = vld [vmem:[%s6 + $0x468] sm:$0xff]
    %v2106 = vld [vmem:[%s6 + $0x470] sm:$0xff]
    %v2107 = vld [vmem:[%s6 + $0x478] sm:$0xff]
    %v2108 = vld [vmem:[%s6 + $0x480] sm:$0xff]
    %v2109 = vld [vmem:[%s6 + $0x488] sm:$0xff]
    %v2110 = vld [vmem:[%s6 + $0x490] sm:$0xff]
    %v2111 = vld [vmem:[%s6 + $0x498] sm:$0xff]
    %v2112 = vld [vmem:[%s6 + $0x4a0] sm:$0xff]
    %v2113 = vld [vmem:[%s6 + $0x4a8] sm:$0xff]
    %v2114 = vld [vmem:[%s6 + $0x4b0] sm:$0xff]
    %v2115 = vld [vmem:[%s6 + $0x4b8] sm:$0xff]
    %v2116 = vld [vmem:[%s6 + $0x4c0] sm:$0xff]
    %v2117 = vld [vmem:[%s6 + $0x4c8] sm:$0xff]
    %v2118 = vld [vmem:[%s6 + $0x4d0] sm:$0xff]
    %v2119 = vld [vmem:[%s6 + $0x4d8] sm:$0xff]
    %v2120 = vld [vmem:[%s6 + $0x4e0] sm:$0xff]
    %v2121 = vld [vmem:[%s6 + $0x4e8] sm:$0xff]
    %v2122 = vld [vmem:[%s6 + $0x4f0] sm:$0xff]
    %v2123 = vld [vmem:[%s6 + $0x4f8] sm:$0xff]
    %v2124 = vld [vmem:[%s7] sm:$0x3]
    %v2126 = vlaneseq
    %v2127 = vshrl.u32 %v2126, 7
    %v2128 = vsub.s32 0, %v2127
    %v2129 = vrot.slane %v2124, %v2128
    %v2130 = vlaneseq
    %v2131 = vshrl.u32 %v2130, 7
    %v2132 = vsub.s32 1, %v2131
    %v2133 = vrot.slane %v2124, %v2132
    %2136 = vmatprep.subr.mxu0 %v1965
    %2137 = vmatpush1.msra.mxu0 %v1964
    %2138 = vmatprep.subr.mxu0 %v1967
    %2139 = vmatpush1.msra.mxu0 %v1966
    %2140 = vmatprep.subr.mxu0 %v1969
    %2141 = vmatpush1.msra.mxu0 %v1968
    %2142 = vmatprep.subr.mxu0 %v1971
    %2143 = vmatpush1.msra.mxu0 %v1970
    %2144 = vmatprep.subr.mxu0 %v1973
    %2145 = vmatpush1.msra.mxu0 %v1972
    %2146 = vmatprep.subr.mxu0 %v1975
    %2147 = vmatpush1.msra.mxu0 %v1974
    %2148 = vmatprep.subr.mxu0 %v1977
    %2149 = vmatpush1.msra.mxu0 %v1976
    %2150 = vmatprep.subr.mxu0 %v1979
    %2151 = vmatpush1.msra.mxu0 %v1978
    %2152 = vmatprep.subr.mxu0 %v1981
    %2153 = vmatpush1.msra.mxu0 %v1980
    %2154 = vmatprep.subr.mxu0 %v1983
    %2155 = vmatpush1.msra.mxu0 %v1982
    %2156 = vmatprep.subr.mxu0 %v1985
    %2157 = vmatpush1.msra.mxu0 %v1984
    %2158 = vmatprep.subr.mxu0 %v1987
    %2159 = vmatpush1.msra.mxu0 %v1986
    %2160 = vmatprep.subr.mxu0 %v1989
    %2161 = vmatpush1.msra.mxu0 %v1988
    %2162 = vmatprep.subr.mxu0 %v1991
    %2163 = vmatpush1.msra.mxu0 %v1990
    %2164 = vmatprep.subr.mxu0 %v1993
    %2165 = vmatpush1.msra.mxu0 %v1992
    %2166 = vmatprep.subr.mxu0 %v1995
    %2167 = vmatpush1.msra.mxu0 %v1994
    %2168 = vmatprep.subr.mxu0 %v1997
    %2169 = vmatpush1.msra.mxu0 %v1996
    %2170 = vmatprep.subr.mxu0 %v1999
    %2171 = vmatpush1.msra.mxu0 %v1998
    %2172 = vmatprep.subr.mxu0 %v2001
    %2173 = vmatpush1.msra.mxu0 %v2000
    %2174 = vmatprep.subr.mxu0 %v2003
    %2175 = vmatpush1.msra.mxu0 %v2002
    %2176 = vmatprep.subr.mxu0 %v2005
    %2177 = vmatpush1.msra.mxu0 %v2004
    %2178 = vmatprep.subr.mxu0 %v2007
    %2179 = vmatpush1.msra.mxu0 %v2006
    %2180 = vmatprep.subr.mxu0 %v2009
    %2181 = vmatpush1.msra.mxu0 %v2008
    %2182 = vmatprep.subr.mxu0 %v2011
    %2183 = vmatpush1.msra.mxu0 %v2010
    %2184 = vmatprep.subr.mxu0 %v2013
    %2185 = vmatpush1.msra.mxu0 %v2012
    %2186 = vmatprep.subr.mxu0 %v2015
    %2187 = vmatpush1.msra.mxu0 %v2014
    %2188 = vmatprep.subr.mxu0 %v2017
    %2189 = vmatpush1.msra.mxu0 %v2016
    %2190 = vmatprep.subr.mxu0 %v2019
    %2191 = vmatpush1.msra.mxu0 %v2018
    %2192 = vmatprep.subr.mxu0 %v2021
    %2193 = vmatpush1.msra.mxu0 %v2020
    %2194 = vmatprep.subr.mxu0 %v2023
    %2195 = vmatpush1.msra.mxu0 %v2022
    %2196 = vmatprep.subr.mxu0 %v2025
    %2197 = vmatpush1.msra.mxu0 %v2024
    %2198 = vmatprep.subr.mxu0 %v2027
    %2199 = vmatpush1.msra.mxu0 %v2026
    %2200 = vmatprep.mubr.f32.mxu0 %v1925
    %2201 = vmatmul.mubr.f32.gmra.mrb[0].mxu0 %v1924
    %v2202 = vpop.f32.mrb[0].mxu0
    %v2203 = vadd.f32 %v2129, %v2202
    %v2204 = vpop.f32.mrb[0].mxu0
    %v2205 = vadd.f32 %v2133, %v2204
    %2206 = vmatprep.mubr.f32.mxu0 %v1930
    %2207 = vmatmul.mubr.f32.gmra.mrb[0].mxu0 %v1929
    %v2208 = vpop.f32.mrb[0].mxu0
    %v2209 = vadd.f32 %v2129, %v2208
    %v2210 = vpop.f32.mrb[0].mxu0
    %v2211 = vadd.f32 %v2133, %v2210
    %2212 = vmatprep.mubr.f32.mxu0 %v1935
    %2213 = vmatmul.mubr.f32.gmra.mrb[0].mxu0 %v1934
    %v2214 = vpop.f32.mrb[0].mxu0
    %v2215 = vadd.f32 %v2129, %v2214
    %v2216 = vpop.f32.mrb[0].mxu0
    %v2217 = vadd.f32 %v2133, %v2216
    %2218 = vmatprep.mubr.f32.mxu0 %v1940
    %2219 = vmatmul.mubr.f32.gmra.mrb[0].mxu0 %v1939
    %v2220 = vpop.f32.mrb[0].mxu0
    %v2221 = vadd.f32 %v2129, %v2220
    %v2222 = vpop.f32.mrb[0].mxu0
    %v2223 = vadd.f32 %v2133, %v2222
    %2224 = vmatprep.mubr.f32.mxu0 %v1945
    %2225 = vmatmul.mubr.f32.gmra.mrb[0].mxu0 %v1944
    %v2226 = vpop.f32.mrb[0].mxu0
    %v2227 = vadd.f32 %v2129, %v2226
    %v2228 = vpop.f32.mrb[0].mxu0
    %v2229 = vadd.f32 %v2133, %v2228
    %2230 = vmatprep.mubr.f32.mxu0 %v1950
    %2231 = vmatmul.mubr.f32.gmra.mrb[0].mxu0 %v1949
    %v2232 = vpop.f32.mrb[0].mxu0
    %v2233 = vadd.f32 %v2129, %v2232
    %v2234 = vpop.f32.mrb[0].mxu0
    %v2235 = vadd.f32 %v2133, %v2234
    %2236 = vmatprep.mubr.f32.mxu0 %v1955
    %2237 = vmatmul.mubr.f32.gmra.mrb[0].mxu0 %v1954
    %v2238 = vpop.f32.mrb[0].mxu0
    %v2239 = vadd.f32 %v2129, %v2238
    %v2240 = vpop.f32.mrb[0].mxu0
    %v2241 = vadd.f32 %v2133, %v2240
    %2242 = vmatprep.mubr.f32.mxu0 %v1960
    %2243 = vmatmul.mubr.f32.gmra.mrb[0].mxu0 %v1959
    %v2244 = vpop.f32.mrb[0].mxu0
    %v2245 = vadd.f32 %v2129, %v2244
    %v2246 = vpop.f32.mrb[0].mxu0
    %v2247 = vadd.f32 %v2133, %v2246
    %2248 = vdwg.mxu0
    %2249 = vmatprep.subr.mxu0 %v2029
    %2250 = vmatpush1.msra.mxu0 %v2028
    %2251 = vmatprep.subr.mxu0 %v2031
    %2252 = vmatpush1.msra.mxu0 %v2030
    %2253 = vmatprep.subr.mxu0 %v2033
    %2254 = vmatpush1.msra.mxu0 %v2032
    %2255 = vmatprep.subr.mxu0 %v2035
    %2256 = vmatpush1.msra.mxu0 %v2034
    %2257 = vmatprep.subr.mxu0 %v2037
    %2258 = vmatpush1.msra.mxu0 %v2036
    %2259 = vmatprep.subr.mxu0 %v2039
    %2260 = vmatpush1.msra.mxu0 %v2038
    %2261 = vmatprep.subr.mxu0 %v2041
    %2262 = vmatpush1.msra.mxu0 %v2040
    %2263 = vmatprep.subr.mxu0 %v2043
    %2264 = vmatpush1.msra.mxu0 %v2042
    %2265 = vmatprep.subr.mxu0 %v2045
    %2266 = vmatpush1.msra.mxu0 %v2044
    %2267 = vmatprep.subr.mxu0 %v2047
    %2268 = vmatpush1.msra.mxu0 %v2046
    %2269 = vmatprep.subr.mxu0 %v2049
    %2270 = vmatpush1.msra.mxu0 %v2048
    %2271 = vmatprep.subr.mxu0 %v2051
    %2272 = vmatpush1.msra.mxu0 %v2050
    %2273 = vmatprep.subr.mxu0 %v2053
    %2274 = vmatpush1.msra.mxu0 %v2052
    %2275 = vmatprep.subr.mxu0 %v2055
    %2276 = vmatpush1.msra.mxu0 %v2054
    %2277 = vmatprep.subr.mxu0 %v2057
    %2278 = vmatpush1.msra.mxu0 %v2056
    %2279 = vmatprep.subr.mxu0 %v2059
    %2280 = vmatpush1.msra.mxu0 %v2058
    %2281 = vmatprep.subr.mxu0 %v2061
    %2282 = vmatpush1.msra.mxu0 %v2060
    %2283 = vmatprep.subr.mxu0 %v2063
    %2284 = vmatpush1.msra.mxu0 %v2062
    %2285 = vmatprep.subr.mxu0 %v2065
    %2286 = vmatpush1.msra.mxu0 %v2064
    %2287 = vmatprep.subr.mxu0 %v2067
    %2288 = vmatpush1.msra.mxu0 %v2066
    %2289 = vmatprep.subr.mxu0 %v2069
    %2290 = vmatpush1.msra.mxu0 %v2068
    %2291 = vmatprep.subr.mxu0 %v2071
    %2292 = vmatpush1.msra.mxu0 %v2070
    %2293 = vmatprep.subr.mxu0 %v2073
    %2294 = vmatpush1.msra.mxu0 %v2072
    %2295 = vmatprep.subr.mxu0 %v2075
    %2296 = vmatpush1.msra.mxu0 %v2074
    %2297 = vmatprep.subr.mxu0 %v2077
    %2298 = vmatpush1.msra.mxu0 %v2076
    %2299 = vmatprep.subr.mxu0 %v2079
    %2300 = vmatpush1.msra.mxu0 %v2078
    %2301 = vmatprep.subr.mxu0 %v2081
    %2302 = vmatpush1.msra.mxu0 %v2080
    %2303 = vmatprep.subr.mxu0 %v2083
    %2304 = vmatpush1.msra.mxu0 %v2082
    %2305 = vmatprep.subr.mxu0 %v2085
    %2306 = vmatpush1.msra.mxu0 %v2084
    %2307 = vmatprep.subr.mxu0 %v2087
    %2308 = vmatpush1.msra.mxu0 %v2086
    %2309 = vmatprep.subr.mxu0 %v2089
    %2310 = vmatpush1.msra.mxu0 %v2088
    %2311 = vmatprep.subr.mxu0 %v2091
    %2312 = vmatpush1.msra.mxu0 %v2090
    %2313 = vmatprep.mubr.f32.mxu0 %v1927
    %2314 = vmatmul.mubr.f32.gmra.mrb[0].mxu0 %v1926
    %v2315 = vpop.f32.mrb[0].mxu0
    %v2316 = vadd.f32 %v2203, %v2315
    %v2317 = vpop.f32.mrb[0].mxu0
    %v2318 = vadd.f32 %v2205, %v2317
    %2319 = vmatprep.mubr.f32.mxu0 %v1932
    %2320 = vmatmul.mubr.f32.gmra.mrb[0].mxu0 %v1931
    %v2321 = vpop.f32.mrb[0].mxu0
    %v2322 = vadd.f32 %v2209, %v2321
    %v2323 = vpop.f32.mrb[0].mxu0
    %v2324 = vadd.f32 %v2211, %v2323
    %2325 = vmatprep.mubr.f32.mxu0 %v1937
    %2326 = vmatmul.mubr.f32.gmra.mrb[0].mxu0 %v1936
    %v2327 = vpop.f32.mrb[0].mxu0
    %v2328 = vadd.f32 %v2215, %v2327
    %v2329 = vpop.f32.mrb[0].mxu0
    %v2330 = vadd.f32 %v2217, %v2329
    %2331 = vmatprep.mubr.f32.mxu0 %v1942
    %2332 = vmatmul.mubr.f32.gmra.mrb[0].mxu0 %v1941
    %v2333 = vpop.f32.mrb[0].mxu0
    %v2334 = vadd.f32 %v2221, %v2333
    %v2335 = vpop.f32.mrb[0].mxu0
    %v2336 = vadd.f32 %v2223, %v2335
    %2337 = vmatprep.mubr.f32.mxu0 %v1947
    %2338 = vmatmul.mubr.f32.gmra.mrb[0].mxu0 %v1946
    %v2339 = vpop.f32.mrb[0].mxu0
    %v2340 = vadd.f32 %v2227, %v2339
    %v2341 = vpop.f32.mrb[0].mxu0
    %v2342 = vadd.f32 %v2229, %v2341
    %2343 = vmatprep.mubr.f32.mxu0 %v1952
    %2344 = vmatmul.mubr.f32.gmra.mrb[0].mxu0 %v1951
    %v2345 = vpop.f32.mrb[0].mxu0
    %v2346 = vadd.f32 %v2233, %v2345
    %v2347 = vpop.f32.mrb[0].mxu0
    %v2348 = vadd.f32 %v2235, %v2347
    %2349 = vmatprep.mubr.f32.mxu0 %v1957
    %2350 = vmatmul.mubr.f32.gmra.mrb[0].mxu0 %v1956
    %v2351 = vpop.f32.mrb[0].mxu0
    %v2352 = vadd.f32 %v2239, %v2351
    %v2353 = vpop.f32.mrb[0].mxu0
    %v2354 = vadd.f32 %v2241, %v2353
    %2355 = vmatprep.mubr.f32.mxu0 %v1962
    %2356 = vmatmul.mubr.f32.gmra.mrb[0].mxu0 %v1961
    %v2357 = vpop.f32.mrb[0].mxu0
    %v2358 = vadd.f32 %v2245, %v2357
    %v2359 = vpop.f32.mrb[0].mxu0
    %v2360 = vadd.f32 %v2247, %v2359
    %2361 = vdwg.mxu0
    %2362 = vmatprep.subr.mxu0 %v2093
    %2363 = vmatpush1.msra.mxu0 %v2092
    %2364 = vmatprep.subr.mxu0 %v2095
    %2365 = vmatpush1.msra.mxu0 %v2094
    %2366 = vmatprep.subr.mxu0 %v2097
    %2367 = vmatpush1.msra.mxu0 %v2096
    %2368 = vmatprep.subr.mxu0 %v2099
    %2369 = vmatpush1.msra.mxu0 %v2098
    %2370 = vmatprep.subr.mxu0 %v2101
    %2371 = vmatpush1.msra.mxu0 %v2100
    %2372 = vmatprep.subr.mxu0 %v2103
    %2373 = vmatpush1.msra.mxu0 %v2102
    %2374 = vmatprep.subr.mxu0 %v2105
    %2375 = vmatpush1.msra.mxu0 %v2104
    %2376 = vmatprep.subr.mxu0 %v2107
    %2377 = vmatpush1.msra.mxu0 %v2106
    %2378 = vmatprep.subr.mxu0 %v2109
    %2379 = vmatpush1.msra.mxu0 %v2108
    %2380 = vmatprep.subr.mxu0 %v2111
    %2381 = vmatpush1.msra.mxu0 %v2110
    %2382 = vmatprep.subr.mxu0 %v2113
    %2383 = vmatpush1.msra.mxu0 %v2112
    %2384 = vmatprep.subr.mxu0 %v2115
    %2385 = vmatpush1.msra.mxu0 %v2114
    %2386 = vmatprep.subr.mxu0 %v2117
    %2387 = vmatpush1.msra.mxu0 %v2116
    %2388 = vmatprep.subr.mxu0 %v2119
    %2389 = vmatpush1.msra.mxu0 %v2118
    %2390 = vmatprep.subr.mxu0 %v2121
    %2391 = vmatpush1.msra.mxu0 %v2120
    %2392 = vmatprep.subr.mxu0 %v2123
    %2393 = vmatpush1.msra.mxu0 %v2122
    %2394 = vmatprep.subr.mxu0 0.0
    %2395 = vmatpush1.msra.mxu0 0.0
    %2396 = vmatprep.subr.mxu0 0.0
    %2397 = vmatpush1.msra.mxu0 0.0
    %2398 = vmatprep.subr.mxu0 0.0
    %2399 = vmatpush1.msra.mxu0 0.0
    %2400 = vmatprep.subr.mxu0 0.0
    %2401 = vmatpush1.msra.mxu0 0.0
    %2402 = vmatprep.subr.mxu0 0.0
    %2403 = vmatpush1.msra.mxu0 0.0
    %2404 = vmatprep.subr.mxu0 0.0
    %2405 = vmatpush1.msra.mxu0 0.0
    %2406 = vmatprep.subr.mxu0 0.0
    %2407 = vmatpush1.msra.mxu0 0.0
    %2408 = vmatprep.subr.mxu0 0.0
    %2409 = vmatpush1.msra.mxu0 0.0
    %2410 = vmatprep.subr.mxu0 0.0
    %2411 = vmatpush1.msra.mxu0 0.0
    %2412 = vmatprep.subr.mxu0 0.0
    %2413 = vmatpush1.msra.mxu0 0.0
    %2414 = vmatprep.subr.mxu0 0.0
    %2415 = vmatpush1.msra.mxu0 0.0
    %2416 = vmatprep.subr.mxu0 0.0
    %2417 = vmatpush1.msra.mxu0 0.0
    %2418 = vmatprep.subr.mxu0 0.0
    %2419 = vmatpush1.msra.mxu0 0.0
    %2420 = vmatprep.subr.mxu0 0.0
    %2421 = vmatpush1.msra.mxu0 0.0
    %2422 = vmatprep.subr.mxu0 0.0
    %2423 = vmatpush1.msra.mxu0 0.0
    %2424 = vmatprep.subr.mxu0 0.0
    %2425 = vmatpush1.msra.mxu0 0.0
    %2426 = vmatprep.mubr.f32.mxu0 0.0
    %2427 = vmatmul.mubr.f32.gmra.mrb[0].mxu0 %v1928
    %v2428 = vpop.f32.mrb[0].mxu0
    %v2429 = vadd.f32 %v2316, %v2428
    %v2430 = vpop.f32.mrb[0].mxu0
    %v2431 = vadd.f32 %v2318, %v2430
    %2432 = vmatprep.mubr.f32.mxu0 0.0
    %2433 = vmatmul.mubr.f32.gmra.mrb[0].mxu0 %v1933
    %v2434 = vpop.f32.mrb[0].mxu0
    %v2435 = vadd.f32 %v2322, %v2434
    %v2436 = vpop.f32.mrb[0].mxu0
    %v2437 = vadd.f32 %v2324, %v2436
    %2438 = vmatprep.mubr.f32.mxu0 0.0
    %2439 = vmatmul.mubr.f32.gmra.mrb[0].mxu0 %v1938
    %v2440 = vpop.f32.mrb[0].mxu0
    %v2441 = vadd.f32 %v2328, %v2440
    %v2442 = vpop.f32.mrb[0].mxu0
    %v2443 = vadd.f32 %v2330, %v2442
    %2444 = vmatprep.mubr.f32.mxu0 0.0
    %2445 = vmatmul.mubr.f32.gmra.mrb[0].mxu0 %v1943
    %v2446 = vpop.f32.mrb[0].mxu0
    %v2447 = vadd.f32 %v2334, %v2446
    %v2448 = vpop.f32.mrb[0].mxu0
    %v2449 = vadd.f32 %v2336, %v2448
    %2450 = vmatprep.mubr.f32.mxu0 0.0
    %2451 = vmatmul.mubr.f32.gmra.mrb[0].mxu0 %v1948
    %v2452 = vpop.f32.mrb[0].mxu0
    %v2453 = vadd.f32 %v2340, %v2452
    %v2454 = vpop.f32.mrb[0].mxu0
    %v2455 = vadd.f32 %v2342, %v2454
    %2456 = vmatprep.mubr.f32.mxu0 0.0
    %2457 = vmatmul.mubr.f32.gmra.mrb[0].mxu0 %v1953
    %v2458 = vpop.f32.mrb[0].mxu0
    %v2459 = vadd.f32 %v2346, %v2458
    %v2460 = vpop.f32.mrb[0].mxu0
    %v2461 = vadd.f32 %v2348, %v2460
    %2462 = vmatprep.mubr.f32.mxu0 0.0
    %2463 = vmatmul.mubr.f32.gmra.mrb[0].mxu0 %v1958
    %v2464 = vpop.f32.mrb[0].mxu0
    %v2465 = vadd.f32 %v2352, %v2464
    %v2466 = vpop.f32.mrb[0].mxu0
    %v2467 = vadd.f32 %v2354, %v2466
    %2468 = vmatprep.mubr.f32.mxu0 0.0
    %2469 = vmatmul.mubr.f32.gmra.mrb[0].mxu0 %v1963
    %v2470 = vpop.f32.mrb[0].mxu0
    %v2471 = vadd.f32 %v2358, %v2470
    %v2472 = vpop.f32.mrb[0].mxu0
    %v2473 = vadd.f32 %v2360, %v2472
    %2474 = vdwg.mxu0
    %v2475 = vmax.f32 %v2429, 0.0
    %v2476 = vmax.f32 %v2431, 0.0
    %v2477 = vmax.f32 %v2435, 0.0
    %v2478 = vmax.f32 %v2437, 0.0
    %v2479 = vmax.f32 %v2441, 0.0
    %v2480 = vmax.f32 %v2443, 0.0
    %v2481 = vmax.f32 %v2447, 0.0
    %v2482 = vmax.f32 %v2449, 0.0
    %v2483 = vmax.f32 %v2453, 0.0
    %v2484 = vmax.f32 %v2455, 0.0
    %v2485 = vmax.f32 %v2459, 0.0
    %v2486 = vmax.f32 %v2461, 0.0
    %v2487 = vmax.f32 %v2465, 0.0
    %v2488 = vmax.f32 %v2467, 0.0
    %v2489 = vmax.f32 %v2471, 0.0
    %v2490 = vmax.f32 %v2473, 0.0
    %v2491 = vld [vmem:[%s10] sm:$0x3]
    %v2493 = vsel %vm139, %v2491, 0
    %2495 = vmatprep.subr.mxu0 %v2476
    %2496 = vmatpush1.msra.mxu0 %v2475
    %2497 = vmatprep.subr.mxu0 %v2478
    %2498 = vmatpush1.msra.mxu0 %v2477
    %2499 = vmatprep.subr.mxu0 %v2480
    %2500 = vmatpush1.msra.mxu0 %v2479
    %2501 = vmatprep.subr.mxu0 %v2482
    %2502 = vmatpush1.msra.mxu0 %v2481
    %2503 = vmatprep.subr.mxu0 %v2484
    %2504 = vmatpush1.msra.mxu0 %v2483
    %2505 = vmatprep.subr.mxu0 %v2486
    %2506 = vmatpush1.msra.mxu0 %v2485
    %2507 = vmatprep.subr.mxu0 %v2488
    %2508 = vmatpush1.msra.mxu0 %v2487
    %2509 = vmatprep.subr.mxu0 %v2490
    %2510 = vmatpush1.msra.mxu0 %v2489
    %2511 = vmatprep.subr.mxu0 0.0
    %2512 = vmatpush1.msra.mxu0 0.0
    %2513 = vmatprep.subr.mxu0 0.0
    %2514 = vmatpush1.msra.mxu0 0.0
    %2515 = vmatprep.subr.mxu0 0.0
    %2516 = vmatpush1.msra.mxu0 0.0
    %2517 = vmatprep.subr.mxu0 0.0
    %2518 = vmatpush1.msra.mxu0 0.0
    %2519 = vmatprep.subr.mxu0 0.0
    %2520 = vmatpush1.msra.mxu0 0.0
    %2521 = vmatprep.subr.mxu0 0.0
    %2522 = vmatpush1.msra.mxu0 0.0
    %2523 = vmatprep.subr.mxu0 0.0
    %2524 = vmatpush1.msra.mxu0 0.0
    %2525 = vmatprep.subr.mxu0 0.0
    %2526 = vmatpush1.msra.mxu0 0.0
    %2527 = vmatprep.subr.mxu0 0.0
    %2528 = vmatpush1.msra.mxu0 0.0
    %2529 = vmatprep.subr.mxu0 0.0
    %2530 = vmatpush1.msra.mxu0 0.0
    %2531 = vmatprep.subr.mxu0 0.0
    %2532 = vmatpush1.msra.mxu0 0.0
    %2533 = vmatprep.subr.mxu0 0.0
    %2534 = vmatpush1.msra.mxu0 0.0
    %2535 = vmatprep.subr.mxu0 0.0
    %2536 = vmatpush1.msra.mxu0 0.0
    %2537 = vmatprep.subr.mxu0 0.0
    %2538 = vmatpush1.msra.mxu0 0.0
    %2539 = vmatprep.subr.mxu0 0.0
    %2540 = vmatpush1.msra.mxu0 0.0
    %2541 = vmatprep.subr.mxu0 0.0
    %2542 = vmatpush1.msra.mxu0 0.0
    %2543 = vmatprep.subr.mxu0 0.0
    %2544 = vmatpush1.msra.mxu0 0.0
    %2545 = vmatprep.subr.mxu0 0.0
    %2546 = vmatpush1.msra.mxu0 0.0
    %2547 = vmatprep.subr.mxu0 0.0
    %2548 = vmatpush1.msra.mxu0 0.0
    %2549 = vmatprep.subr.mxu0 0.0
    %2550 = vmatpush1.msra.mxu0 0.0
    %2551 = vmatprep.subr.mxu0 0.0
    %2552 = vmatpush1.msra.mxu0 0.0
    %2553 = vmatprep.subr.mxu0 0.0
    %2554 = vmatpush1.msra.mxu0 0.0
    %2555 = vmatprep.subr.mxu0 0.0
    %2556 = vmatpush1.msra.mxu0 0.0
    %2557 = vmatprep.subr.mxu0 0.0
    %2558 = vmatpush1.msra.mxu0 0.0
    %2559 = vmatprep.mubr.f32.mxu0 0.0
    %2560 = vmatmul.mubr.f32.gmra.mrb[0].mxu0 %v2493
    %v2561 = vpop.f32.mrb[0].mxu0
    %v2562 = vadd.f32 0.0, %v2561
    %v2563 = vpop.f32.mrb[0].mxu0
    %v2564 = vadd.f32 0.0, %v2563
    %2565 = vdwg.mxu0
    %v2566 = vld [vmem:[%s11 + $0x100] sm:$0xff]
    %v2567 = vld [vmem:[%s11 + $0x108] sm:$0xff]
    %v2568 = vld [vmem:[%s11 + $0x110] sm:$0xff]
    %v2569 = vld [vmem:[%s11 + $0x118] sm:$0xff]
    %v2570 = vld [vmem:[%s11 + $0x120] sm:$0xff]
    %v2571 = vld [vmem:[%s11 + $0x128] sm:$0xff]
    %v2572 = vld [vmem:[%s11 + $0x130] sm:$0xff]
    %v2573 = vld [vmem:[%s11 + $0x138] sm:$0xff]
    %v2574 = vld [vmem:[%s11 + $0x140] sm:$0xff]
    %v2575 = vld [vmem:[%s11 + $0x148] sm:$0xff]
    %v2576 = vld [vmem:[%s11 + $0x150] sm:$0xff]
    %v2577 = vld [vmem:[%s11 + $0x158] sm:$0xff]
    %v2578 = vld [vmem:[%s11 + $0x160] sm:$0xff]
    %v2579 = vld [vmem:[%s11 + $0x168] sm:$0xff]
    %v2580 = vld [vmem:[%s11 + $0x170] sm:$0xff]
    %v2581 = vld [vmem:[%s11 + $0x178] sm:$0xff]
    %v2582 = vld [vmem:[%s11 + $0x180] sm:$0xff]
    %v2583 = vld [vmem:[%s11 + $0x188] sm:$0xff]
    %v2584 = vld [vmem:[%s11 + $0x190] sm:$0xff]
    %v2585 = vld [vmem:[%s11 + $0x198] sm:$0xff]
    %v2586 = vld [vmem:[%s11 + $0x1a0] sm:$0xff]
    %v2587 = vld [vmem:[%s11 + $0x1a8] sm:$0xff]
    %v2588 = vld [vmem:[%s11 + $0x1b0] sm:$0xff]
    %v2589 = vld [vmem:[%s11 + $0x1b8] sm:$0xff]
    %v2590 = vld [vmem:[%s11 + $0x1c0] sm:$0xff]
    %v2591 = vld [vmem:[%s11 + $0x1c8] sm:$0xff]
    %v2592 = vld [vmem:[%s11 + $0x1d0] sm:$0xff]
    %v2593 = vld [vmem:[%s11 + $0x1d8] sm:$0xff]
    %v2594 = vld [vmem:[%s11 + $0x1e0] sm:$0xff]
    %v2595 = vld [vmem:[%s11 + $0x1e8] sm:$0xff]
    %v2596 = vld [vmem:[%s11 + $0x1f0] sm:$0xff]
    %v2597 = vld [vmem:[%s11 + $0x1f8] sm:$0xff]
    %v2598 = vld [vmem:[#allocation2] sm:$0xff]
    %v2599 = vld [vmem:[#allocation2 + $0x8] sm:$0xff]
    %v2600 = vld [vmem:[#allocation2 + $0x10] sm:$0xff]
    %v2601 = vld [vmem:[#allocation2 + $0x18] sm:$0xff]
    %v2602 = vld [vmem:[#allocation2 + $0x20] sm:$0xff]
    %v2603 = vld [vmem:[#allocation2 + $0x28] sm:$0xff]
    %v2604 = vld [vmem:[#allocation2 + $0x30] sm:$0xff]
    %v2605 = vld [vmem:[#allocation2 + $0x38] sm:$0xff]
    %2606 = vst [vmem:[#allocation3] sm:$0xff] %v2598
    %2607 = vst [vmem:[#allocation3 + $0x28] sm:$0xff] %v2599
    %2608 = vst [vmem:[#allocation3 + $0x50] sm:$0xff] %v2600
    %2609 = vst [vmem:[#allocation3 + $0x78] sm:$0xff] %v2601
    %2610 = vst [vmem:[#allocation3 + $0xa0] sm:$0xff] %v2602
    %2611 = vst [vmem:[#allocation3 + $0xc8] sm:$0xff] %v2603
    %2612 = vst [vmem:[#allocation3 + $0xf0] sm:$0xff] %v2604
    %2613 = vst [vmem:[#allocation3 + $0x118] sm:$0xff] %v2605
    %v2614 = vpack.c.bf16 %v2599, %v2598
    %v2615 = vpack.c.bf16 %v2601, %v2600
    %v2616 = vpack.c.bf16 %v2603, %v2602
    %v2617 = vpack.c.bf16 %v2605, %v2604
    %2618 = vmatprep.subr.bf16.mxu0 0
    %2619 = vmatpush1.bf16.msra.mxu0 %v2614
    %2620 = vmatprep.subr.bf16.mxu0 0
    %2621 = vmatpush1.bf16.msra.mxu0 %v2615
    %2622 = vmatprep.subr.bf16.mxu0 0
    %2623 = vmatpush1.bf16.msra.mxu0 %v2616
    %2624 = vmatprep.subr.bf16.mxu0 0
    %2625 = vmatpush1.bf16.msra.mxu0 %v2617
    %2626 = vmatprep.subr.bf16.mxu0 0
    %2627 = vmatpush1.bf16.msra.mxu0 0
    %2628 = vmatprep.subr.bf16.mxu0 0
    %2629 = vmatpush1.bf16.msra.mxu0 0
    %2630 = vmatprep.subr.bf16.mxu0 0
    %2631 = vmatpush1.bf16.msra.mxu0 0
    %2632 = vmatprep.subr.bf16.mxu0 0
    %2633 = vmatpush1.bf16.msra.mxu0 0
    %2634 = vmatprep.subr.bf16.mxu0 0
    %2635 = vmatpush1.bf16.msra.mxu0 0
    %2636 = vmatprep.subr.bf16.mxu0 0
    %2637 = vmatpush1.bf16.msra.mxu0 0
    %2638 = vmatprep.subr.bf16.mxu0 0
    %2639 = vmatpush1.bf16.msra.mxu0 0
    %2640 = vmatprep.subr.bf16.mxu0 0
    %2641 = vmatpush1.bf16.msra.mxu0 0
    %2642 = vmatprep.subr.bf16.mxu0 0
    %2643 = vmatpush1.bf16.msra.mxu0 0
    %2644 = vmatprep.subr.bf16.mxu0 0
    %2645 = vmatpush1.bf16.msra.mxu0 0
    %2646 = vmatprep.subr.bf16.mxu0 0
    %2647 = vmatpush1.bf16.msra.mxu0 0
    %2648 = vmatprep.subr.bf16.mxu0 0
    %2649 = vmatpush1.bf16.msra.mxu0 0
    %2650 = vmatprep.mubr.bf16.mxu0 0
    %2651 = vmatmul.mubr.bf16.gmra.mrb[0].mxu0 %v833
    %v2652 = vpop.f32.mrb[0].mxu0
    %v2653 = vadd.f32 0.0, %v2652
    %v2654 = vpop.f32.mrb[0].mxu0
    %v2655 = vpop.f32.mrb[0].mxu0
    %v2656 = vadd.f32 0.0, %v2655
    %v2657 = vpop.f32.mrb[0].mxu0
    %2658 = vmatprep.mubr.bf16.mxu0 0
    %2659 = vmatmul.mubr.bf16.gmra.mrb[0].mxu0 %v836
    %v2660 = vpop.f32.mrb[0].mxu0
    %v2661 = vadd.f32 0.0, %v2660
    %v2662 = vpop.f32.mrb[0].mxu0
    %v2663 = vpop.f32.mrb[0].mxu0
    %v2664 = vadd.f32 0.0, %v2663
    %v2665 = vpop.f32.mrb[0].mxu0
    %2666 = vmatprep.mubr.bf16.mxu0 0
    %2667 = vmatmul.mubr.bf16.gmra.mrb[0].mxu0 %v839
    %v2668 = vpop.f32.mrb[0].mxu0
    %v2669 = vadd.f32 0.0, %v2668
    %v2670 = vpop.f32.mrb[0].mxu0
    %v2671 = vpop.f32.mrb[0].mxu0
    %v2672 = vadd.f32 0.0, %v2671
    %v2673 = vpop.f32.mrb[0].mxu0
    %2674 = vmatprep.mubr.bf16.mxu0 0
    %2675 = vmatmul.mubr.bf16.gmra.mrb[0].mxu0 %v842
    %v2676 = vpop.f32.mrb[0].mxu0
    %v2677 = vadd.f32 0.0, %v2676
    %v2678 = vpop.f32.mrb[0].mxu0
    %v2679 = vpop.f32.mrb[0].mxu0
    %v2680 = vadd.f32 0.0, %v2679
    %v2681 = vpop.f32.mrb[0].mxu0
    %2682 = vdwg.mxu0
    %2683 = vst [vmem:[#allocation3 + $0x8] sm:$0xff] %v2653
    %2684 = vst [vmem:[#allocation3 + $0x30] sm:$0xff] %v2656
    %2685 = vst [vmem:[#allocation3 + $0x58] sm:$0xff] %v2661
    %2686 = vst [vmem:[#allocation3 + $0x80] sm:$0xff] %v2664
    %2687 = vst [vmem:[#allocation3 + $0xa8] sm:$0xff] %v2669
    %2688 = vst [vmem:[#allocation3 + $0xd0] sm:$0xff] %v2672
    %2689 = vst [vmem:[#allocation3 + $0xf8] sm:$0xff] %v2677
    %2690 = vst [vmem:[#allocation3 + $0x120] sm:$0xff] %v2680
    %v2691 = vld [vmem:[#allocation3 + $0x8] sm:$0xff]
    %v2692 = vld [vmem:[#allocation3 + $0x30] sm:$0xff]
    %v2693 = vld [vmem:[#allocation3 + $0x58] sm:$0xff]
    %v2694 = vld [vmem:[#allocation3 + $0x80] sm:$0xff]
    %v2695 = vld [vmem:[#allocation3 + $0xa8] sm:$0xff]
    %v2696 = vld [vmem:[#allocation3 + $0xd0] sm:$0xff]
    %v2697 = vld [vmem:[#allocation3 + $0xf8] sm:$0xff]
    %v2698 = vld [vmem:[#allocation3 + $0x120] sm:$0xff]
    %v2699 = vld [vmem:[#allocation3] sm:$0xff]
    %v2700 = vld [vmem:[#allocation3 + $0x28] sm:$0xff]
    %v2701 = vld [vmem:[#allocation3 + $0x50] sm:$0xff]
    %v2702 = vld [vmem:[#allocation3 + $0x78] sm:$0xff]
    %v2703 = vld [vmem:[#allocation3 + $0xa0] sm:$0xff]
    %v2704 = vld [vmem:[#allocation3 + $0xc8] sm:$0xff]
    %v2705 = vld [vmem:[#allocation3 + $0xf0] sm:$0xff]
    %v2706 = vld [vmem:[#allocation3 + $0x118] sm:$0xff]
    %v2707 = vpack.c.bf16 %v2692, %v2691
    %v2708 = vpack.c.bf16 %v2694, %v2693
    %v2709 = vpack.c.bf16 %v2696, %v2695
    %v2710 = vpack.c.bf16 %v2698, %v2697
    %2711 = vmatprep.subr.bf16.mxu0 0
    %2712 = vmatpush1.bf16.msra.mxu0 %v2707
    %2713 = vmatprep.subr.bf16.mxu0 0
    %2714 = vmatpush1.bf16.msra.mxu0 %v2708
    %2715 = vmatprep.subr.bf16.mxu0 0
    %2716 = vmatpush1.bf16.msra.mxu0 %v2709
    %2717 = vmatprep.subr.bf16.mxu0 0
    %2718 = vmatpush1.bf16.msra.mxu0 %v2710
    %2719 = vmatprep.subr.bf16.mxu0 0
    %2720 = vmatpush1.bf16.msra.mxu0 0
    %2721 = vmatprep.subr.bf16.mxu0 0
    %2722 = vmatpush1.bf16.msra.mxu0 0
    %2723 = vmatprep.subr.bf16.mxu0 0
    %2724 = vmatpush1.bf16.msra.mxu0 0
    %2725 = vmatprep.subr.bf16.mxu0 0
    %2726 = vmatpush1.bf16.msra.mxu0 0
    %2727 = vmatprep.subr.bf16.mxu0 0
    %2728 = vmatpush1.bf16.msra.mxu0 0
    %2729 = vmatprep.subr.bf16.mxu0 0
    %2730 = vmatpush1.bf16.msra.mxu0 0
    %2731 = vmatprep.subr.bf16.mxu0 0
    %2732 = vmatpush1.bf16.msra.mxu0 0
    %2733 = vmatprep.subr.bf16.mxu0 0
    %2734 = vmatpush1.bf16.msra.mxu0 0
    %2735 = vmatprep.subr.bf16.mxu0 0
    %2736 = vmatpush1.bf16.msra.mxu0 0
    %2737 = vmatprep.subr.bf16.mxu0 0
    %2738 = vmatpush1.bf16.msra.mxu0 0
    %2739 = vmatprep.subr.bf16.mxu0 0
    %2740 = vmatpush1.bf16.msra.mxu0 0
    %2741 = vmatprep.subr.bf16.mxu0 0
    %2742 = vmatpush1.bf16.msra.mxu0 0
    %2743 = vmatprep.mubr.bf16.mxu0 0
    %2744 = vmatmul.mubr.bf16.gmra.mrb[0].mxu0 %v833
    %v2745 = vpop.f32.mrb[0].mxu0
    %v2746 = vadd.f32 0.0, %v2745
    %v2747 = vpop.f32.mrb[0].mxu0
    %v2748 = vpop.f32.mrb[0].mxu0
    %v2749 = vadd.f32 0.0, %v2748
    %v2750 = vpop.f32.mrb[0].mxu0
    %2751 = vmatprep.mubr.bf16.mxu0 0
    %2752 = vmatmul.mubr.bf16.gmra.mrb[0].mxu0 %v836
    %v2753 = vpop.f32.mrb[0].mxu0
    %v2754 = vadd.f32 0.0, %v2753
    %v2755 = vpop.f32.mrb[0].mxu0
    %v2756 = vpop.f32.mrb[0].mxu0
    %v2757 = vadd.f32 0.0, %v2756
    %v2758 = vpop.f32.mrb[0].mxu0
    %2759 = vmatprep.mubr.bf16.mxu0 0
    %2760 = vmatmul.mubr.bf16.gmra.mrb[0].mxu0 %v839
    %v2761 = vpop.f32.mrb[0].mxu0
    %v2762 = vadd.f32 0.0, %v2761
    %v2763 = vpop.f32.mrb[0].mxu0
    %v2764 = vpop.f32.mrb[0].mxu0
    %v2765 = vadd.f32 0.0, %v2764
    %v2766 = vpop.f32.mrb[0].mxu0
    %2767 = vmatprep.mubr.bf16.mxu0 0
    %2768 = vmatmul.mubr.bf16.gmra.mrb[0].mxu0 %v842
    %v2769 = vpop.f32.mrb[0].mxu0
    %v2770 = vadd.f32 0.0, %v2769
    %v2771 = vpop.f32.mrb[0].mxu0
    %v2772 = vpop.f32.mrb[0].mxu0
    %v2773 = vadd.f32 0.0, %v2772
    %v2774 = vpop.f32.mrb[0].mxu0
    %2775 = vdwg.mxu0
    %v2776 = vmul.f32 %v2746, 2.0
    %v2777 = vmul.f32 %v2749, 2.0
    %v2778 = vmul.f32 %v2754, 2.0
    %v2779 = vmul.f32 %v2757, 2.0
    %v2780 = vmul.f32 %v2762, 2.0
    %v2781 = vmul.f32 %v2765, 2.0
    %v2782 = vmul.f32 %v2770, 2.0
    %v2783 = vmul.f32 %v2773, 2.0
    %v2784 = vsub.f32 %v2776, %v2699
    %v2785 = vsub.f32 %v2777, %v2700
    %v2786 = vsub.f32 %v2778, %v2701
    %v2787 = vsub.f32 %v2779, %v2702
    %v2788 = vsub.f32 %v2780, %v2703
    %v2789 = vsub.f32 %v2781, %v2704
    %v2790 = vsub.f32 %v2782, %v2705
    %v2791 = vsub.f32 %v2783, %v2706
    %2792 = vst [vmem:[#allocation3 + $0x10] sm:$0xff] %v2784
    %2793 = vst [vmem:[#allocation3 + $0x38] sm:$0xff] %v2785
    %2794 = vst [vmem:[#allocation3 + $0x60] sm:$0xff] %v2786
    %2795 = vst [vmem:[#allocation3 + $0x88] sm:$0xff] %v2787
    %2796 = vst [vmem:[#allocation3 + $0xb0] sm:$0xff] %v2788
    %2797 = vst [vmem:[#allocation3 + $0xd8] sm:$0xff] %v2789
    %2798 = vst [vmem:[#allocation3 + $0x100] sm:$0xff] %v2790
    %2799 = vst [vmem:[#allocation3 + $0x128] sm:$0xff] %v2791
    %v2800 = vld [vmem:[#allocation3 + $0x10] sm:$0xff]
    %v2801 = vld [vmem:[#allocation3 + $0x38] sm:$0xff]
    %v2802 = vld [vmem:[#allocation3 + $0x60] sm:$0xff]
    %v2803 = vld [vmem:[#allocation3 + $0x88] sm:$0xff]
    %v2804 = vld [vmem:[#allocation3 + $0xb0] sm:$0xff]
    %v2805 = vld [vmem:[#allocation3 + $0xd8] sm:$0xff]
    %v2806 = vld [vmem:[#allocation3 + $0x100] sm:$0xff]
    %v2807 = vld [vmem:[#allocation3 + $0x128] sm:$0xff]
    %v2808 = vld [vmem:[#allocation3 + $0x8] sm:$0xff]
    %v2809 = vld [vmem:[#allocation3 + $0x30] sm:$0xff]
    %v2810 = vld [vmem:[#allocation3 + $0x58] sm:$0xff]
    %v2811 = vld [vmem:[#allocation3 + $0x80] sm:$0xff]
    %v2812 = vld [vmem:[#allocation3 + $0xa8] sm:$0xff]
    %v2813 = vld [vmem:[#allocation3 + $0xd0] sm:$0xff]
    %v2814 = vld [vmem:[#allocation3 + $0xf8] sm:$0xff]
    %v2815 = vld [vmem:[#allocation3 + $0x120] sm:$0xff]
    %v2816 = vpack.c.bf16 %v2801, %v2800
    %v2817 = vpack.c.bf16 %v2803, %v2802
    %v2818 = vpack.c.bf16 %v2805, %v2804
    %v2819 = vpack.c.bf16 %v2807, %v2806
    %2820 = vmatprep.subr.bf16.mxu0 0
    %2821 = vmatpush1.bf16.msra.mxu0 %v2816
    %2822 = vmatprep.subr.bf16.mxu0 0
    %2823 = vmatpush1.bf16.msra.mxu0 %v2817
    %2824 = vmatprep.subr.bf16.mxu0 0
    %2825 = vmatpush1.bf16.msra.mxu0 %v2818
    %2826 = vmatprep.subr.bf16.mxu0 0
    %2827 = vmatpush1.bf16.msra.mxu0 %v2819
    %2828 = vmatprep.subr.bf16.mxu0 0
    %2829 = vmatpush1.bf16.msra.mxu0 0
    %2830 = vmatprep.subr.bf16.mxu0 0
    %2831 = vmatpush1.bf16.msra.mxu0 0
    %2832 = vmatprep.subr.bf16.mxu0 0
    %2833 = vmatpush1.bf16.msra.mxu0 0
    %2834 = vmatprep.subr.bf16.mxu0 0
    %2835 = vmatpush1.bf16.msra.mxu0 0
    %2836 = vmatprep.subr.bf16.mxu0 0
    %2837 = vmatpush1.bf16.msra.mxu0 0
    %2838 = vmatprep.subr.bf16.mxu0 0
    %2839 = vmatpush1.bf16.msra.mxu0 0
    %2840 = vmatprep.subr.bf16.mxu0 0
    %2841 = vmatpush1.bf16.msra.mxu0 0
    %2842 = vmatprep.subr.bf16.mxu0 0
    %2843 = vmatpush1.bf16.msra.mxu0 0
    %2844 = vmatprep.subr.bf16.mxu0 0
    %2845 = vmatpush1.bf16.msra.mxu0 0
    %2846 = vmatprep.subr.bf16.mxu0 0
    %2847 = vmatpush1.bf16.msra.mxu0 0
    %2848 = vmatprep.subr.bf16.mxu0 0
    %2849 = vmatpush1.bf16.msra.mxu0 0
    %2850 = vmatprep.subr.bf16.mxu0 0
    %2851 = vmatpush1.bf16.msra.mxu0 0
    %2852 = vmatprep.mubr.bf16.mxu0 0
    %2853 = vmatmul.mubr.bf16.gmra.mrb[0].mxu0 %v833
    %v2854 = vpop.f32.mrb[0].mxu0
    %v2855 = vadd.f32 0.0, %v2854
    %v2856 = vpop.f32.mrb[0].mxu0
    %v2857 = vpop.f32.mrb[0].mxu0
    %v2858 = vadd.f32 0.0, %v2857
    %v2859 = vpop.f32.mrb[0].mxu0
    %2860 = vmatprep.mubr.bf16.mxu0 0
    %2861 = vmatmul.mubr.bf16.gmra.mrb[0].mxu0 %v836
    %v2862 = vpop.f32.mrb[0].mxu0
    %v2863 = vadd.f32 0.0, %v2862
    %v2864 = vpop.f32.mrb[0].mxu0
    %v2865 = vpop.f32.mrb[0].mxu0
    %v2866 = vadd.f32 0.0, %v2865
    %v2867 = vpop.f32.mrb[0].mxu0
    %2868 = vmatprep.mubr.bf16.mxu0 0
    %2869 = vmatmul.mubr.bf16.gmra.mrb[0].mxu0 %v839
    %v2870 = vpop.f32.mrb[0].mxu0
    %v2871 = vadd.f32 0.0, %v2870
    %v2872 = vpop.f32.mrb[0].mxu0
    %v2873 = vpop.f32.mrb[0].mxu0
    %v2874 = vadd.f32 0.0, %v2873
    %v2875 = vpop.f32.mrb[0].mxu0
    %2876 = vmatprep.mubr.bf16.mxu0 0
    %2877 = vmatmul.mubr.bf16.gmra.mrb[0].mxu0 %v842
    %v2878 = vpop.f32.mrb[0].mxu0
    %v2879 = vadd.f32 0.0, %v2878
    %v2880 = vpop.f32.mrb[0].mxu0
    %v2881 = vpop.f32.mrb[0].mxu0
    %v2882 = vadd.f32 0.0, %v2881
    %v2883 = vpop.f32.mrb[0].mxu0
    %2884 = vdwg.mxu0
    %v2885 = vmul.f32 %v2855, 2.0
    %v2886 = vmul.f32 %v2858, 2.0
    %v2887 = vmul.f32 %v2863, 2.0
    %v2888 = vmul.f32 %v2866, 2.0
    %v2889 = vmul.f32 %v2871, 2.0
    %v2890 = vmul.f32 %v2874, 2.0
    %v2891 = vmul.f32 %v2879, 2.0
    %v2892 = vmul.f32 %v2882, 2.0
    %v2893 = vsub.f32 %v2885, %v2808
    %v2894 = vsub.f32 %v2886, %v2809
    %v2895 = vsub.f32 %v2887, %v2810
    %v2896 = vsub.f32 %v2888, %v2811
    %v2897 = vsub.f32 %v2889, %v2812
    %v2898 = vsub.f32 %v2890, %v2813
    %v2899 = vsub.f32 %v2891, %v2814
    %v2900 = vsub.f32 %v2892, %v2815
    %2901 = vst [vmem:[#allocation3 + $0x18] sm:$0xff] %v2893
    %2902 = vst [vmem:[#allocation3 + $0x40] sm:$0xff] %v2894
    %2903 = vst [vmem:[#allocation3 + $0x68] sm:$0xff] %v2895
    %2904 = vst [vmem:[#allocation3 + $0x90] sm:$0xff] %v2896
    %2905 = vst [vmem:[#allocation3 + $0xb8] sm:$0xff] %v2897
    %2906 = vst [vmem:[#allocation3 + $0xe0] sm:$0xff] %v2898
    %2907 = vst [vmem:[#allocation3 + $0x108] sm:$0xff] %v2899
    %2908 = vst [vmem:[#allocation3 + $0x130] sm:$0xff] %v2900
    %v2909 = vld [vmem:[#allocation3 + $0x18] sm:$0xff]
    %v2910 = vld [vmem:[#allocation3 + $0x40] sm:$0xff]
    %v2911 = vld [vmem:[#allocation3 + $0x68] sm:$0xff]
    %v2912 = vld [vmem:[#allocation3 + $0x90] sm:$0xff]
    %v2913 = vld [vmem:[#allocation3 + $0xb8] sm:$0xff]
    %v2914 = vld [vmem:[#allocation3 + $0xe0] sm:$0xff]
    %v2915 = vld [vmem:[#allocation3 + $0x108] sm:$0xff]
    %v2916 = vld [vmem:[#allocation3 + $0x130] sm:$0xff]
    %v2917 = vld [vmem:[#allocation3 + $0x10] sm:$0xff]
    %v2918 = vld [vmem:[#allocation3 + $0x38] sm:$0xff]
    %v2919 = vld [vmem:[#allocation3 + $0x60] sm:$0xff]
    %v2920 = vld [vmem:[#allocation3 + $0x88] sm:$0xff]
    %v2921 = vld [vmem:[#allocation3 + $0xb0] sm:$0xff]
    %v2922 = vld [vmem:[#allocation3 + $0xd8] sm:$0xff]
    %v2923 = vld [vmem:[#allocation3 + $0x100] sm:$0xff]
    %v2924 = vld [vmem:[#allocation3 + $0x128] sm:$0xff]
    %v2925 = vpack.c.bf16 %v2910, %v2909
    %v2926 = vpack.c.bf16 %v2912, %v2911
    %v2927 = vpack.c.bf16 %v2914, %v2913
    %v2928 = vpack.c.bf16 %v2916, %v2915
    %2929 = vmatprep.subr.bf16.mxu0 0
    %2930 = vmatpush1.bf16.msra.mxu0 %v2925
    %2931 = vmatprep.subr.bf16.mxu0 0
    %2932 = vmatpush1.bf16.msra.mxu0 %v2926
    %2933 = vmatprep.subr.bf16.mxu0 0
    %2934 = vmatpush1.bf16.msra.mxu0 %v2927
    %2935 = vmatprep.subr.bf16.mxu0 0
    %2936 = vmatpush1.bf16.msra.mxu0 %v2928
    %2937 = vmatprep.subr.bf16.mxu0 0
    %2938 = vmatpush1.bf16.msra.mxu0 0
    %2939 = vmatprep.subr.bf16.mxu0 0
    %2940 = vmatpush1.bf16.msra.mxu0 0
    %2941 = vmatprep.subr.bf16.mxu0 0
    %2942 = vmatpush1.bf16.msra.mxu0 0
    %2943 = vmatprep.subr.bf16.mxu0 0
    %2944 = vmatpush1.bf16.msra.mxu0 0
    %2945 = vmatprep.subr.bf16.mxu0 0
    %2946 = vmatpush1.bf16.msra.mxu0 0
    %2947 = vmatprep.subr.bf16.mxu0 0
    %2948 = vmatpush1.bf16.msra.mxu0 0
    %2949 = vmatprep.subr.bf16.mxu0 0
    %2950 = vmatpush1.bf16.msra.mxu0 0
    %2951 = vmatprep.subr.bf16.mxu0 0
    %2952 = vmatpush1.bf16.msra.mxu0 0
    %2953 = vmatprep.subr.bf16.mxu0 0
    %2954 = vmatpush1.bf16.msra.mxu0 0
    %2955 = vmatprep.subr.bf16.mxu0 0
    %2956 = vmatpush1.bf16.msra.mxu0 0
    %2957 = vmatprep.subr.bf16.mxu0 0
    %2958 = vmatpush1.bf16.msra.mxu0 0
    %2959 = vmatprep.subr.bf16.mxu0 0
    %2960 = vmatpush1.bf16.msra.mxu0 0
    %2961 = vmatprep.mubr.bf16.mxu0 0
    %2962 = vmatmul.mubr.bf16.gmra.mrb[0].mxu0 %v833
    %v2963 = vpop.f32.mrb[0].mxu0
    %v2964 = vadd.f32 0.0, %v2963
    %v2965 = vpop.f32.mrb[0].mxu0
    %v2966 = vpop.f32.mrb[0].mxu0
    %v2967 = vadd.f32 0.0, %v2966
    %v2968 = vpop.f32.mrb[0].mxu0
    %2969 = vmatprep.mubr.bf16.mxu0 0
    %2970 = vmatmul.mubr.bf16.gmra.mrb[0].mxu0 %v836
    %v2971 = vpop.f32.mrb[0].mxu0
    %v2972 = vadd.f32 0.0, %v2971
    %v2973 = vpop.f32.mrb[0].mxu0
    %v2974 = vpop.f32.mrb[0].mxu0
    %v2975 = vadd.f32 0.0, %v2974
    %v2976 = vpop.f32.mrb[0].mxu0
    %2977 = vmatprep.mubr.bf16.mxu0 0
    %2978 = vmatmul.mubr.bf16.gmra.mrb[0].mxu0 %v839
    %v2979 = vpop.f32.mrb[0].mxu0
    %v2980 = vadd.f32 0.0, %v2979
    %v2981 = vpop.f32.mrb[0].mxu0
    %v2982 = vpop.f32.mrb[0].mxu0
    %v2983 = vadd.f32 0.0, %v2982
    %v2984 = vpop.f32.mrb[0].mxu0
    %2985 = vmatprep.mubr.bf16.mxu0 0
    %2986 = vmatmul.mubr.bf16.gmra.mrb[0].mxu0 %v842
    %v2987 = vpop.f32.mrb[0].mxu0
    %v2988 = vadd.f32 0.0, %v2987
    %v2989 = vpop.f32.mrb[0].mxu0
    %v2990 = vpop.f32.mrb[0].mxu0
    %v2991 = vadd.f32 0.0, %v2990
    %v2992 = vpop.f32.mrb[0].mxu0
    %2993 = vdwg.mxu0
    %v2994 = vmul.f32 %v2964, 2.0
    %v2995 = vmul.f32 %v2967, 2.0
    %v2996 = vmul.f32 %v2972, 2.0
    %v2997 = vmul.f32 %v2975, 2.0
    %v2998 = vmul.f32 %v2980, 2.0
    %v2999 = vmul.f32 %v2983, 2.0
    %v3000 = vmul.f32 %v2988, 2.0
    %v3001 = vmul.f32 %v2991, 2.0
    %v3002 = vsub.f32 %v2994, %v2917
    %v3003 = vsub.f32 %v2995, %v2918
    %v3004 = vsub.f32 %v2996, %v2919
    %v3005 = vsub.f32 %v2997, %v2920
    %v3006 = vsub.f32 %v2998, %v2921
    %v3007 = vsub.f32 %v2999, %v2922
    %v3008 = vsub.f32 %v3000, %v2923
    %v3009 = vsub.f32 %v3001, %v2924
    %3010 = vst [vmem:[#allocation3 + $0x20] sm:$0xff] %v3002
    %3011 = vst [vmem:[#allocation3 + $0x48] sm:$0xff] %v3003
    %3012 = vst [vmem:[#allocation3 + $0x70] sm:$0xff] %v3004
    %3013 = vst [vmem:[#allocation3 + $0x98] sm:$0xff] %v3005
    %3014 = vst [vmem:[#allocation3 + $0xc0] sm:$0xff] %v3006
    %3015 = vst [vmem:[#allocation3 + $0xe8] sm:$0xff] %v3007
    %3016 = vst [vmem:[#allocation3 + $0x110] sm:$0xff] %v3008
    %3017 = vst [vmem:[#allocation3 + $0x138] sm:$0xff] %v3009
    %v3018 = vld [vmem:[#allocation3] sm:$0xff]
    %v3019 = vld [vmem:[#allocation3 + $0x8] sm:$0xff]
    %v3020 = vld [vmem:[#allocation3 + $0x10] sm:$0xff]
    %v3021 = vld [vmem:[#allocation3 + $0x18] sm:$0xff]
    %v3022 = vld [vmem:[#allocation3 + $0x20] sm:$0xff]
    %v3023 = vld [vmem:[#allocation3 + $0x28] sm:$0xff]
    %v3024 = vld [vmem:[#allocation3 + $0x30] sm:$0xff]
    %v3025 = vld [vmem:[#allocation3 + $0x38] sm:$0xff]
    %v3026 = vld [vmem:[#allocation3 + $0x40] sm:$0xff]
    %v3027 = vld [vmem:[#allocation3 + $0x48] sm:$0xff]
    %v3028 = vld [vmem:[#allocation3 + $0x50] sm:$0xff]
    %v3029 = vld [vmem:[#allocation3 + $0x58] sm:$0xff]
    %v3030 = vld [vmem:[#allocation3 + $0x60] sm:$0xff]
    %v3031 = vld [vmem:[#allocation3 + $0x68] sm:$0xff]
    %v3032 = vld [vmem:[#allocation3 + $0x70] sm:$0xff]
    %v3033 = vld [vmem:[#allocation3 + $0x78] sm:$0xff]
    %v3034 = vld [vmem:[#allocation3 + $0x80] sm:$0xff]
    %v3035 = vld [vmem:[#allocation3 + $0x88] sm:$0xff]
    %v3036 = vld [vmem:[#allocation3 + $0x90] sm:$0xff]
    %v3037 = vld [vmem:[#allocation3 + $0x98] sm:$0xff]
    %v3038 = vld [vmem:[#allocation3 + $0xa0] sm:$0xff]
    %v3039 = vld [vmem:[#allocation3 + $0xa8] sm:$0xff]
    %v3040 = vld [vmem:[#allocation3 + $0xb0] sm:$0xff]
    %v3041 = vld [vmem:[#allocation3 + $0xb8] sm:$0xff]
    %v3042 = vld [vmem:[#allocation3 + $0xc0] sm:$0xff]
    %v3043 = vld [vmem:[#allocation3 + $0xc8] sm:$0xff]
    %v3044 = vld [vmem:[#allocation3 + $0xd0] sm:$0xff]
    %v3045 = vld [vmem:[#allocation3 + $0xd8] sm:$0xff]
    %v3046 = vld [vmem:[#allocation3 + $0xe0] sm:$0xff]
    %v3047 = vld [vmem:[#allocation3 + $0xe8] sm:$0xff]
    %v3048 = vld [vmem:[#allocation3 + $0xf0] sm:$0xff]
    %v3049 = vld [vmem:[#allocation3 + $0xf8] sm:$0xff]
    %v3050 = vld [vmem:[#allocation3 + $0x100] sm:$0xff]
    %v3051 = vld [vmem:[#allocation3 + $0x108] sm:$0xff]
    %v3052 = vld [vmem:[#allocation3 + $0x110] sm:$0xff]
    %v3053 = vld [vmem:[#allocation3 + $0x118] sm:$0xff]
    %v3054 = vld [vmem:[#allocation3 + $0x120] sm:$0xff]
    %v3055 = vld [vmem:[#allocation3 + $0x128] sm:$0xff]
    %v3056 = vld [vmem:[#allocation3 + $0x130] sm:$0xff]
    %v3057 = vld [vmem:[#allocation3 + $0x138] sm:$0xff]
    %v3058 = vld [vmem:[%s8] sm:$0xff]
    %v3059 = vld [vmem:[%s8 + $0x8] sm:$0xff]
    %v3060 = vld [vmem:[%s8 + $0x10] sm:$0xff]
    %v3061 = vld [vmem:[%s8 + $0x18] sm:$0xff]
    %v3062 = vld [vmem:[%s8 + $0x20] sm:$0xff]
    %v3063 = vld [vmem:[%s8 + $0x28] sm:$0xff]
    %v3064 = vld [vmem:[%s8 + $0x30] sm:$0xff]
    %v3065 = vld [vmem:[%s8 + $0x38] sm:$0xff]
    %v3066 = vld [vmem:[%s8 + $0x40] sm:$0xff]
    %v3067 = vld [vmem:[%s8 + $0x48] sm:$0xff]
    %v3068 = vld [vmem:[%s8 + $0x50] sm:$0xff]
    %v3069 = vld [vmem:[%s8 + $0x58] sm:$0xff]
    %v3070 = vld [vmem:[%s8 + $0x60] sm:$0xff]
    %v3071 = vld [vmem:[%s8 + $0x68] sm:$0xff]
    %v3072 = vld [vmem:[%s8 + $0x70] sm:$0xff]
    %v3073 = vld [vmem:[%s8 + $0x78] sm:$0xff]
    %v3074 = vld [vmem:[%s8 + $0x80] sm:$0xff]
    %v3075 = vld [vmem:[%s8 + $0x88] sm:$0xff]
    %v3076 = vld [vmem:[%s8 + $0x90] sm:$0xff]
    %v3077 = vld [vmem:[%s8 + $0x98] sm:$0xff]
    %v3078 = vld [vmem:[%s8 + $0xa0] sm:$0xff]
    %v3079 = vld [vmem:[%s8 + $0xa8] sm:$0xff]
    %v3080 = vld [vmem:[%s8 + $0xb0] sm:$0xff]
    %v3081 = vld [vmem:[%s8 + $0xb8] sm:$0xff]
    %v3082 = vld [vmem:[%s8 + $0xc0] sm:$0xff]
    %v3083 = vld [vmem:[%s8 + $0xc8] sm:$0xff]
    %v3084 = vld [vmem:[%s8 + $0xd0] sm:$0xff]
    %v3085 = vld [vmem:[%s8 + $0xd8] sm:$0xff]
    %v3086 = vld [vmem:[%s8 + $0xe0] sm:$0xff]
    %v3087 = vld [vmem:[%s8 + $0xe8] sm:$0xff]
    %v3088 = vld [vmem:[%s8 + $0xf0] sm:$0xff]
    %v3089 = vld [vmem:[%s8 + $0xf8] sm:$0xff]
    %v3090 = vld [vmem:[%s8 + $0x100] sm:$0xff]
    %v3091 = vld [vmem:[%s8 + $0x108] sm:$0xff]
    %v3092 = vld [vmem:[%s8 + $0x110] sm:$0xff]
    %v3093 = vld [vmem:[%s8 + $0x118] sm:$0xff]
    %v3094 = vld [vmem:[%s8 + $0x120] sm:$0xff]
    %v3095 = vld [vmem:[%s8 + $0x128] sm:$0xff]
    %v3096 = vld [vmem:[%s8 + $0x130] sm:$0xff]
    %v3097 = vld [vmem:[%s8 + $0x138] sm:$0xff]
    %v3098 = vld [vmem:[%s8 + $0x140] sm:$0xff]
    %v3099 = vld [vmem:[%s8 + $0x148] sm:$0xff]
    %v3100 = vld [vmem:[%s8 + $0x150] sm:$0xff]
    %v3101 = vld [vmem:[%s8 + $0x158] sm:$0xff]
    %v3102 = vld [vmem:[%s8 + $0x160] sm:$0xff]
    %v3103 = vld [vmem:[%s8 + $0x168] sm:$0xff]
    %v3104 = vld [vmem:[%s8 + $0x170] sm:$0xff]
    %v3105 = vld [vmem:[%s8 + $0x178] sm:$0xff]
    %v3106 = vld [vmem:[%s8 + $0x180] sm:$0xff]
    %v3107 = vld [vmem:[%s8 + $0x188] sm:$0xff]
    %v3108 = vld [vmem:[%s8 + $0x190] sm:$0xff]
    %v3109 = vld [vmem:[%s8 + $0x198] sm:$0xff]
    %v3110 = vld [vmem:[%s8 + $0x1a0] sm:$0xff]
    %v3111 = vld [vmem:[%s8 + $0x1a8] sm:$0xff]
    %v3112 = vld [vmem:[%s8 + $0x1b0] sm:$0xff]
    %v3113 = vld [vmem:[%s8 + $0x1b8] sm:$0xff]
    %v3114 = vld [vmem:[%s8 + $0x1c0] sm:$0xff]
    %v3115 = vld [vmem:[%s8 + $0x1c8] sm:$0xff]
    %v3116 = vld [vmem:[%s8 + $0x1d0] sm:$0xff]
    %v3117 = vld [vmem:[%s8 + $0x1d8] sm:$0xff]
    %v3118 = vld [vmem:[%s8 + $0x1e0] sm:$0xff]
    %v3119 = vld [vmem:[%s8 + $0x1e8] sm:$0xff]
    %v3120 = vld [vmem:[%s8 + $0x1f0] sm:$0xff]
    %v3121 = vld [vmem:[%s8 + $0x1f8] sm:$0xff]
    %v3122 = vld [vmem:[%s8 + $0x200] sm:$0xff]
    %v3123 = vld [vmem:[%s8 + $0x208] sm:$0xff]
    %v3124 = vld [vmem:[%s8 + $0x210] sm:$0xff]
    %v3125 = vld [vmem:[%s8 + $0x218] sm:$0xff]
    %v3126 = vld [vmem:[%s8 + $0x220] sm:$0xff]
    %v3127 = vld [vmem:[%s8 + $0x228] sm:$0xff]
    %v3128 = vld [vmem:[%s8 + $0x230] sm:$0xff]
    %v3129 = vld [vmem:[%s8 + $0x238] sm:$0xff]
    %v3130 = vld [vmem:[%s8 + $0x240] sm:$0xff]
    %v3131 = vld [vmem:[%s8 + $0x248] sm:$0xff]
    %v3132 = vld [vmem:[%s8 + $0x250] sm:$0xff]
    %v3133 = vld [vmem:[%s8 + $0x258] sm:$0xff]
    %v3134 = vld [vmem:[%s8 + $0x260] sm:$0xff]
    %v3135 = vld [vmem:[%s8 + $0x268] sm:$0xff]
    %v3136 = vld [vmem:[%s8 + $0x270] sm:$0xff]
    %v3137 = vld [vmem:[%s8 + $0x278] sm:$0xff]
    %v3138 = vld [vmem:[%s8 + $0x280] sm:$0xff]
    %v3139 = vld [vmem:[%s8 + $0x288] sm:$0xff]
    %v3140 = vld [vmem:[%s8 + $0x290] sm:$0xff]
    %v3141 = vld [vmem:[%s8 + $0x298] sm:$0xff]
    %v3142 = vld [vmem:[%s8 + $0x2a0] sm:$0xff]
    %v3143 = vld [vmem:[%s8 + $0x2a8] sm:$0xff]
    %v3144 = vld [vmem:[%s8 + $0x2b0] sm:$0xff]
    %v3145 = vld [vmem:[%s8 + $0x2b8] sm:$0xff]
    %v3146 = vld [vmem:[%s8 + $0x2c0] sm:$0xff]
    %v3147 = vld [vmem:[%s8 + $0x2c8] sm:$0xff]
    %v3148 = vld [vmem:[%s8 + $0x2d0] sm:$0xff]
    %v3149 = vld [vmem:[%s8 + $0x2d8] sm:$0xff]
    %v3150 = vld [vmem:[%s8 + $0x2e0] sm:$0xff]
    %v3151 = vld [vmem:[%s8 + $0x2e8] sm:$0xff]
    %v3152 = vld [vmem:[%s8 + $0x2f0] sm:$0xff]
    %v3153 = vld [vmem:[%s8 + $0x2f8] sm:$0xff]
    %v3154 = vld [vmem:[%s8 + $0x300] sm:$0xff]
    %v3155 = vld [vmem:[%s8 + $0x308] sm:$0xff]
    %v3156 = vld [vmem:[%s8 + $0x310] sm:$0xff]
    %v3157 = vld [vmem:[%s8 + $0x318] sm:$0xff]
    %v3158 = vld [vmem:[%s8 + $0x320] sm:$0xff]
    %v3159 = vld [vmem:[%s8 + $0x328] sm:$0xff]
    %v3160 = vld [vmem:[%s8 + $0x330] sm:$0xff]
    %v3161 = vld [vmem:[%s8 + $0x338] sm:$0xff]
    %v3162 = vld [vmem:[%s8 + $0x340] sm:$0xff]
    %v3163 = vld [vmem:[%s8 + $0x348] sm:$0xff]
    %v3164 = vld [vmem:[%s8 + $0x350] sm:$0xff]
    %v3165 = vld [vmem:[%s8 + $0x358] sm:$0xff]
    %v3166 = vld [vmem:[%s8 + $0x360] sm:$0xff]
    %v3167 = vld [vmem:[%s8 + $0x368] sm:$0xff]
    %v3168 = vld [vmem:[%s8 + $0x370] sm:$0xff]
    %v3169 = vld [vmem:[%s8 + $0x378] sm:$0xff]
    %v3170 = vld [vmem:[%s8 + $0x380] sm:$0xff]
    %v3171 = vld [vmem:[%s8 + $0x388] sm:$0xff]
    %v3172 = vld [vmem:[%s8 + $0x390] sm:$0xff]
    %v3173 = vld [vmem:[%s8 + $0x398] sm:$0xff]
    %v3174 = vld [vmem:[%s8 + $0x3a0] sm:$0xff]
    %v3175 = vld [vmem:[%s8 + $0x3a8] sm:$0xff]
    %v3176 = vld [vmem:[%s8 + $0x3b0] sm:$0xff]
    %v3177 = vld [vmem:[%s8 + $0x3b8] sm:$0xff]
    %v3178 = vld [vmem:[%s8 + $0x3c0] sm:$0xff]
    %v3179 = vld [vmem:[%s8 + $0x3c8] sm:$0xff]
    %v3180 = vld [vmem:[%s8 + $0x3d0] sm:$0xff]
    %v3181 = vld [vmem:[%s8 + $0x3d8] sm:$0xff]
    %v3182 = vld [vmem:[%s8 + $0x3e0] sm:$0xff]
    %v3183 = vld [vmem:[%s8 + $0x3e8] sm:$0xff]
    %v3184 = vld [vmem:[%s8 + $0x3f0] sm:$0xff]
    %v3185 = vld [vmem:[%s8 + $0x3f8] sm:$0xff]
    %v3186 = vld [vmem:[%s8 + $0x400] sm:$0xff]
    %v3187 = vld [vmem:[%s8 + $0x408] sm:$0xff]
    %v3188 = vld [vmem:[%s8 + $0x410] sm:$0xff]
    %v3189 = vld [vmem:[%s8 + $0x418] sm:$0xff]
    %v3190 = vld [vmem:[%s8 + $0x420] sm:$0xff]
    %v3191 = vld [vmem:[%s8 + $0x428] sm:$0xff]
    %v3192 = vld [vmem:[%s8 + $0x430] sm:$0xff]
    %v3193 = vld [vmem:[%s8 + $0x438] sm:$0xff]
    %v3194 = vld [vmem:[%s8 + $0x440] sm:$0xff]
    %v3195 = vld [vmem:[%s8 + $0x448] sm:$0xff]
    %v3196 = vld [vmem:[%s8 + $0x450] sm:$0xff]
    %v3197 = vld [vmem:[%s8 + $0x458] sm:$0xff]
    %v3198 = vld [vmem:[%s8 + $0x460] sm:$0xff]
    %v3199 = vld [vmem:[%s8 + $0x468] sm:$0xff]
    %v3200 = vld [vmem:[%s8 + $0x470] sm:$0xff]
    %v3201 = vld [vmem:[%s8 + $0x478] sm:$0xff]
    %v3202 = vld [vmem:[%s8 + $0x480] sm:$0xff]
    %v3203 = vld [vmem:[%s8 + $0x488] sm:$0xff]
    %v3204 = vld [vmem:[%s8 + $0x490] sm:$0xff]
    %v3205 = vld [vmem:[%s8 + $0x498] sm:$0xff]
    %v3206 = vld [vmem:[%s8 + $0x4a0] sm:$0xff]
    %v3207 = vld [vmem:[%s8 + $0x4a8] sm:$0xff]
    %v3208 = vld [vmem:[%s8 + $0x4b0] sm:$0xff]
    %v3209 = vld [vmem:[%s8 + $0x4b8] sm:$0xff]
    %v3210 = vld [vmem:[%s8 + $0x4c0] sm:$0xff]
    %v3211 = vld [vmem:[%s8 + $0x4c8] sm:$0xff]
    %v3212 = vld [vmem:[%s8 + $0x4d0] sm:$0xff]
    %v3213 = vld [vmem:[%s8 + $0x4d8] sm:$0xff]
    %v3214 = vld [vmem:[%s8 + $0x4e0] sm:$0xff]
    %v3215 = vld [vmem:[%s8 + $0x4e8] sm:$0xff]
    %v3216 = vld [vmem:[%s8 + $0x4f0] sm:$0xff]
    %v3217 = vld [vmem:[%s8 + $0x4f8] sm:$0xff]
    %v3218 = vld [vmem:[%s9] sm:$0x3]
    %v3220 = vlaneseq
    %v3221 = vshrl.u32 %v3220, 7
    %v3222 = vsub.s32 0, %v3221
    %v3223 = vrot.slane %v3218, %v3222
    %v3224 = vlaneseq
    %v3225 = vshrl.u32 %v3224, 7
    %v3226 = vsub.s32 1, %v3225
    %v3227 = vrot.slane %v3218, %v3226
    %3230 = vmatprep.subr.mxu0 %v3059
    %3231 = vmatpush1.msra.mxu0 %v3058
    %3232 = vmatprep.subr.mxu0 %v3061
    %3233 = vmatpush1.msra.mxu0 %v3060
    %3234 = vmatprep.subr.mxu0 %v3063
    %3235 = vmatpush1.msra.mxu0 %v3062
    %3236 = vmatprep.subr.mxu0 %v3065
    %3237 = vmatpush1.msra.mxu0 %v3064
    %3238 = vmatprep.subr.mxu0 %v3067
    %3239 = vmatpush1.msra.mxu0 %v3066
    %3240 = vmatprep.subr.mxu0 %v3069
    %3241 = vmatpush1.msra.mxu0 %v3068
    %3242 = vmatprep.subr.mxu0 %v3071
    %3243 = vmatpush1.msra.mxu0 %v3070
    %3244 = vmatprep.subr.mxu0 %v3073
    %3245 = vmatpush1.msra.mxu0 %v3072
    %3246 = vmatprep.subr.mxu0 %v3075
    %3247 = vmatpush1.msra.mxu0 %v3074
    %3248 = vmatprep.subr.mxu0 %v3077
    %3249 = vmatpush1.msra.mxu0 %v3076
    %3250 = vmatprep.subr.mxu0 %v3079
    %3251 = vmatpush1.msra.mxu0 %v3078
    %3252 = vmatprep.subr.mxu0 %v3081
    %3253 = vmatpush1.msra.mxu0 %v3080
    %3254 = vmatprep.subr.mxu0 %v3083
    %3255 = vmatpush1.msra.mxu0 %v3082
    %3256 = vmatprep.subr.mxu0 %v3085
    %3257 = vmatpush1.msra.mxu0 %v3084
    %3258 = vmatprep.subr.mxu0 %v3087
    %3259 = vmatpush1.msra.mxu0 %v3086
    %3260 = vmatprep.subr.mxu0 %v3089
    %3261 = vmatpush1.msra.mxu0 %v3088
    %3262 = vmatprep.subr.mxu0 %v3091
    %3263 = vmatpush1.msra.mxu0 %v3090
    %3264 = vmatprep.subr.mxu0 %v3093
    %3265 = vmatpush1.msra.mxu0 %v3092
    %3266 = vmatprep.subr.mxu0 %v3095
    %3267 = vmatpush1.msra.mxu0 %v3094
    %3268 = vmatprep.subr.mxu0 %v3097
    %3269 = vmatpush1.msra.mxu0 %v3096
    %3270 = vmatprep.subr.mxu0 %v3099
    %3271 = vmatpush1.msra.mxu0 %v3098
    %3272 = vmatprep.subr.mxu0 %v3101
    %3273 = vmatpush1.msra.mxu0 %v3100
    %3274 = vmatprep.subr.mxu0 %v3103
    %3275 = vmatpush1.msra.mxu0 %v3102
    %3276 = vmatprep.subr.mxu0 %v3105
    %3277 = vmatpush1.msra.mxu0 %v3104
    %3278 = vmatprep.subr.mxu0 %v3107
    %3279 = vmatpush1.msra.mxu0 %v3106
    %3280 = vmatprep.subr.mxu0 %v3109
    %3281 = vmatpush1.msra.mxu0 %v3108
    %3282 = vmatprep.subr.mxu0 %v3111
    %3283 = vmatpush1.msra.mxu0 %v3110
    %3284 = vmatprep.subr.mxu0 %v3113
    %3285 = vmatpush1.msra.mxu0 %v3112
    %3286 = vmatprep.subr.mxu0 %v3115
    %3287 = vmatpush1.msra.mxu0 %v3114
    %3288 = vmatprep.subr.mxu0 %v3117
    %3289 = vmatpush1.msra.mxu0 %v3116
    %3290 = vmatprep.subr.mxu0 %v3119
    %3291 = vmatpush1.msra.mxu0 %v3118
    %3292 = vmatprep.subr.mxu0 %v3121
    %3293 = vmatpush1.msra.mxu0 %v3120
    %3294 = vmatprep.mubr.f32.mxu0 %v3019
    %3295 = vmatmul.mubr.f32.gmra.mrb[0].mxu0 %v3018
    %v3296 = vpop.f32.mrb[0].mxu0
    %v3297 = vadd.f32 %v3223, %v3296
    %v3298 = vpop.f32.mrb[0].mxu0
    %v3299 = vadd.f32 %v3227, %v3298
    %3300 = vmatprep.mubr.f32.mxu0 %v3024
    %3301 = vmatmul.mubr.f32.gmra.mrb[0].mxu0 %v3023
    %v3302 = vpop.f32.mrb[0].mxu0
    %v3303 = vadd.f32 %v3223, %v3302
    %v3304 = vpop.f32.mrb[0].mxu0
    %v3305 = vadd.f32 %v3227, %v3304
    %3306 = vmatprep.mubr.f32.mxu0 %v3029
    %3307 = vmatmul.mubr.f32.gmra.mrb[0].mxu0 %v3028
    %v3308 = vpop.f32.mrb[0].mxu0
    %v3309 = vadd.f32 %v3223, %v3308
    %v3310 = vpop.f32.mrb[0].mxu0
    %v3311 = vadd.f32 %v3227, %v3310
    %3312 = vmatprep.mubr.f32.mxu0 %v3034
    %3313 = vmatmul.mubr.f32.gmra.mrb[0].mxu0 %v3033
    %v3314 = vpop.f32.mrb[0].mxu0
    %v3315 = vadd.f32 %v3223, %v3314
    %v3316 = vpop.f32.mrb[0].mxu0
    %v3317 = vadd.f32 %v3227, %v3316
    %3318 = vmatprep.mubr.f32.mxu0 %v3039
    %3319 = vmatmul.mubr.f32.gmra.mrb[0].mxu0 %v3038
    %v3320 = vpop.f32.mrb[0].mxu0
    %v3321 = vadd.f32 %v3223, %v3320
    %v3322 = vpop.f32.mrb[0].mxu0
    %v3323 = vadd.f32 %v3227, %v3322
    %3324 = vmatprep.mubr.f32.mxu0 %v3044
    %3325 = vmatmul.mubr.f32.gmra.mrb[0].mxu0 %v3043
    %v3326 = vpop.f32.mrb[0].mxu0
    %v3327 = vadd.f32 %v3223, %v3326
    %v3328 = vpop.f32.mrb[0].mxu0
    %v3329 = vadd.f32 %v3227, %v3328
    %3330 = vmatprep.mubr.f32.mxu0 %v3049
    %3331 = vmatmul.mubr.f32.gmra.mrb[0].mxu0 %v3048
    %v3332 = vpop.f32.mrb[0].mxu0
    %v3333 = vadd.f32 %v3223, %v3332
    %v3334 = vpop.f32.mrb[0].mxu0
    %v3335 = vadd.f32 %v3227, %v3334
    %3336 = vmatprep.mubr.f32.mxu0 %v3054
    %3337 = vmatmul.mubr.f32.gmra.mrb[0].mxu0 %v3053
    %v3338 = vpop.f32.mrb[0].mxu0
    %v3339 = vadd.f32 %v3223, %v3338
    %v3340 = vpop.f32.mrb[0].mxu0
    %v3341 = vadd.f32 %v3227, %v3340
    %3342 = vdwg.mxu0
    %3343 = vmatprep.subr.mxu0 %v3123
    %3344 = vmatpush1.msra.mxu0 %v3122
    %3345 = vmatprep.subr.mxu0 %v3125
    %3346 = vmatpush1.msra.mxu0 %v3124
    %3347 = vmatprep.subr.mxu0 %v3127
    %3348 = vmatpush1.msra.mxu0 %v3126
    %3349 = vmatprep.subr.mxu0 %v3129
    %3350 = vmatpush1.msra.mxu0 %v3128
    %3351 = vmatprep.subr.mxu0 %v3131
    %3352 = vmatpush1.msra.mxu0 %v3130
    %3353 = vmatprep.subr.mxu0 %v3133
    %3354 = vmatpush1.msra.mxu0 %v3132
    %3355 = vmatprep.subr.mxu0 %v3135
    %3356 = vmatpush1.msra.mxu0 %v3134
    %3357 = vmatprep.subr.mxu0 %v3137
    %3358 = vmatpush1.msra.mxu0 %v3136
    %3359 = vmatprep.subr.mxu0 %v3139
    %3360 = vmatpush1.msra.mxu0 %v3138
    %3361 = vmatprep.subr.mxu0 %v3141
    %3362 = vmatpush1.msra.mxu0 %v3140
    %3363 = vmatprep.subr.mxu0 %v3143
    %3364 = vmatpush1.msra.mxu0 %v3142
    %3365 = vmatprep.subr.mxu0 %v3145
    %3366 = vmatpush1.msra.mxu0 %v3144
    %3367 = vmatprep.subr.mxu0 %v3147
    %3368 = vmatpush1.msra.mxu0 %v3146
    %3369 = vmatprep.subr.mxu0 %v3149
    %3370 = vmatpush1.msra.mxu0 %v3148
    %3371 = vmatprep.subr.mxu0 %v3151
    %3372 = vmatpush1.msra.mxu0 %v3150
    %3373 = vmatprep.subr.mxu0 %v3153
    %3374 = vmatpush1.msra.mxu0 %v3152
    %3375 = vmatprep.subr.mxu0 %v3155
    %3376 = vmatpush1.msra.mxu0 %v3154
    %3377 = vmatprep.subr.mxu0 %v3157
    %3378 = vmatpush1.msra.mxu0 %v3156
    %3379 = vmatprep.subr.mxu0 %v3159
    %3380 = vmatpush1.msra.mxu0 %v3158
    %3381 = vmatprep.subr.mxu0 %v3161
    %3382 = vmatpush1.msra.mxu0 %v3160
    %3383 = vmatprep.subr.mxu0 %v3163
    %3384 = vmatpush1.msra.mxu0 %v3162
    %3385 = vmatprep.subr.mxu0 %v3165
    %3386 = vmatpush1.msra.mxu0 %v3164
    %3387 = vmatprep.subr.mxu0 %v3167
    %3388 = vmatpush1.msra.mxu0 %v3166
    %3389 = vmatprep.subr.mxu0 %v3169
    %3390 = vmatpush1.msra.mxu0 %v3168
    %3391 = vmatprep.subr.mxu0 %v3171
    %3392 = vmatpush1.msra.mxu0 %v3170
    %3393 = vmatprep.subr.mxu0 %v3173
    %3394 = vmatpush1.msra.mxu0 %v3172
    %3395 = vmatprep.subr.mxu0 %v3175
    %3396 = vmatpush1.msra.mxu0 %v3174
    %3397 = vmatprep.subr.mxu0 %v3177
    %3398 = vmatpush1.msra.mxu0 %v3176
    %3399 = vmatprep.subr.mxu0 %v3179
    %3400 = vmatpush1.msra.mxu0 %v3178
    %3401 = vmatprep.subr.mxu0 %v3181
    %3402 = vmatpush1.msra.mxu0 %v3180
    %3403 = vmatprep.subr.mxu0 %v3183
    %3404 = vmatpush1.msra.mxu0 %v3182
    %3405 = vmatprep.subr.mxu0 %v3185
    %3406 = vmatpush1.msra.mxu0 %v3184
    %3407 = vmatprep.mubr.f32.mxu0 %v3021
    %3408 = vmatmul.mubr.f32.gmra.mrb[0].mxu0 %v3020
    %v3409 = vpop.f32.mrb[0].mxu0
    %v3410 = vadd.f32 %v3297, %v3409
    %v3411 = vpop.f32.mrb[0].mxu0
    %v3412 = vadd.f32 %v3299, %v3411
    %3413 = vmatprep.mubr.f32.mxu0 %v3026
    %3414 = vmatmul.mubr.f32.gmra.mrb[0].mxu0 %v3025
    %v3415 = vpop.f32.mrb[0].mxu0
    %v3416 = vadd.f32 %v3303, %v3415
    %v3417 = vpop.f32.mrb[0].mxu0
    %v3418 = vadd.f32 %v3305, %v3417
    %3419 = vmatprep.mubr.f32.mxu0 %v3031
    %3420 = vmatmul.mubr.f32.gmra.mrb[0].mxu0 %v3030
    %v3421 = vpop.f32.mrb[0].mxu0
    %v3422 = vadd.f32 %v3309, %v3421
    %v3423 = vpop.f32.mrb[0].mxu0
    %v3424 = vadd.f32 %v3311, %v3423
    %3425 = vmatprep.mubr.f32.mxu0 %v3036
    %3426 = vmatmul.mubr.f32.gmra.mrb[0].mxu0 %v3035
    %v3427 = vpop.f32.mrb[0].mxu0
    %v3428 = vadd.f32 %v3315, %v3427
    %v3429 = vpop.f32.mrb[0].mxu0
    %v3430 = vadd.f32 %v3317, %v3429
    %3431 = vmatprep.mubr.f32.mxu0 %v3041
    %3432 = vmatmul.mubr.f32.gmra.mrb[0].mxu0 %v3040
    %v3433 = vpop.f32.mrb[0].mxu0
    %v3434 = vadd.f32 %v3321, %v3433
    %v3435 = vpop.f32.mrb[0].mxu0
    %v3436 = vadd.f32 %v3323, %v3435
    %3437 = vmatprep.mubr.f32.mxu0 %v3046
    %3438 = vmatmul.mubr.f32.gmra.mrb[0].mxu0 %v3045
    %v3439 = vpop.f32.mrb[0].mxu0
    %v3440 = vadd.f32 %v3327, %v3439
    %v3441 = vpop.f32.mrb[0].mxu0
    %v3442 = vadd.f32 %v3329, %v3441
    %3443 = vmatprep.mubr.f32.mxu0 %v3051
    %3444 = vmatmul.mubr.f32.gmra.mrb[0].mxu0 %v3050
    %v3445 = vpop.f32.mrb[0].mxu0
    %v3446 = vadd.f32 %v3333, %v3445
    %v3447 = vpop.f32.mrb[0].mxu0
    %v3448 = vadd.f32 %v3335, %v3447
    %3449 = vmatprep.mubr.f32.mxu0 %v3056
    %3450 = vmatmul.mubr.f32.gmra.mrb[0].mxu0 %v3055
    %v3451 = vpop.f32.mrb[0].mxu0
    %v3452 = vadd.f32 %v3339, %v3451
    %v3453 = vpop.f32.mrb[0].mxu0
    %v3454 = vadd.f32 %v3341, %v3453
    %3455 = vdwg.mxu0
    %3456 = vmatprep.subr.mxu0 %v3187
    %3457 = vmatpush1.msra.mxu0 %v3186
    %3458 = vmatprep.subr.mxu0 %v3189
    %3459 = vmatpush1.msra.mxu0 %v3188
    %3460 = vmatprep.subr.mxu0 %v3191
    %3461 = vmatpush1.msra.mxu0 %v3190
    %3462 = vmatprep.subr.mxu0 %v3193
    %3463 = vmatpush1.msra.mxu0 %v3192
    %3464 = vmatprep.subr.mxu0 %v3195
    %3465 = vmatpush1.msra.mxu0 %v3194
    %3466 = vmatprep.subr.mxu0 %v3197
    %3467 = vmatpush1.msra.mxu0 %v3196
    %3468 = vmatprep.subr.mxu0 %v3199
    %3469 = vmatpush1.msra.mxu0 %v3198
    %3470 = vmatprep.subr.mxu0 %v3201
    %3471 = vmatpush1.msra.mxu0 %v3200
    %3472 = vmatprep.subr.mxu0 %v3203
    %3473 = vmatpush1.msra.mxu0 %v3202
    %3474 = vmatprep.subr.mxu0 %v3205
    %3475 = vmatpush1.msra.mxu0 %v3204
    %3476 = vmatprep.subr.mxu0 %v3207
    %3477 = vmatpush1.msra.mxu0 %v3206
    %3478 = vmatprep.subr.mxu0 %v3209
    %3479 = vmatpush1.msra.mxu0 %v3208
    %3480 = vmatprep.subr.mxu0 %v3211
    %3481 = vmatpush1.msra.mxu0 %v3210
    %3482 = vmatprep.subr.mxu0 %v3213
    %3483 = vmatpush1.msra.mxu0 %v3212
    %3484 = vmatprep.subr.mxu0 %v3215
    %3485 = vmatpush1.msra.mxu0 %v3214
    %3486 = vmatprep.subr.mxu0 %v3217
    %3487 = vmatpush1.msra.mxu0 %v3216
    %3488 = vmatprep.subr.mxu0 0.0
    %3489 = vmatpush1.msra.mxu0 0.0
    %3490 = vmatprep.subr.mxu0 0.0
    %3491 = vmatpush1.msra.mxu0 0.0
    %3492 = vmatprep.subr.mxu0 0.0
    %3493 = vmatpush1.msra.mxu0 0.0
    %3494 = vmatprep.subr.mxu0 0.0
    %3495 = vmatpush1.msra.mxu0 0.0
    %3496 = vmatprep.subr.mxu0 0.0
    %3497 = vmatpush1.msra.mxu0 0.0
    %3498 = vmatprep.subr.mxu0 0.0
    %3499 = vmatpush1.msra.mxu0 0.0
    %3500 = vmatprep.subr.mxu0 0.0
    %3501 = vmatpush1.msra.mxu0 0.0
    %3502 = vmatprep.subr.mxu0 0.0
    %3503 = vmatpush1.msra.mxu0 0.0
    %3504 = vmatprep.subr.mxu0 0.0
    %3505 = vmatpush1.msra.mxu0 0.0
    %3506 = vmatprep.subr.mxu0 0.0
    %3507 = vmatpush1.msra.mxu0 0.0
    %3508 = vmatprep.subr.mxu0 0.0
    %3509 = vmatpush1.msra.mxu0 0.0
    %3510 = vmatprep.subr.mxu0 0.0
    %3511 = vmatpush1.msra.mxu0 0.0
    %3512 = vmatprep.subr.mxu0 0.0
    %3513 = vmatpush1.msra.mxu0 0.0
    %3514 = vmatprep.subr.mxu0 0.0
    %3515 = vmatpush1.msra.mxu0 0.0
    %3516 = vmatprep.subr.mxu0 0.0
    %3517 = vmatpush1.msra.mxu0 0.0
    %3518 = vmatprep.subr.mxu0 0.0
    %3519 = vmatpush1.msra.mxu0 0.0
    %3520 = vmatprep.mubr.f32.mxu0 0.0
    %3521 = vmatmul.mubr.f32.gmra.mrb[0].mxu0 %v3022
    %v3522 = vpop.f32.mrb[0].mxu0
    %v3523 = vadd.f32 %v3410, %v3522
    %v3524 = vpop.f32.mrb[0].mxu0
    %v3525 = vadd.f32 %v3412, %v3524
    %3526 = vmatprep.mubr.f32.mxu0 0.0
    %3527 = vmatmul.mubr.f32.gmra.mrb[0].mxu0 %v3027
    %v3528 = vpop.f32.mrb[0].mxu0
    %v3529 = vadd.f32 %v3416, %v3528
    %v3530 = vpop.f32.mrb[0].mxu0
    %v3531 = vadd.f32 %v3418, %v3530
    %3532 = vmatprep.mubr.f32.mxu0 0.0
    %3533 = vmatmul.mubr.f32.gmra.mrb[0].mxu0 %v3032
    %v3534 = vpop.f32.mrb[0].mxu0
    %v3535 = vadd.f32 %v3422, %v3534
    %v3536 = vpop.f32.mrb[0].mxu0
    %v3537 = vadd.f32 %v3424, %v3536
    %3538 = vmatprep.mubr.f32.mxu0 0.0
    %3539 = vmatmul.mubr.f32.gmra.mrb[0].mxu0 %v3037
    %v3540 = vpop.f32.mrb[0].mxu0
    %v3541 = vadd.f32 %v3428, %v3540
    %v3542 = vpop.f32.mrb[0].mxu0
    %v3543 = vadd.f32 %v3430, %v3542
    %3544 = vmatprep.mubr.f32.mxu0 0.0
    %3545 = vmatmul.mubr.f32.gmra.mrb[0].mxu0 %v3042
    %v3546 = vpop.f32.mrb[0].mxu0
    %v3547 = vadd.f32 %v3434, %v3546
    %v3548 = vpop.f32.mrb[0].mxu0
    %v3549 = vadd.f32 %v3436, %v3548
    %3550 = vmatprep.mubr.f32.mxu0 0.0
    %3551 = vmatmul.mubr.f32.gmra.mrb[0].mxu0 %v3047
    %v3552 = vpop.f32.mrb[0].mxu0
    %v3553 = vadd.f32 %v3440, %v3552
    %v3554 = vpop.f32.mrb[0].mxu0
    %v3555 = vadd.f32 %v3442, %v3554
    %3556 = vmatprep.mubr.f32.mxu0 0.0
    %3557 = vmatmul.mubr.f32.gmra.mrb[0].mxu0 %v3052
    %v3558 = vpop.f32.mrb[0].mxu0
    %v3559 = vadd.f32 %v3446, %v3558
    %v3560 = vpop.f32.mrb[0].mxu0
    %v3561 = vadd.f32 %v3448, %v3560
    %3562 = vmatprep.mubr.f32.mxu0 0.0
    %3563 = vmatmul.mubr.f32.gmra.mrb[0].mxu0 %v3057
    %v3564 = vpop.f32.mrb[0].mxu0
    %v3565 = vadd.f32 %v3452, %v3564
    %v3566 = vpop.f32.mrb[0].mxu0
    %v3567 = vadd.f32 %v3454, %v3566
    %3568 = vdwg.mxu0
    %v3569 = vmax.f32 %v3523, 0.0
    %v3570 = vmax.f32 %v3525, 0.0
    %v3571 = vmax.f32 %v3529, 0.0
    %v3572 = vmax.f32 %v3531, 0.0
    %v3573 = vmax.f32 %v3535, 0.0
    %v3574 = vmax.f32 %v3537, 0.0
    %v3575 = vmax.f32 %v3541, 0.0
    %v3576 = vmax.f32 %v3543, 0.0
    %v3577 = vmax.f32 %v3547, 0.0
    %v3578 = vmax.f32 %v3549, 0.0
    %v3579 = vmax.f32 %v3553, 0.0
    %v3580 = vmax.f32 %v3555, 0.0
    %v3581 = vmax.f32 %v3559, 0.0
    %v3582 = vmax.f32 %v3561, 0.0
    %v3583 = vmax.f32 %v3565, 0.0
    %v3584 = vmax.f32 %v3567, 0.0
    %v3585 = vld [vmem:[%s10] sm:$0x3]
    %v3587 = vsel %vm139, %v3585, 0
    %3589 = vmatprep.subr.mxu0 %v3570
    %3590 = vmatpush1.msra.mxu0 %v3569
    %3591 = vmatprep.subr.mxu0 %v3572
    %3592 = vmatpush1.msra.mxu0 %v3571
    %3593 = vmatprep.subr.mxu0 %v3574
    %3594 = vmatpush1.msra.mxu0 %v3573
    %3595 = vmatprep.subr.mxu0 %v3576
    %3596 = vmatpush1.msra.mxu0 %v3575
    %3597 = vmatprep.subr.mxu0 %v3578
    %3598 = vmatpush1.msra.mxu0 %v3577
    %3599 = vmatprep.subr.mxu0 %v3580
    %3600 = vmatpush1.msra.mxu0 %v3579
    %3601 = vmatprep.subr.mxu0 %v3582
    %3602 = vmatpush1.msra.mxu0 %v3581
    %3603 = vmatprep.subr.mxu0 %v3584
    %3604 = vmatpush1.msra.mxu0 %v3583
    %3605 = vmatprep.subr.mxu0 0.0
    %3606 = vmatpush1.msra.mxu0 0.0
    %3607 = vmatprep.subr.mxu0 0.0
    %3608 = vmatpush1.msra.mxu0 0.0
    %3609 = vmatprep.subr.mxu0 0.0
    %3610 = vmatpush1.msra.mxu0 0.0
    %3611 = vmatprep.subr.mxu0 0.0
    %3612 = vmatpush1.msra.mxu0 0.0
    %3613 = vmatprep.subr.mxu0 0.0
    %3614 = vmatpush1.msra.mxu0 0.0
    %3615 = vmatprep.subr.mxu0 0.0
    %3616 = vmatpush1.msra.mxu0 0.0
    %3617 = vmatprep.subr.mxu0 0.0
    %3618 = vmatpush1.msra.mxu0 0.0
    %3619 = vmatprep.subr.mxu0 0.0
    %3620 = vmatpush1.msra.mxu0 0.0
    %3621 = vmatprep.subr.mxu0 0.0
    %3622 = vmatpush1.msra.mxu0 0.0
    %3623 = vmatprep.subr.mxu0 0.0
    %3624 = vmatpush1.msra.mxu0 0.0
    %3625 = vmatprep.subr.mxu0 0.0
    %3626 = vmatpush1.msra.mxu0 0.0
    %3627 = vmatprep.subr.mxu0 0.0
    %3628 = vmatpush1.msra.mxu0 0.0
    %3629 = vmatprep.subr.mxu0 0.0
    %3630 = vmatpush1.msra.mxu0 0.0
    %3631 = vmatprep.subr.mxu0 0.0
    %3632 = vmatpush1.msra.mxu0 0.0
    %3633 = vmatprep.subr.mxu0 0.0
    %3634 = vmatpush1.msra.mxu0 0.0
    %3635 = vmatprep.subr.mxu0 0.0
    %3636 = vmatpush1.msra.mxu0 0.0
    %3637 = vmatprep.subr.mxu0 0.0
    %3638 = vmatpush1.msra.mxu0 0.0
    %3639 = vmatprep.subr.mxu0 0.0
    %3640 = vmatpush1.msra.mxu0 0.0
    %3641 = vmatprep.subr.mxu0 0.0
    %3642 = vmatpush1.msra.mxu0 0.0
    %3643 = vmatprep.subr.mxu0 0.0
    %3644 = vmatpush1.msra.mxu0 0.0
    %3645 = vmatprep.subr.mxu0 0.0
    %3646 = vmatpush1.msra.mxu0 0.0
    %3647 = vmatprep.subr.mxu0 0.0
    %3648 = vmatpush1.msra.mxu0 0.0
    %3649 = vmatprep.subr.mxu0 0.0
    %3650 = vmatpush1.msra.mxu0 0.0
    %3651 = vmatprep.subr.mxu0 0.0
    %3652 = vmatpush1.msra.mxu0 0.0
    %3653 = vmatprep.mubr.f32.mxu0 0.0
    %3654 = vmatmul.mubr.f32.gmra.mrb[0].mxu0 %v3587
    %v3655 = vpop.f32.mrb[0].mxu0
    %v3656 = vadd.f32 0.0, %v3655
    %v3657 = vpop.f32.mrb[0].mxu0
    %v3658 = vadd.f32 0.0, %v3657
    %3659 = vdwg.mxu0
    %3660 = vmatprep.subr.mxu0 0.0
    %3661 = vmatpush1.msra.mxu0 %v2566
    %3662 = vmatprep.subr.mxu0 0.0
    %3663 = vmatpush1.msra.mxu0 %v2567
    %3664 = vmatprep.subr.mxu0 0.0
    %3665 = vmatpush1.msra.mxu0 %v2568
    %3666 = vmatprep.subr.mxu0 0.0
    %3667 = vmatpush1.msra.mxu0 %v2569
    %3668 = vmatprep.subr.mxu0 0.0
    %3669 = vmatpush1.msra.mxu0 %v2570
    %3670 = vmatprep.subr.mxu0 0.0
    %3671 = vmatpush1.msra.mxu0 %v2571
    %3672 = vmatprep.subr.mxu0 0.0
    %3673 = vmatpush1.msra.mxu0 %v2572
    %3674 = vmatprep.subr.mxu0 0.0
    %3675 = vmatpush1.msra.mxu0 %v2573
    %3676 = vmatprep.subr.mxu0 0.0
    %3677 = vmatpush1.msra.mxu0 %v2574
    %3678 = vmatprep.subr.mxu0 0.0
    %3679 = vmatpush1.msra.mxu0 %v2575
    %3680 = vmatprep.subr.mxu0 0.0
    %3681 = vmatpush1.msra.mxu0 %v2576
    %3682 = vmatprep.subr.mxu0 0.0
    %3683 = vmatpush1.msra.mxu0 %v2577
    %3684 = vmatprep.subr.mxu0 0.0
    %3685 = vmatpush1.msra.mxu0 %v2578
    %3686 = vmatprep.subr.mxu0 0.0
    %3687 = vmatpush1.msra.mxu0 %v2579
    %3688 = vmatprep.subr.mxu0 0.0
    %3689 = vmatpush1.msra.mxu0 %v2580
    %3690 = vmatprep.subr.mxu0 0.0
    %3691 = vmatpush1.msra.mxu0 %v2581
    %3692 = vmatprep.subr.mxu0 0.0
    %3693 = vmatpush1.msra.mxu0 %v2582
    %3694 = vmatprep.subr.mxu0 0.0
    %3695 = vmatpush1.msra.mxu0 %v2583
    %3696 = vmatprep.subr.mxu0 0.0
    %3697 = vmatpush1.msra.mxu0 %v2584
    %3698 = vmatprep.subr.mxu0 0.0
    %3699 = vmatpush1.msra.mxu0 %v2585
    %3700 = vmatprep.subr.mxu0 0.0
    %3701 = vmatpush1.msra.mxu0 %v2586
    %3702 = vmatprep.subr.mxu0 0.0
    %3703 = vmatpush1.msra.mxu0 %v2587
    %3704 = vmatprep.subr.mxu0 0.0
    %3705 = vmatpush1.msra.mxu0 %v2588
    %3706 = vmatprep.subr.mxu0 0.0
    %3707 = vmatpush1.msra.mxu0 %v2589
    %3708 = vmatprep.subr.mxu0 0.0
    %3709 = vmatpush1.msra.mxu0 %v2590
    %3710 = vmatprep.subr.mxu0 0.0
    %3711 = vmatpush1.msra.mxu0 %v2591
    %3712 = vmatprep.subr.mxu0 0.0
    %3713 = vmatpush1.msra.mxu0 %v2592
    %3714 = vmatprep.subr.mxu0 0.0
    %3715 = vmatpush1.msra.mxu0 %v2593
    %3716 = vmatprep.subr.mxu0 0.0
    %3717 = vmatpush1.msra.mxu0 %v2594
    %3718 = vmatprep.subr.mxu0 0.0
    %3719 = vmatpush1.msra.mxu0 %v2595
    %3720 = vmatprep.subr.mxu0 0.0
    %3721 = vmatpush1.msra.mxu0 %v2596
    %3722 = vmatprep.subr.mxu0 0.0
    %3723 = vmatpush1.msra.mxu0 %v2597
    %3724 = vmatprep.mubr.f32.mxu0 %v3658
    %3725 = vmatmul.mubr.f32.gmra.mrb[0].mxu0 %v3656
    %v3726 = vpop.f32.mrb[0].mxu0
    %v3727 = vadd.f32 0.0, %v3726
    %v3728 = vpop.f32.mrb[0].mxu0
    %3729 = vdwg.mxu0
    %3730 = vmatprep.subr.mxu0 0.0
    %3731 = vmatpush1.msra.mxu0 %v1472
    %3732 = vmatprep.subr.mxu0 0.0
    %3733 = vmatpush1.msra.mxu0 %v1473
    %3734 = vmatprep.subr.mxu0 0.0
    %3735 = vmatpush1.msra.mxu0 %v1474
    %3736 = vmatprep.subr.mxu0 0.0
    %3737 = vmatpush1.msra.mxu0 %v1475
    %3738 = vmatprep.subr.mxu0 0.0
    %3739 = vmatpush1.msra.mxu0 %v1476
    %3740 = vmatprep.subr.mxu0 0.0
    %3741 = vmatpush1.msra.mxu0 %v1477
    %3742 = vmatprep.subr.mxu0 0.0
    %3743 = vmatpush1.msra.mxu0 %v1478
    %3744 = vmatprep.subr.mxu0 0.0
    %3745 = vmatpush1.msra.mxu0 %v1479
    %3746 = vmatprep.subr.mxu0 0.0
    %3747 = vmatpush1.msra.mxu0 %v1480
    %3748 = vmatprep.subr.mxu0 0.0
    %3749 = vmatpush1.msra.mxu0 %v1481
    %3750 = vmatprep.subr.mxu0 0.0
    %3751 = vmatpush1.msra.mxu0 %v1482
    %3752 = vmatprep.subr.mxu0 0.0
    %3753 = vmatpush1.msra.mxu0 %v1483
    %3754 = vmatprep.subr.mxu0 0.0
    %3755 = vmatpush1.msra.mxu0 %v1484
    %3756 = vmatprep.subr.mxu0 0.0
    %3757 = vmatpush1.msra.mxu0 %v1485
    %3758 = vmatprep.subr.mxu0 0.0
    %3759 = vmatpush1.msra.mxu0 %v1486
    %3760 = vmatprep.subr.mxu0 0.0
    %3761 = vmatpush1.msra.mxu0 %v1487
    %3762 = vmatprep.subr.mxu0 0.0
    %3763 = vmatpush1.msra.mxu0 %v1488
    %3764 = vmatprep.subr.mxu0 0.0
    %3765 = vmatpush1.msra.mxu0 %v1489
    %3766 = vmatprep.subr.mxu0 0.0
    %3767 = vmatpush1.msra.mxu0 %v1490
    %3768 = vmatprep.subr.mxu0 0.0
    %3769 = vmatpush1.msra.mxu0 %v1491
    %3770 = vmatprep.subr.mxu0 0.0
    %3771 = vmatpush1.msra.mxu0 %v1492
    %3772 = vmatprep.subr.mxu0 0.0
    %3773 = vmatpush1.msra.mxu0 %v1493
    %3774 = vmatprep.subr.mxu0 0.0
    %3775 = vmatpush1.msra.mxu0 %v1494
    %3776 = vmatprep.subr.mxu0 0.0
    %3777 = vmatpush1.msra.mxu0 %v1495
    %3778 = vmatprep.subr.mxu0 0.0
    %3779 = vmatpush1.msra.mxu0 %v1496
    %3780 = vmatprep.subr.mxu0 0.0
    %3781 = vmatpush1.msra.mxu0 %v1497
    %3782 = vmatprep.subr.mxu0 0.0
    %3783 = vmatpush1.msra.mxu0 %v1498
    %3784 = vmatprep.subr.mxu0 0.0
    %3785 = vmatpush1.msra.mxu0 %v1499
    %3786 = vmatprep.subr.mxu0 0.0
    %3787 = vmatpush1.msra.mxu0 %v1500
    %3788 = vmatprep.subr.mxu0 0.0
    %3789 = vmatpush1.msra.mxu0 %v1501
    %3790 = vmatprep.subr.mxu0 0.0
    %3791 = vmatpush1.msra.mxu0 %v1502
    %3792 = vmatprep.subr.mxu0 0.0
    %3793 = vmatpush1.msra.mxu0 %v1503
    %3794 = vmatprep.mubr.f32.mxu0 %v2564
    %3795 = vmatmul.mubr.f32.gmra.mrb[0].mxu0 %v2562
    %v3796 = vpop.f32.mrb[0].mxu0
    %v3797 = vadd.f32 %v3727, %v3796
    %v3798 = vpop.f32.mrb[0].mxu0
    %3799 = vdwg.mxu0
    %v3800 = vld [vmem:[%s12] sm:$0x1]
    %v3802 = vlaneseq
    %v3803 = vshrl.u32 %v3802, 7
    %v3804 = vsub.s32 0, %v3803
    %v3805 = vrot.slane %v3800, %v3804
    %v3807 = vadd.f32 %v3797, %v3805
    %3808 = vst [vmem:[#allocation4] sm:$0x3] %v3807
    // Predicated region
    $region54: #{mannet_r_forward.1} parent=1 // pred_check
      _
    $region55: #{mannet_r_forward.1} parent=1 // pred_check_branch
      %3810 = sbr.rel (0) target = $region57
    $region56: #{mannet_r_forward.1} parent=1 // pred_region
      %s3812 = ssub.s32 32, 32
      %3813 = vsyncadd [#allocation5], %s3812
      %s3815 = sshll.u32 [#allocation4], 4
      %s3816 = int_to_ptr.vmem [resolvable:$true] %s3815
      %3818 = dma.vmem_to_hbm [thread:$0]  %s3816, 32, %s13, [#allocation5]
    $region57: #{mannet_r_forward.1} parent=1 // pred_fallthru
      _
    // Predicated region
    $region58: #{mannet_r_forward.1} parent=1 // pred_check
      _
    $region59: #{mannet_r_forward.1} parent=1 // pred_check_branch
      %3820 = sbr.rel (0) target = $region61
    $region60: #{mannet_r_forward.1} parent=1 // pred_region
      %3821 = dma.done [#allocation5], 32
    $region61: #{mannet_r_forward.1} parent=1 // pred_fallthru
      _
    %3822 = vsyncpa [#allocation5], 1

</llo_original>
